<compile_context>
chip_gen: v7x
topology: tpu7x:2x2x1
jax: 0.10.0
libtpu: 0.0.40
codegen_flags: <defaults>
</compile_context>

<pallas_src>
import functools
import math

import jax
import jax.numpy as jnp
from jax.experimental import pallas as pl
from jax.experimental.pallas import tpu as pltpu

# Synthetic FUNCTION_CONFIG (the original pulls these from a config dict).
FUNCTION_CONFIG = {
    "obs_dim": 32,       # input_dim
    "n_discrete": 16,    # output_dim (number of discrete actions)
}
HIDDEN_DIM = 256         # matches the nn.Module default hidden_dim=256
N_LAYERS = 7             # 1 input layer + 5 hidden layers + 1 output layer
N_OUT_PADDED = 128       # lane-dense padded output width
NEG_INF = -1e30          # padded-logit bias: never wins max, exp() underflows to 0


def policy_mlp_kernel(obs_ref, *refs):
    """Fused MLP forward + log_softmax.

    refs = (w1, b1, w2, b2, ..., w7, b7, out_ref)
    Weights are bf16 (MXU), biases f32; accumulation and log_softmax in f32.
    All parameters are resident in VMEM (small network), batch tiled on grid.
    """
    out_ref = refs[-1]
    param_refs = refs[:-1]

    x = obs_ref[...].astype(jnp.bfloat16)

    # 7 Linear layers; ReLU after all but the last.
    for layer in range(N_LAYERS):
        w_ref = param_refs[2 * layer]
        b_ref = param_refs[2 * layer + 1]
        y = jnp.dot(x, w_ref[...], preferred_element_type=jnp.float32) + b_ref[...]
        if layer < N_LAYERS - 1:
            x = jnp.maximum(y, 0.0).astype(jnp.bfloat16)
        else:
            x = y  # f32 logits; padded columns sit at ~NEG_INF

    # log_softmax over the last dim (numerically stable, f32). Padded columns
    # contribute exp(-huge) == 0 to the LSE and are sliced off in the wrapper.
    m = jnp.max(x, axis=-1, keepdims=True)
    shifted = x - m
    lse = jnp.log(jnp.sum(jnp.exp(shifted), axis=-1, keepdims=True))
    out_ref[...] = (shifted - lse).astype(out_ref.dtype)


@functools.partial(jax.jit, static_argnames=("n_out", "batch_tile"))
def policy_network_forward(obs, params, *, n_out, batch_tile=256):
    """obs: (B, obs_dim) float32.
    params: flat list [W1, b1, ..., W7, b7] as produced by prepare_params()
    (bf16 weights, f32 biases, last layer padded to N_OUT_PADDED columns)."""
    batch, obs_dim = obs.shape
    n_out_padded = params[-1].shape[-1]
    hidden = params[0].shape[-1]

    # Pad batch up to a tile multiple (padded rows are discarded after the call).
    padded_batch = ((batch + batch_tile - 1) // batch_tile) * batch_tile
    if padded_batch != batch:
        obs = jnp.pad(obs, ((0, padded_batch - batch), (0, 0)))

    grid = (padded_batch // batch_tile,)

    # obs / out are tiled over the batch; weights & biases are fully resident
    # (constant index_map -> same block every grid step).
    in_specs = [pl.BlockSpec((batch_tile, obs_dim), lambda i: (i, 0))]
    for p in params:
        in_specs.append(pl.BlockSpec(p.shape, lambda i: (0, 0)))
    out_spec = pl.BlockSpec((batch_tile, n_out_padded), lambda i: (i, 0))

    # Advisory cost estimate for XLA scheduling.
    flops = 2 * padded_batch * (
        obs_dim * hidden + (N_LAYERS - 2) * hidden * hidden + hidden * n_out_padded
    )
    param_bytes = sum(int(p.size) * p.dtype.itemsize for p in params)
    bytes_accessed = (
        padded_batch * obs_dim * obs.dtype.itemsize
        + param_bytes
        + padded_batch * n_out_padded * 4
    )
    cost = pl.CostEstimate(
        flops=flops,
        transcendentals=padded_batch * (n_out_padded + 1),
        bytes_accessed=bytes_accessed,
    )

    out = pl.pallas_call(
        policy_mlp_kernel,
        out_shape=jax.ShapeDtypeStruct((padded_batch, n_out_padded), jnp.float32),
        grid_spec=pltpu.PrefetchScalarGridSpec(
            num_scalar_prefetch=0,
            grid=grid,
            in_specs=in_specs,
            out_specs=out_spec,
        ),
        compiler_params=pltpu.CompilerParams(
            dimension_semantics=("parallel",),
        ),
        cost_estimate=cost,
    )(obs, *params)

    return out[:batch, :n_out]


def init_params(key, obs_dim, hidden_dim, n_out):
    """Deterministic synthetic init mirroring the module's layer shapes (f32).

    Weight i has shape (fan_in, fan_out) [transposed vs. PyTorch's (out, in)].
    """
    dims = [obs_dim] + [hidden_dim] * (N_LAYERS - 1) + [n_out]
    params = []
    for layer in range(N_LAYERS):
        fan_in, fan_out = dims[layer], dims[layer + 1]
        key, wk, bk = jax.random.split(key, 3)
        bound = 1.0 / math.sqrt(fan_in)
        w = jax.random.uniform(wk, (fan_in, fan_out), jnp.float32, -bound, bound)
        b = jax.random.uniform(bk, (1, fan_out), jnp.float32, -bound, bound)
        params += [w, b]
    return params


def prepare_params(params_f32, n_out_padded=N_OUT_PADDED):
    """Kernel-side param prep (done once, outside the hot path):
      * weights cast to bf16 for the MXU,
      * biases kept f32,
      * last layer padded to n_out_padded columns: zero weight columns and
        NEG_INF bias so padded logits never affect max / logsumexp.
    """
    n_out = params_f32[-1].shape[-1]
    pad = n_out_padded - n_out
    prepped = []
    for layer in range(N_LAYERS):
        w = params_f32[2 * layer]
        b = params_f32[2 * layer + 1]
        if layer == N_LAYERS - 1 and pad > 0:
            w = jnp.pad(w, ((0, 0), (0, pad)))
            b = jnp.pad(b, ((0, 0), (0, pad)), constant_values=NEG_INF)
        prepped.append(w.astype(jnp.bfloat16))
        prepped.append(b.astype(jnp.float32))
    return prepped


def _reference_forward(obs, params_f32):
    """Pure-JAX f32 reference for correctness checking."""
    x = obs
    for layer in range(N_LAYERS):
        w, b = params_f32[2 * layer], params_f32[2 * layer + 1]
        x = x @ w + b
        if layer < N_LAYERS - 1:
            x = jnp.maximum(x, 0.0)
    return jax.nn.log_softmax(x, axis=-1)


if __name__ == "__main__":
    obs_dim = FUNCTION_CONFIG["obs_dim"]
    n_out = FUNCTION_CONFIG["n_discrete"]

    params_f32 = init_params(jax.random.PRNGKey(42), obs_dim, HIDDEN_DIM, n_out)
    params = prepare_params(params_f32)

    k1, k2 = jax.random.split(jax.random.PRNGKey(0))

    # Case 1: batch = 2 * batch_tile -> grid of 2 "parallel" steps
    # (keeps both TensorCores busy on v7x, full 256-row MXU tiles on v6e/v7x).
    obs_big = jax.random.normal(k1, (512, obs_dim), dtype=jnp.float32)
    lp_big = jax.block_until_ready(policy_network_forward(obs_big, params, n_out=n_out))
    ref_big = _reference_forward(obs_big, params_f32)
    assert lp_big.shape == (512, n_out)
    # bf16 matmuls -> loosened tolerance vs f32 reference.
    assert jnp.allclose(lp_big, ref_big, atol=5e-2, rtol=5e-2), "mismatch vs reference (big)"
    assert jnp.allclose(jnp.sum(jnp.exp(lp_big), axis=-1), 1.0, atol=1e-3)

    # Case 2: small, non-tile-multiple batch -> exercises the padding path.
    obs_small = jax.random.normal(k2, (40, obs_dim), dtype=jnp.float32)
    lp_small = jax.block_until_ready(policy_network_forward(obs_small, params, n_out=n_out))
    ref_small = _reference_forward(obs_small, params_f32)
    assert lp_small.shape == (40, n_out)
    assert jnp.allclose(lp_small, ref_small, atol=5e-2, rtol=5e-2), "mismatch vs reference (small)"
    assert jnp.allclose(jnp.sum(jnp.exp(lp_small), axis=-1), 1.0, atol=1e-3)

    print("KERNEL_OK")
</pallas_src>

<mosaic_0001>
module attributes {stable_mosaic.version = 11 : i64} {
  func.func @policy_mlp_kernel(%arg0: i32, %arg1: memref<256x32xf32, #tpu.memory_space<vmem>>, %arg2: memref<32x256xbf16, #tpu.memory_space<vmem>>, %arg3: memref<1x256xf32, #tpu.memory_space<vmem>>, %arg4: memref<256x256xbf16, #tpu.memory_space<vmem>>, %arg5: memref<1x256xf32, #tpu.memory_space<vmem>>, %arg6: memref<256x256xbf16, #tpu.memory_space<vmem>>, %arg7: memref<1x256xf32, #tpu.memory_space<vmem>>, %arg8: memref<256x256xbf16, #tpu.memory_space<vmem>>, %arg9: memref<1x256xf32, #tpu.memory_space<vmem>>, %arg10: memref<256x256xbf16, #tpu.memory_space<vmem>>, %arg11: memref<1x256xf32, #tpu.memory_space<vmem>>, %arg12: memref<256x256xbf16, #tpu.memory_space<vmem>>, %arg13: memref<1x256xf32, #tpu.memory_space<vmem>>, %arg14: memref<256x128xbf16, #tpu.memory_space<vmem>>, %arg15: memref<1x128xf32, #tpu.memory_space<vmem>>, %arg16: memref<256x128xf32, #tpu.memory_space<vmem>>) attributes {dimension_semantics = [#tpu.dimension_semantics<parallel>], iteration_bounds = array<i64: 2>, scalar_prefetch = 0 : i64, scratch_operands = 0 : i64, tpu.core_type = #tpu.core_type<tc>, window_params = [{transform_indices = @transform_0, window_bounds = array<i64: 256, 32>}, {pipeline_mode = #tpu.pipeline_mode<synchronous>, transform_indices = @transform_1, window_bounds = array<i64: 32, 256>}, {pipeline_mode = #tpu.pipeline_mode<synchronous>, transform_indices = @transform_2, window_bounds = array<i64: 1, 256>}, {pipeline_mode = #tpu.pipeline_mode<synchronous>, transform_indices = @transform_3, window_bounds = array<i64: 256, 256>}, {pipeline_mode = #tpu.pipeline_mode<synchronous>, transform_indices = @transform_4, window_bounds = array<i64: 1, 256>}, {pipeline_mode = #tpu.pipeline_mode<synchronous>, transform_indices = @transform_5, window_bounds = array<i64: 256, 256>}, {pipeline_mode = #tpu.pipeline_mode<synchronous>, transform_indices = @transform_6, window_bounds = array<i64: 1, 256>}, {pipeline_mode = #tpu.pipeline_mode<synchronous>, transform_indices = @transform_7, window_bounds = array<i64: 256, 256>}, {pipeline_mode = #tpu.pipeline_mode<synchronous>, transform_indices = @transform_8, window_bounds = array<i64: 1, 256>}, {pipeline_mode = #tpu.pipeline_mode<synchronous>, transform_indices = @transform_9, window_bounds = array<i64: 256, 256>}, {pipeline_mode = #tpu.pipeline_mode<synchronous>, transform_indices = @transform_10, window_bounds = array<i64: 1, 256>}, {pipeline_mode = #tpu.pipeline_mode<synchronous>, transform_indices = @transform_11, window_bounds = array<i64: 256, 256>}, {pipeline_mode = #tpu.pipeline_mode<synchronous>, transform_indices = @transform_12, window_bounds = array<i64: 1, 256>}, {pipeline_mode = #tpu.pipeline_mode<synchronous>, transform_indices = @transform_13, window_bounds = array<i64: 256, 128>}, {pipeline_mode = #tpu.pipeline_mode<synchronous>, transform_indices = @transform_14, window_bounds = array<i64: 1, 128>}, {transform_indices = @transform_15, window_bounds = array<i64: 256, 128>}]} {
    %c0 = arith.constant 0 : index
    %c0_0 = arith.constant 0 : index
    %0 = vector.load %arg1[%c0, %c0_0] : memref<256x32xf32, #tpu.memory_space<vmem>>, vector<256x32xf32>
    %1 = arith.truncf %0 : vector<256x32xf32> to vector<256x32xbf16>
    %c0_1 = arith.constant 0 : index
    %c0_2 = arith.constant 0 : index
    %2 = vector.load %arg2[%c0_1, %c0_2] : memref<32x256xbf16, #tpu.memory_space<vmem>>, vector<32x256xbf16>
    %cst = arith.constant dense<0.000000e+00> : vector<256x256xf32>
    %3 = tpu.matmul %1, %2, %cst {dimension_numbers = #tpu.dot_dimension_numbers<[1], [0], [0], [1], [0, 0, 1, 1], [], []>} : vector<256x32xbf16>, vector<32x256xbf16>, vector<256x256xf32> -> vector<256x256xf32>
    %c0_3 = arith.constant 0 : index
    %c0_4 = arith.constant 0 : index
    %4 = vector.load %arg3[%c0_3, %c0_4] : memref<1x256xf32, #tpu.memory_space<vmem>>, vector<1x256xf32>
    %5 = vector.broadcast %4 : vector<1x256xf32> to vector<256x256xf32>
    %6 = arith.addf %3, %5 : vector<256x256xf32>
    %cst_5 = arith.constant 0.000000e+00 : f32
    %7 = vector.broadcast %cst_5 : f32 to vector<256x256xf32>
    %8 = arith.maximumf %6, %7 : vector<256x256xf32>
    %9 = arith.truncf %8 : vector<256x256xf32> to vector<256x256xbf16>
    %c0_6 = arith.constant 0 : index
    %c0_7 = arith.constant 0 : index
    %10 = vector.load %arg4[%c0_6, %c0_7] : memref<256x256xbf16, #tpu.memory_space<vmem>>, vector<256x256xbf16>
    %cst_8 = arith.constant dense<0.000000e+00> : vector<256x256xf32>
    %11 = tpu.matmul %9, %10, %cst_8 {dimension_numbers = #tpu.dot_dimension_numbers<[1], [0], [0], [1], [0, 0, 1, 1], [], []>} : vector<256x256xbf16>, vector<256x256xbf16>, vector<256x256xf32> -> vector<256x256xf32>
    %c0_9 = arith.constant 0 : index
    %c0_10 = arith.constant 0 : index
    %12 = vector.load %arg5[%c0_9, %c0_10] : memref<1x256xf32, #tpu.memory_space<vmem>>, vector<1x256xf32>
    %13 = vector.broadcast %12 : vector<1x256xf32> to vector<256x256xf32>
    %14 = arith.addf %11, %13 : vector<256x256xf32>
    %cst_11 = arith.constant 0.000000e+00 : f32
    %15 = vector.broadcast %cst_11 : f32 to vector<256x256xf32>
    %16 = arith.maximumf %14, %15 : vector<256x256xf32>
    %17 = arith.truncf %16 : vector<256x256xf32> to vector<256x256xbf16>
    %c0_12 = arith.constant 0 : index
    %c0_13 = arith.constant 0 : index
    %18 = vector.load %arg6[%c0_12, %c0_13] : memref<256x256xbf16, #tpu.memory_space<vmem>>, vector<256x256xbf16>
    %cst_14 = arith.constant dense<0.000000e+00> : vector<256x256xf32>
    %19 = tpu.matmul %17, %18, %cst_14 {dimension_numbers = #tpu.dot_dimension_numbers<[1], [0], [0], [1], [0, 0, 1, 1], [], []>} : vector<256x256xbf16>, vector<256x256xbf16>, vector<256x256xf32> -> vector<256x256xf32>
    %c0_15 = arith.constant 0 : index
    %c0_16 = arith.constant 0 : index
    %20 = vector.load %arg7[%c0_15, %c0_16] : memref<1x256xf32, #tpu.memory_space<vmem>>, vector<1x256xf32>
    %21 = vector.broadcast %20 : vector<1x256xf32> to vector<256x256xf32>
    %22 = arith.addf %19, %21 : vector<256x256xf32>
    %cst_17 = arith.constant 0.000000e+00 : f32
    %23 = vector.broadcast %cst_17 : f32 to vector<256x256xf32>
    %24 = arith.maximumf %22, %23 : vector<256x256xf32>
    %25 = arith.truncf %24 : vector<256x256xf32> to vector<256x256xbf16>
    %c0_18 = arith.constant 0 : index
    %c0_19 = arith.constant 0 : index
    %26 = vector.load %arg8[%c0_18, %c0_19] : memref<256x256xbf16, #tpu.memory_space<vmem>>, vector<256x256xbf16>
    %cst_20 = arith.constant dense<0.000000e+00> : vector<256x256xf32>
    %27 = tpu.matmul %25, %26, %cst_20 {dimension_numbers = #tpu.dot_dimension_numbers<[1], [0], [0], [1], [0, 0, 1, 1], [], []>} : vector<256x256xbf16>, vector<256x256xbf16>, vector<256x256xf32> -> vector<256x256xf32>
    %c0_21 = arith.constant 0 : index
    %c0_22 = arith.constant 0 : index
    %28 = vector.load %arg9[%c0_21, %c0_22] : memref<1x256xf32, #tpu.memory_space<vmem>>, vector<1x256xf32>
    %29 = vector.broadcast %28 : vector<1x256xf32> to vector<256x256xf32>
    %30 = arith.addf %27, %29 : vector<256x256xf32>
    %cst_23 = arith.constant 0.000000e+00 : f32
    %31 = vector.broadcast %cst_23 : f32 to vector<256x256xf32>
    %32 = arith.maximumf %30, %31 : vector<256x256xf32>
    %33 = arith.truncf %32 : vector<256x256xf32> to vector<256x256xbf16>
    %c0_24 = arith.constant 0 : index
    %c0_25 = arith.constant 0 : index
    %34 = vector.load %arg10[%c0_24, %c0_25] : memref<256x256xbf16, #tpu.memory_space<vmem>>, vector<256x256xbf16>
    %cst_26 = arith.constant dense<0.000000e+00> : vector<256x256xf32>
    %35 = tpu.matmul %33, %34, %cst_26 {dimension_numbers = #tpu.dot_dimension_numbers<[1], [0], [0], [1], [0, 0, 1, 1], [], []>} : vector<256x256xbf16>, vector<256x256xbf16>, vector<256x256xf32> -> vector<256x256xf32>
    %c0_27 = arith.constant 0 : index
    %c0_28 = arith.constant 0 : index
    %36 = vector.load %arg11[%c0_27, %c0_28] : memref<1x256xf32, #tpu.memory_space<vmem>>, vector<1x256xf32>
    %37 = vector.broadcast %36 : vector<1x256xf32> to vector<256x256xf32>
    %38 = arith.addf %35, %37 : vector<256x256xf32>
    %cst_29 = arith.constant 0.000000e+00 : f32
    %39 = vector.broadcast %cst_29 : f32 to vector<256x256xf32>
    %40 = arith.maximumf %38, %39 : vector<256x256xf32>
    %41 = arith.truncf %40 : vector<256x256xf32> to vector<256x256xbf16>
    %c0_30 = arith.constant 0 : index
    %c0_31 = arith.constant 0 : index
    %42 = vector.load %arg12[%c0_30, %c0_31] : memref<256x256xbf16, #tpu.memory_space<vmem>>, vector<256x256xbf16>
    %cst_32 = arith.constant dense<0.000000e+00> : vector<256x256xf32>
    %43 = tpu.matmul %41, %42, %cst_32 {dimension_numbers = #tpu.dot_dimension_numbers<[1], [0], [0], [1], [0, 0, 1, 1], [], []>} : vector<256x256xbf16>, vector<256x256xbf16>, vector<256x256xf32> -> vector<256x256xf32>
    %c0_33 = arith.constant 0 : index
    %c0_34 = arith.constant 0 : index
    %44 = vector.load %arg13[%c0_33, %c0_34] : memref<1x256xf32, #tpu.memory_space<vmem>>, vector<1x256xf32>
    %45 = vector.broadcast %44 : vector<1x256xf32> to vector<256x256xf32>
    %46 = arith.addf %43, %45 : vector<256x256xf32>
    %cst_35 = arith.constant 0.000000e+00 : f32
    %47 = vector.broadcast %cst_35 : f32 to vector<256x256xf32>
    %48 = arith.maximumf %46, %47 : vector<256x256xf32>
    %49 = arith.truncf %48 : vector<256x256xf32> to vector<256x256xbf16>
    %c0_36 = arith.constant 0 : index
    %c0_37 = arith.constant 0 : index
    %50 = vector.load %arg14[%c0_36, %c0_37] : memref<256x128xbf16, #tpu.memory_space<vmem>>, vector<256x128xbf16>
    %cst_38 = arith.constant dense<0.000000e+00> : vector<256x128xf32>
    %51 = tpu.matmul %49, %50, %cst_38 {dimension_numbers = #tpu.dot_dimension_numbers<[1], [0], [0], [1], [0, 0, 1, 1], [], []>} : vector<256x256xbf16>, vector<256x128xbf16>, vector<256x128xf32> -> vector<256x128xf32>
    %c0_39 = arith.constant 0 : index
    %c0_40 = arith.constant 0 : index
    %52 = vector.load %arg15[%c0_39, %c0_40] : memref<1x128xf32, #tpu.memory_space<vmem>>, vector<1x128xf32>
    %53 = vector.broadcast %52 : vector<1x128xf32> to vector<256x128xf32>
    %54 = arith.addf %51, %53 : vector<256x128xf32>
    %cst_41 = arith.constant dense<0xFF800000> : vector<256xf32>
    %55 = vector.multi_reduction <maximumf>, %54, %cst_41 [1] : vector<256x128xf32> to vector<256xf32>
    %56 = vector.shape_cast %55 : vector<256xf32> to vector<256x1xf32>
    %57 = vector.broadcast %56 : vector<256x1xf32> to vector<256x128xf32>
    %58 = arith.subf %54, %57 : vector<256x128xf32>
    %59 = math.exp %58 : vector<256x128xf32>
    %cst_42 = arith.constant dense<0.000000e+00> : vector<256xf32>
    %60 = vector.multi_reduction <add>, %59, %cst_42 [1] : vector<256x128xf32> to vector<256xf32>
    %61 = vector.shape_cast %60 : vector<256xf32> to vector<256x1xf32>
    %62 = math.log %61 : vector<256x1xf32>
    %63 = vector.broadcast %62 : vector<256x1xf32> to vector<256x128xf32>
    %64 = arith.subf %58, %63 : vector<256x128xf32>
    %c0_43 = arith.constant 0 : index
    %c0_44 = arith.constant 0 : index
    %65 = vector.load %arg16[%c0_43, %c0_44] : memref<256x128xf32, #tpu.memory_space<vmem>>, vector<256x128xf32>
    tpu.vector_store %arg16[%c0_43, %c0_44], %64 {strides = array<i32>} : memref<256x128xf32, #tpu.memory_space<vmem>>, vector<256x128xf32>,
    return
  }
  func.func @transform_0(%arg0: i32) -> (i32, i32) {
    %c0_i32 = arith.constant 0 : i32
    %c0_i32_0 = arith.constant 0 : i32
    return %arg0, %c0_i32 : i32, i32
  }
  func.func @transform_1(%arg0: i32) -> (i32, i32) {
    %c0_i32 = arith.constant 0 : i32
    %c0_i32_0 = arith.constant 0 : i32
    %c0_i32_1 = arith.constant 0 : i32
    return %c0_i32, %c0_i32_0 : i32, i32
  }
  func.func @transform_2(%arg0: i32) -> (i32, i32) {
    %c0_i32 = arith.constant 0 : i32
    %c0_i32_0 = arith.constant 0 : i32
    %c0_i32_1 = arith.constant 0 : i32
    return %c0_i32, %c0_i32_0 : i32, i32
  }
  func.func @transform_3(%arg0: i32) -> (i32, i32) {
    %c0_i32 = arith.constant 0 : i32
    %c0_i32_0 = arith.constant 0 : i32
    %c0_i32_1 = arith.constant 0 : i32
    return %c0_i32, %c0_i32_0 : i32, i32
  }
  func.func @transform_4(%arg0: i32) -> (i32, i32) {
    %c0_i32 = arith.constant 0 : i32
    %c0_i32_0 = arith.constant 0 : i32
    %c0_i32_1 = arith.constant 0 : i32
    return %c0_i32, %c0_i32_0 : i32, i32
  }
  func.func @transform_5(%arg0: i32) -> (i32, i32) {
    %c0_i32 = arith.constant 0 : i32
    %c0_i32_0 = arith.constant 0 : i32
    %c0_i32_1 = arith.constant 0 : i32
    return %c0_i32, %c0_i32_0 : i32, i32
  }
  func.func @transform_6(%arg0: i32) -> (i32, i32) {
    %c0_i32 = arith.constant 0 : i32
    %c0_i32_0 = arith.constant 0 : i32
    %c0_i32_1 = arith.constant 0 : i32
    return %c0_i32, %c0_i32_0 : i32, i32
  }
  func.func @transform_7(%arg0: i32) -> (i32, i32) {
    %c0_i32 = arith.constant 0 : i32
    %c0_i32_0 = arith.constant 0 : i32
    %c0_i32_1 = arith.constant 0 : i32
    return %c0_i32, %c0_i32_0 : i32, i32
  }
  func.func @transform_8(%arg0: i32) -> (i32, i32) {
    %c0_i32 = arith.constant 0 : i32
    %c0_i32_0 = arith.constant 0 : i32
    %c0_i32_1 = arith.constant 0 : i32
    return %c0_i32, %c0_i32_0 : i32, i32
  }
  func.func @transform_9(%arg0: i32) -> (i32, i32) {
    %c0_i32 = arith.constant 0 : i32
    %c0_i32_0 = arith.constant 0 : i32
    %c0_i32_1 = arith.constant 0 : i32
    return %c0_i32, %c0_i32_0 : i32, i32
  }
  func.func @transform_10(%arg0: i32) -> (i32, i32) {
    %c0_i32 = arith.constant 0 : i32
    %c0_i32_0 = arith.constant 0 : i32
    %c0_i32_1 = arith.constant 0 : i32
    return %c0_i32, %c0_i32_0 : i32, i32
  }
  func.func @transform_11(%arg0: i32) -> (i32, i32) {
    %c0_i32 = arith.constant 0 : i32
    %c0_i32_0 = arith.constant 0 : i32
    %c0_i32_1 = arith.constant 0 : i32
    return %c0_i32, %c0_i32_0 : i32, i32
  }
  func.func @transform_12(%arg0: i32) -> (i32, i32) {
    %c0_i32 = arith.constant 0 : i32
    %c0_i32_0 = arith.constant 0 : i32
    %c0_i32_1 = arith.constant 0 : i32
    return %c0_i32, %c0_i32_0 : i32, i32
  }
  func.func @transform_13(%arg0: i32) -> (i32, i32) {
    %c0_i32 = arith.constant 0 : i32
    %c0_i32_0 = arith.constant 0 : i32
    %c0_i32_1 = arith.constant 0 : i32
    return %c0_i32, %c0_i32_0 : i32, i32
  }
  func.func @transform_14(%arg0: i32) -> (i32, i32) {
    %c0_i32 = arith.constant 0 : i32
    %c0_i32_0 = arith.constant 0 : i32
    %c0_i32_1 = arith.constant 0 : i32
    return %c0_i32, %c0_i32_0 : i32, i32
  }
  func.func @transform_15(%arg0: i32) -> (i32, i32) {
    %c0_i32 = arith.constant 0 : i32
    %c0_i32_0 = arith.constant 0 : i32
    return %arg0, %c0_i32 : i32, i32
  }
}

</mosaic_0001>

<llo_original>
// kernel: policy_network_forward.1
$region0: #{policy_network_forward.1}
  #allocation0 [shape = 'u32[]', space=smem, size = 0x4, offset = 0x4, fixed_abs, tag = 'smem constant byte address 0x4 - core index']
  #allocation1 [shape = 'u32[144,128]{1,0:T(1,128)}', space=vmem, size = 0x12000, scoped, tag = 'internal scratch']
  %s0 = inlined_call_operand.vmem [shape: f32[512,32], index: 0, kind: input, shape index: {}]
  %s1 = inlined_call_operand.hbm [shape: bf16[32,256], index: 1, kind: input, shape index: {}]
  %s2 = inlined_call_operand.vmem [shape: f32[1,256], index: 2, kind: input, shape index: {}]
  %s3 = inlined_call_operand.vmem [shape: bf16[256,256], index: 3, kind: input, shape index: {}]
  %s4 = inlined_call_operand.vmem [shape: f32[1,256], index: 4, kind: input, shape index: {}]
  %s5 = inlined_call_operand.vmem [shape: bf16[256,256], index: 5, kind: input, shape index: {}]
  %s6 = inlined_call_operand.vmem [shape: f32[1,256], index: 6, kind: input, shape index: {}]
  %s7 = inlined_call_operand.hbm [shape: bf16[256,256], index: 7, kind: input, shape index: {}]
  %s8 = inlined_call_operand.vmem [shape: f32[1,256], index: 8, kind: input, shape index: {}]
  %s9 = inlined_call_operand.hbm [shape: bf16[256,256], index: 9, kind: input, shape index: {}]
  %s10 = inlined_call_operand.vmem [shape: f32[1,256], index: 10, kind: input, shape index: {}]
  %s11 = inlined_call_operand.hbm [shape: bf16[256,256], index: 11, kind: input, shape index: {}]
  %s12 = inlined_call_operand.vmem [shape: f32[1,256], index: 12, kind: input, shape index: {}]
  %s13 = inlined_call_operand.vmem [shape: bf16[256,128], index: 13, kind: input, shape index: {}]
  %s14 = inlined_call_operand.vmem [shape: f32[1,128], index: 14, kind: input, shape index: {}]
  %s15 = inlined_call_operand.vmem [shape: f32[512,128], index: 15, kind: output, shape index: {}]
  %s16 = sld [smem:[#allocation0]]
  $region109: #{policy_network_forward.1} parent=0
    _
  %s18 = ssub.s32 1, %s16
  %s19 = scalar_select 0, %s18, %s16
  $region1: #{policy_network_forward.1} parent=0
    #allocation2 [shape = 'u8[16384]{0}', space=vmem, size = 0x4000, scoped, tag = 'input window, operand 1, single buffered']
    #allocation3 [shape = 's32[2]{0}', space=sflag, size = 0x8, scoped, tag = 'scoped memory for policy_network_forward.1']
    #allocation4 [shape = 'u8[131072]{0}', space=vmem, size = 0x20000, scoped, tag = 'input window, operand 7, single buffered']
    #allocation5 [shape = 's32[1]{0}', space=sflag, size = 0x4, scoped, tag = 'scoped memory for policy_network_forward.1']
    #allocation6 [shape = 'u8[131072]{0}', space=vmem, size = 0x20000, scoped, tag = 'input window, operand 9, single buffered']
    #allocation7 [shape = 'u8[131072]{0}', space=vmem, size = 0x20000, scoped, tag = 'input window, operand 11, single buffered']
    #allocation8 [shape = 's32[1]{0}', space=sflag, size = 0x4, scoped, tag = 'scoped memory for policy_network_forward.1']
    %20 = vsyncpa [#allocation3], 0
    %21 = vsyncpa [#allocation5], 0
    %22 = vsyncpa [#allocation8], 0
    loop: start=0, step=1, limit=4
    $region2: #{policy_network_forward.1} parent=1 // loop_pre_header
      _
    $region3: #{policy_network_forward.1} parent=1 // loop_header
      %s24 = sphi 0, %s28
      %p25 = scmp.ge.s32.totalorder %s24, 4
      %s34 = sphi 0, %s36
      %s37 = sphi 0, %s34
      %s38 = sphi 0, %s37
      %s54 = sphi 0, %s38
      %s58 = sphi 0, %s58
      %s60 = sphi 0, %s58
      %s61 = sphi 0, %s60
      %s75 = sphi 0, %s61
      %s79 = sphi 0, %s79
      %s81 = sphi 0, %s79
      %s82 = sphi 0, %s81
      %s96 = sphi 0, %s82
      %s100 = sphi 0, %s100
      %s102 = sphi 0, %s100
      %s103 = sphi 0, %s102
      %s117 = sphi 0, %s103
      %s121 = sphi 0, %s121
      %s123 = sphi 0, %s121
      %s124 = sphi 0, %s123
      %s138 = sphi 0, %s124
      %s142 = sphi 0, %s142
      %s144 = sphi 0, %s142
      %s145 = sphi 0, %s144
      %s159 = sphi 0, %s145
      %s163 = sphi 0, %s163
      %s165 = sphi 0, %s163
      %s166 = sphi 0, %s165
      %s180 = sphi 0, %s166
      %s184 = sphi 0, %s184
      %s186 = sphi 0, %s184
      %s187 = sphi 0, %s186
      %s201 = sphi 0, %s187
      %s205 = sphi 0, %s205
      %s207 = sphi 0, %s205
      %s208 = sphi 0, %s207
      %s222 = sphi 0, %s208
      %s226 = sphi 0, %s226
      %s228 = sphi 0, %s226
      %s229 = sphi 0, %s228
      %s243 = sphi 0, %s229
      %s247 = sphi 0, %s247
      %s249 = sphi 0, %s247
      %s250 = sphi 0, %s249
      %s264 = sphi 0, %s250
      %s268 = sphi 0, %s268
      %s270 = sphi 0, %s268
      %s271 = sphi 0, %s270
      %s285 = sphi 0, %s271
      %s289 = sphi 0, %s289
      %s291 = sphi 0, %s289
      %s292 = sphi 0, %s291
      %s306 = sphi 0, %s292
      %s310 = sphi 0, %s310
      %s312 = sphi 0, %s310
      %s313 = sphi 0, %s312
      %s327 = sphi 0, %s313
      %s331 = sphi 0, %s331
      %s333 = sphi 0, %s331
      %s334 = sphi 0, %s333
      %s348 = sphi 0, %s334
      %s354 = sphi 0, %s356
      %s357 = sphi 0, %s354
      %s358 = sphi 0, %s357
      %s374 = sphi 0, %s358
    $region4: #{policy_network_forward.1} parent=1 // loop_header_branch
      %27 = sbr.rel (%p25) target = $region8
    $region5: #{policy_network_forward.1} parent=1 // loop_body
      %s29 = ssub.s32 %s24, 1
      %s30 = ssub.s32 %s24, 2
      %s31 = sadd.s32 %s24, 1
      %s32 = ssub.s32 %s24, %s31
      %p33 = scmp.eq.s32.totalorder %s32, 0
      %s35 = sadd.s32 %s34, 1
      %s36 = scalar_select %p33, %s34, %s35
      %p39 = pneg %p33
      %p40 = scmp.eq.s32.totalorder %s24, 1
      %p41 = por %p39, %p40
      %p42 = scmp.ne.s32.totalorder %s34, %s37
      %p43 = scmp.eq.s32.totalorder %s24, 0
      %p44 = por %p42, %p43
      %p45 = scmp.ne.s32.totalorder %s34, %s37
      %p46 = scmp.eq.s32.totalorder %s29, 1
      %p47 = por %p45, %p46
      %p48 = scmp.ne.s32.totalorder %s37, %s38
      %p49 = scmp.eq.s32.totalorder %s29, 0
      %p50 = por %p48, %p49
      %p51 = scmp.ne.s32.totalorder %s37, %s38
      %p52 = scmp.eq.s32.totalorder %s30, 1
      %p53 = por %p51, %p52
      %p55 = scmp.ne.s32.totalorder %s38, %s54
      %p56 = scmp.eq.s32.totalorder %s30, 0
      %p57 = por %p55, %p56
      %s59 = sadd.s32 %s58, 1
      %p62 = scmp.eq.s32.totalorder %s24, 1
      %p63 = scmp.ne.s32.totalorder %s58, %s60
      %p64 = scmp.eq.s32.totalorder %s24, 0
      %p65 = por %p63, %p64
      %p66 = scmp.ne.s32.totalorder %s58, %s60
      %p67 = scmp.eq.s32.totalorder %s29, 1
      %p68 = por %p66, %p67
      %p69 = scmp.ne.s32.totalorder %s60, %s61
      %p70 = scmp.eq.s32.totalorder %s29, 0
      %p71 = por %p69, %p70
      %p72 = scmp.ne.s32.totalorder %s60, %s61
      %p73 = scmp.eq.s32.totalorder %s30, 1
      %p74 = por %p72, %p73
      %p76 = scmp.ne.s32.totalorder %s61, %s75
      %p77 = scmp.eq.s32.totalorder %s30, 0
      %p78 = por %p76, %p77
      %s80 = sadd.s32 %s79, 1
      %p83 = scmp.eq.s32.totalorder %s24, 1
      %p84 = scmp.ne.s32.totalorder %s79, %s81
      %p85 = scmp.eq.s32.totalorder %s24, 0
      %p86 = por %p84, %p85
      %p87 = scmp.ne.s32.totalorder %s79, %s81
      %p88 = scmp.eq.s32.totalorder %s29, 1
      %p89 = por %p87, %p88
      %p90 = scmp.ne.s32.totalorder %s81, %s82
      %p91 = scmp.eq.s32.totalorder %s29, 0
      %p92 = por %p90, %p91
      %p93 = scmp.ne.s32.totalorder %s81, %s82
      %p94 = scmp.eq.s32.totalorder %s30, 1
      %p95 = por %p93, %p94
      %p97 = scmp.ne.s32.totalorder %s82, %s96
      %p98 = scmp.eq.s32.totalorder %s30, 0
      %p99 = por %p97, %p98
      %s101 = sadd.s32 %s100, 1
      %p104 = scmp.eq.s32.totalorder %s24, 1
      %p105 = scmp.ne.s32.totalorder %s100, %s102
      %p106 = scmp.eq.s32.totalorder %s24, 0
      %p107 = por %p105, %p106
      %p108 = scmp.ne.s32.totalorder %s100, %s102
      %p109 = scmp.eq.s32.totalorder %s29, 1
      %p110 = por %p108, %p109
      %p111 = scmp.ne.s32.totalorder %s102, %s103
      %p112 = scmp.eq.s32.totalorder %s29, 0
      %p113 = por %p111, %p112
      %p114 = scmp.ne.s32.totalorder %s102, %s103
      %p115 = scmp.eq.s32.totalorder %s30, 1
      %p116 = por %p114, %p115
      %p118 = scmp.ne.s32.totalorder %s103, %s117
      %p119 = scmp.eq.s32.totalorder %s30, 0
      %p120 = por %p118, %p119
      %s122 = sadd.s32 %s121, 1
      %p125 = scmp.eq.s32.totalorder %s24, 1
      %p126 = scmp.ne.s32.totalorder %s121, %s123
      %p127 = scmp.eq.s32.totalorder %s24, 0
      %p128 = por %p126, %p127
      %p129 = scmp.ne.s32.totalorder %s121, %s123
      %p130 = scmp.eq.s32.totalorder %s29, 1
      %p131 = por %p129, %p130
      %p132 = scmp.ne.s32.totalorder %s123, %s124
      %p133 = scmp.eq.s32.totalorder %s29, 0
      %p134 = por %p132, %p133
      %p135 = scmp.ne.s32.totalorder %s123, %s124
      %p136 = scmp.eq.s32.totalorder %s30, 1
      %p137 = por %p135, %p136
      %p139 = scmp.ne.s32.totalorder %s124, %s138
      %p140 = scmp.eq.s32.totalorder %s30, 0
      %p141 = por %p139, %p140
      %s143 = sadd.s32 %s142, 1
      %p146 = scmp.eq.s32.totalorder %s24, 1
      %p147 = scmp.ne.s32.totalorder %s142, %s144
      %p148 = scmp.eq.s32.totalorder %s24, 0
      %p149 = por %p147, %p148
      %p150 = scmp.ne.s32.totalorder %s142, %s144
      %p151 = scmp.eq.s32.totalorder %s29, 1
      %p152 = por %p150, %p151
      %p153 = scmp.ne.s32.totalorder %s144, %s145
      %p154 = scmp.eq.s32.totalorder %s29, 0
      %p155 = por %p153, %p154
      %p156 = scmp.ne.s32.totalorder %s144, %s145
      %p157 = scmp.eq.s32.totalorder %s30, 1
      %p158 = por %p156, %p157
      %p160 = scmp.ne.s32.totalorder %s145, %s159
      %p161 = scmp.eq.s32.totalorder %s30, 0
      %p162 = por %p160, %p161
      %s164 = sadd.s32 %s163, 1
      %p167 = scmp.eq.s32.totalorder %s24, 1
      %p168 = scmp.ne.s32.totalorder %s163, %s165
      %p169 = scmp.eq.s32.totalorder %s24, 0
      %p170 = por %p168, %p169
      %p171 = scmp.ne.s32.totalorder %s163, %s165
      %p172 = scmp.eq.s32.totalorder %s29, 1
      %p173 = por %p171, %p172
      %p174 = scmp.ne.s32.totalorder %s165, %s166
      %p175 = scmp.eq.s32.totalorder %s29, 0
      %p176 = por %p174, %p175
      %p177 = scmp.ne.s32.totalorder %s165, %s166
      %p178 = scmp.eq.s32.totalorder %s30, 1
      %p179 = por %p177, %p178
      %p181 = scmp.ne.s32.totalorder %s166, %s180
      %p182 = scmp.eq.s32.totalorder %s30, 0
      %p183 = por %p181, %p182
      %s185 = sadd.s32 %s184, 1
      %p188 = scmp.eq.s32.totalorder %s24, 1
      %p189 = scmp.ne.s32.totalorder %s184, %s186
      %p190 = scmp.eq.s32.totalorder %s24, 0
      %p191 = por %p189, %p190
      %p192 = scmp.ne.s32.totalorder %s184, %s186
      %p193 = scmp.eq.s32.totalorder %s29, 1
      %p194 = por %p192, %p193
      %p195 = scmp.ne.s32.totalorder %s186, %s187
      %p196 = scmp.eq.s32.totalorder %s29, 0
      %p197 = por %p195, %p196
      %p198 = scmp.ne.s32.totalorder %s186, %s187
      %p199 = scmp.eq.s32.totalorder %s30, 1
      %p200 = por %p198, %p199
      %p202 = scmp.ne.s32.totalorder %s187, %s201
      %p203 = scmp.eq.s32.totalorder %s30, 0
      %p204 = por %p202, %p203
      %s206 = sadd.s32 %s205, 1
      %p209 = scmp.eq.s32.totalorder %s24, 1
      %p210 = scmp.ne.s32.totalorder %s205, %s207
      %p211 = scmp.eq.s32.totalorder %s24, 0
      %p212 = por %p210, %p211
      %p213 = scmp.ne.s32.totalorder %s205, %s207
      %p214 = scmp.eq.s32.totalorder %s29, 1
      %p215 = por %p213, %p214
      %p216 = scmp.ne.s32.totalorder %s207, %s208
      %p217 = scmp.eq.s32.totalorder %s29, 0
      %p218 = por %p216, %p217
      %p219 = scmp.ne.s32.totalorder %s207, %s208
      %p220 = scmp.eq.s32.totalorder %s30, 1
      %p221 = por %p219, %p220
      %p223 = scmp.ne.s32.totalorder %s208, %s222
      %p224 = scmp.eq.s32.totalorder %s30, 0
      %p225 = por %p223, %p224
      %s227 = sadd.s32 %s226, 1
      %p230 = scmp.eq.s32.totalorder %s24, 1
      %p231 = scmp.ne.s32.totalorder %s226, %s228
      %p232 = scmp.eq.s32.totalorder %s24, 0
      %p233 = por %p231, %p232
      %p234 = scmp.ne.s32.totalorder %s226, %s228
      %p235 = scmp.eq.s32.totalorder %s29, 1
      %p236 = por %p234, %p235
      %p237 = scmp.ne.s32.totalorder %s228, %s229
      %p238 = scmp.eq.s32.totalorder %s29, 0
      %p239 = por %p237, %p238
      %p240 = scmp.ne.s32.totalorder %s228, %s229
      %p241 = scmp.eq.s32.totalorder %s30, 1
      %p242 = por %p240, %p241
      %p244 = scmp.ne.s32.totalorder %s229, %s243
      %p245 = scmp.eq.s32.totalorder %s30, 0
      %p246 = por %p244, %p245
      %s248 = sadd.s32 %s247, 1
      %p251 = scmp.eq.s32.totalorder %s24, 1
      %p252 = scmp.ne.s32.totalorder %s247, %s249
      %p253 = scmp.eq.s32.totalorder %s24, 0
      %p254 = por %p252, %p253
      %p255 = scmp.ne.s32.totalorder %s247, %s249
      %p256 = scmp.eq.s32.totalorder %s29, 1
      %p257 = por %p255, %p256
      %p258 = scmp.ne.s32.totalorder %s249, %s250
      %p259 = scmp.eq.s32.totalorder %s29, 0
      %p260 = por %p258, %p259
      %p261 = scmp.ne.s32.totalorder %s249, %s250
      %p262 = scmp.eq.s32.totalorder %s30, 1
      %p263 = por %p261, %p262
      %p265 = scmp.ne.s32.totalorder %s250, %s264
      %p266 = scmp.eq.s32.totalorder %s30, 0
      %p267 = por %p265, %p266
      %s269 = sadd.s32 %s268, 1
      %p272 = scmp.eq.s32.totalorder %s24, 1
      %p273 = scmp.ne.s32.totalorder %s268, %s270
      %p274 = scmp.eq.s32.totalorder %s24, 0
      %p275 = por %p273, %p274
      %p276 = scmp.ne.s32.totalorder %s268, %s270
      %p277 = scmp.eq.s32.totalorder %s29, 1
      %p278 = por %p276, %p277
      %p279 = scmp.ne.s32.totalorder %s270, %s271
      %p280 = scmp.eq.s32.totalorder %s29, 0
      %p281 = por %p279, %p280
      %p282 = scmp.ne.s32.totalorder %s270, %s271
      %p283 = scmp.eq.s32.totalorder %s30, 1
      %p284 = por %p282, %p283
      %p286 = scmp.ne.s32.totalorder %s271, %s285
      %p287 = scmp.eq.s32.totalorder %s30, 0
      %p288 = por %p286, %p287
      %s290 = sadd.s32 %s289, 1
      %p293 = scmp.eq.s32.totalorder %s24, 1
      %p294 = scmp.ne.s32.totalorder %s289, %s291
      %p295 = scmp.eq.s32.totalorder %s24, 0
      %p296 = por %p294, %p295
      %p297 = scmp.ne.s32.totalorder %s289, %s291
      %p298 = scmp.eq.s32.totalorder %s29, 1
      %p299 = por %p297, %p298
      %p300 = scmp.ne.s32.totalorder %s291, %s292
      %p301 = scmp.eq.s32.totalorder %s29, 0
      %p302 = por %p300, %p301
      %p303 = scmp.ne.s32.totalorder %s291, %s292
      %p304 = scmp.eq.s32.totalorder %s30, 1
      %p305 = por %p303, %p304
      %p307 = scmp.ne.s32.totalorder %s292, %s306
      %p308 = scmp.eq.s32.totalorder %s30, 0
      %p309 = por %p307, %p308
      %s311 = sadd.s32 %s310, 1
      %p314 = scmp.eq.s32.totalorder %s24, 1
      %p315 = scmp.ne.s32.totalorder %s310, %s312
      %p316 = scmp.eq.s32.totalorder %s24, 0
      %p317 = por %p315, %p316
      %p318 = scmp.ne.s32.totalorder %s310, %s312
      %p319 = scmp.eq.s32.totalorder %s29, 1
      %p320 = por %p318, %p319
      %p321 = scmp.ne.s32.totalorder %s312, %s313
      %p322 = scmp.eq.s32.totalorder %s29, 0
      %p323 = por %p321, %p322
      %p324 = scmp.ne.s32.totalorder %s312, %s313
      %p325 = scmp.eq.s32.totalorder %s30, 1
      %p326 = por %p324, %p325
      %p328 = scmp.ne.s32.totalorder %s313, %s327
      %p329 = scmp.eq.s32.totalorder %s30, 0
      %p330 = por %p328, %p329
      %s332 = sadd.s32 %s331, 1
      %p335 = scmp.eq.s32.totalorder %s24, 1
      %p336 = scmp.ne.s32.totalorder %s331, %s333
      %p337 = scmp.eq.s32.totalorder %s24, 0
      %p338 = por %p336, %p337
      %p339 = scmp.ne.s32.totalorder %s331, %s333
      %p340 = scmp.eq.s32.totalorder %s29, 1
      %p341 = por %p339, %p340
      %p342 = scmp.ne.s32.totalorder %s333, %s334
      %p343 = scmp.eq.s32.totalorder %s29, 0
      %p344 = por %p342, %p343
      %p345 = scmp.ne.s32.totalorder %s333, %s334
      %p346 = scmp.eq.s32.totalorder %s30, 1
      %p347 = por %p345, %p346
      %p349 = scmp.ne.s32.totalorder %s334, %s348
      %p350 = scmp.eq.s32.totalorder %s30, 0
      %p351 = por %p349, %p350
      %s352 = ssub.s32 %s24, %s31
      %p353 = scmp.eq.s32.totalorder %s352, 0
      %s355 = sadd.s32 %s354, 1
      %s356 = scalar_select %p353, %s354, %s355
      %p359 = pneg %p353
      %p360 = scmp.eq.s32.totalorder %s24, 1
      %p361 = por %p359, %p360
      %p362 = scmp.ne.s32.totalorder %s354, %s357
      %p363 = scmp.eq.s32.totalorder %s24, 0
      %p364 = por %p362, %p363
      %p365 = scmp.ne.s32.totalorder %s354, %s357
      %p366 = scmp.eq.s32.totalorder %s29, 1
      %p367 = por %p365, %p366
      %p368 = scmp.ne.s32.totalorder %s357, %s358
      %p369 = scmp.eq.s32.totalorder %s29, 0
      %p370 = por %p368, %p369
      %p371 = scmp.ne.s32.totalorder %s357, %s358
      %p372 = scmp.eq.s32.totalorder %s30, 1
      %p373 = por %p371, %p372
      %p375 = scmp.ne.s32.totalorder %s358, %s374
      %p376 = scmp.eq.s32.totalorder %s30, 0
      %p377 = por %p375, %p376
      %p378 = scmp.le.s32.totalorder 1, %s24
      %p379 = scmp.lt.s32.totalorder %s24, 3
      %p380 = pnand %p378, %p379
      %p381 = pneg %p380
      // Predicated region
      $region9: #{policy_network_forward.1} parent=5 // pred_check
        _
      $region10: #{policy_network_forward.1} parent=5 // pred_check_branch
        %383 = sbr.rel (%p380) target = $region12
      $region11: #{policy_network_forward.1} parent=5 // pred_region
        %s384 = ssub.s32 %s24, 1
        // Predicated region
        $region13: #{policy_network_forward.1} parent=11 // pred_check
          %p385 = pneg %p71
        $region14: #{policy_network_forward.1} parent=11 // pred_check_branch
          %387 = sbr.rel (%p385) target = $region16
        $region15: #{policy_network_forward.1} parent=11 // pred_region
          %s389 = ssub.s32 512, 512
          %390 = vsyncadd [#allocation3], %s389
          %s391 = sshll.u32 [#allocation2], 4
          %s392 = int_to_ptr.vmem [resolvable:$true] %s391
          %397 = dma.hbm_to_vmem [thread:$0]  %s1, 512, %s392, [#allocation3], 128, 128, 8
        $region16: #{policy_network_forward.1} parent=11 // pred_fallthru
          _
        // Predicated region
        $region17: #{policy_network_forward.1} parent=11 // pred_check
          %p398 = pneg %p92
        $region18: #{policy_network_forward.1} parent=11 // pred_check_branch
          %400 = sbr.rel (%p398) target = $region20
        $region19: #{policy_network_forward.1} parent=11 // pred_region
          _
        $region20: #{policy_network_forward.1} parent=11 // pred_fallthru
          _
        // Predicated region
        $region21: #{policy_network_forward.1} parent=11 // pred_check
          %p401 = pneg %p113
        $region22: #{policy_network_forward.1} parent=11 // pred_check_branch
          %403 = sbr.rel (%p401) target = $region24
        $region23: #{policy_network_forward.1} parent=11 // pred_region
          _
        $region24: #{policy_network_forward.1} parent=11 // pred_fallthru
          _
        // Predicated region
        $region25: #{policy_network_forward.1} parent=11 // pred_check
          %p404 = pneg %p134
        $region26: #{policy_network_forward.1} parent=11 // pred_check_branch
          %406 = sbr.rel (%p404) target = $region28
        $region27: #{policy_network_forward.1} parent=11 // pred_region
          _
        $region28: #{policy_network_forward.1} parent=11 // pred_fallthru
          _
        // Predicated region
        $region29: #{policy_network_forward.1} parent=11 // pred_check
          %p407 = pneg %p155
        $region30: #{policy_network_forward.1} parent=11 // pred_check_branch
          %409 = sbr.rel (%p407) target = $region32
        $region31: #{policy_network_forward.1} parent=11 // pred_region
          _
        $region32: #{policy_network_forward.1} parent=11 // pred_fallthru
          _
        // Predicated region
        $region33: #{policy_network_forward.1} parent=11 // pred_check
          %p410 = pneg %p176
        $region34: #{policy_network_forward.1} parent=11 // pred_check_branch
          %412 = sbr.rel (%p410) target = $region36
        $region35: #{policy_network_forward.1} parent=11 // pred_region
          _
        $region36: #{policy_network_forward.1} parent=11 // pred_fallthru
          _
        // Predicated region
        $region37: #{policy_network_forward.1} parent=11 // pred_check
          %p413 = pneg %p197
        $region38: #{policy_network_forward.1} parent=11 // pred_check_branch
          %415 = sbr.rel (%p413) target = $region40
        $region39: #{policy_network_forward.1} parent=11 // pred_region
          %s417 = ssub.s32 4096, 4096
          %418 = vsyncadd [#allocation5], %s417
          %s419 = sshll.u32 [#allocation4], 4
          %s420 = int_to_ptr.vmem [resolvable:$true] %s419
          %425 = dma.hbm_to_vmem [thread:$0]  %s7, 4096, %s420, [#allocation5], 128, 128, 8
        $region40: #{policy_network_forward.1} parent=11 // pred_fallthru
          _
        // Predicated region
        $region41: #{policy_network_forward.1} parent=11 // pred_check
          %p426 = pneg %p218
        $region42: #{policy_network_forward.1} parent=11 // pred_check_branch
          %428 = sbr.rel (%p426) target = $region44
        $region43: #{policy_network_forward.1} parent=11 // pred_region
          _
        $region44: #{policy_network_forward.1} parent=11 // pred_fallthru
          _
        // Predicated region
        $region45: #{policy_network_forward.1} parent=11 // pred_check
          %p429 = pneg %p239
        $region46: #{policy_network_forward.1} parent=11 // pred_check_branch
          %431 = sbr.rel (%p429) target = $region48
        $region47: #{policy_network_forward.1} parent=11 // pred_region
          %s433 = ssub.s32 4096, 4096
          %434 = vsyncadd [#allocation5], %s433
          %s435 = sshll.u32 [#allocation6], 4
          %s436 = int_to_ptr.vmem [resolvable:$true] %s435
          %441 = dma.hbm_to_vmem [thread:$0]  %s9, 4096, %s436, [#allocation5], 128, 128, 8
        $region48: #{policy_network_forward.1} parent=11 // pred_fallthru
          _
        // Predicated region
        $region49: #{policy_network_forward.1} parent=11 // pred_check
          %p442 = pneg %p260
        $region50: #{policy_network_forward.1} parent=11 // pred_check_branch
          %444 = sbr.rel (%p442) target = $region52
        $region51: #{policy_network_forward.1} parent=11 // pred_region
          _
        $region52: #{policy_network_forward.1} parent=11 // pred_fallthru
          _
        // Predicated region
        $region53: #{policy_network_forward.1} parent=11 // pred_check
          %p445 = pneg %p281
        $region54: #{policy_network_forward.1} parent=11 // pred_check_branch
          %447 = sbr.rel (%p445) target = $region56
        $region55: #{policy_network_forward.1} parent=11 // pred_region
          %s449 = ssub.s32 4096, 4096
          %450 = vsyncadd [#allocation8], %s449
          %s451 = sshll.u32 [#allocation7], 4
          %s452 = int_to_ptr.vmem [resolvable:$true] %s451
          %457 = dma.hbm_to_vmem [thread:$0]  %s11, 4096, %s452, [#allocation8], 128, 128, 8
        $region56: #{policy_network_forward.1} parent=11 // pred_fallthru
          _
        // Predicated region
        $region57: #{policy_network_forward.1} parent=11 // pred_check
          %p458 = pneg %p302
        $region58: #{policy_network_forward.1} parent=11 // pred_check_branch
          %460 = sbr.rel (%p458) target = $region60
        $region59: #{policy_network_forward.1} parent=11 // pred_region
          _
        $region60: #{policy_network_forward.1} parent=11 // pred_fallthru
          _
        // Predicated region
        $region61: #{policy_network_forward.1} parent=11 // pred_check
          %p461 = pneg %p323
        $region62: #{policy_network_forward.1} parent=11 // pred_check_branch
          %463 = sbr.rel (%p461) target = $region64
        $region63: #{policy_network_forward.1} parent=11 // pred_region
          _
        $region64: #{policy_network_forward.1} parent=11 // pred_fallthru
          _
        // Predicated region
        $region65: #{policy_network_forward.1} parent=11 // pred_check
          %p464 = pneg %p344
        $region66: #{policy_network_forward.1} parent=11 // pred_check_branch
          %466 = sbr.rel (%p464) target = $region68
        $region67: #{policy_network_forward.1} parent=11 // pred_region
          _
        $region68: #{policy_network_forward.1} parent=11 // pred_fallthru
          _
      $region12: #{policy_network_forward.1} parent=5 // pred_fallthru
        _
      %p467 = scmp.lt.s32.totalorder %s24, 2
      // Predicated region
      $region69: #{policy_network_forward.1} parent=5 // pred_check
        %p468 = pneg %p467
      $region70: #{policy_network_forward.1} parent=5 // pred_check_branch
        %470 = sbr.rel (%p468) target = $region72
      $region71: #{policy_network_forward.1} parent=5 // pred_region
        // Predicated region
        $region73: #{policy_network_forward.1} parent=71 // pred_check
          %p471 = pneg %p44
        $region74: #{policy_network_forward.1} parent=71 // pred_check_branch
          %473 = sbr.rel (%p471) target = $region76
        $region75: #{policy_network_forward.1} parent=71 // pred_region
          %s474 = smul.u32 32, %s24
          %p475 = scmp.lt.s32.totalorder %s474, 63
          %s476 = scalar_select %p475, %s474, 63
          %s477 = smul.addr %s476, 8
          %s478 = scalar_lea.vmem %s0, %s477
          %s479 = smul.u32 32, %s24
        $region76: #{policy_network_forward.1} parent=71 // pred_fallthru
          _
      $region72: #{policy_network_forward.1} parent=5 // pred_fallthru
        _
      %p480 = scmp.le.s32.totalorder 1, %s24
      %p481 = scmp.lt.s32.totalorder %s24, 3
      %p482 = pnand %p480, %p481
      %p483 = pneg %p482
      // Predicated region
      $region77: #{policy_network_forward.1} parent=5 // pred_check
        _
      $region78: #{policy_network_forward.1} parent=5 // pred_check_branch
        %485 = sbr.rel (%p482) target = $region80
      $region79: #{policy_network_forward.1} parent=5 // pred_region
        %s486 = ssub.s32 %s24, 1
        // Predicated region
        $region81: #{policy_network_forward.1} parent=79 // pred_check
          %p487 = pneg %p71
        $region82: #{policy_network_forward.1} parent=79 // pred_check_branch
          %489 = sbr.rel (%p487) target = $region84
        $region83: #{policy_network_forward.1} parent=79 // pred_region
          %490 = dma.done [#allocation3], 512
        $region84: #{policy_network_forward.1} parent=79 // pred_fallthru
          _
        // Predicated region
        $region85: #{policy_network_forward.1} parent=79 // pred_check
          %p491 = pneg %p197
        $region86: #{policy_network_forward.1} parent=79 // pred_check_branch
          %493 = sbr.rel (%p491) target = $region88
        $region87: #{policy_network_forward.1} parent=79 // pred_region
          %494 = dma.done [#allocation5], 4096
        $region88: #{policy_network_forward.1} parent=79 // pred_fallthru
          _
        // Predicated region
        $region89: #{policy_network_forward.1} parent=79 // pred_check
          %p495 = pneg %p239
        $region90: #{policy_network_forward.1} parent=79 // pred_check_branch
          %497 = sbr.rel (%p495) target = $region92
        $region91: #{policy_network_forward.1} parent=79 // pred_region
          %498 = dma.done [#allocation5], 4096
        $region92: #{policy_network_forward.1} parent=79 // pred_fallthru
          _
        // Predicated region
        $region93: #{policy_network_forward.1} parent=79 // pred_check
          %p499 = pneg %p281
        $region94: #{policy_network_forward.1} parent=79 // pred_check_branch
          %501 = sbr.rel (%p499) target = $region96
        $region95: #{policy_network_forward.1} parent=79 // pred_region
          %502 = dma.done [#allocation8], 4096
        $region96: #{policy_network_forward.1} parent=79 // pred_fallthru
          _
        %s503 = smul.u32 32, %s29
        %p504 = scmp.lt.s32.totalorder %s503, 63
        %s505 = scalar_select %p504, %s503, 63
        %s506 = smul.addr %s505, 8
        %s507 = scalar_lea.vmem %s0, %s506
        %p508 = pneg %p50
        %p509 = pneg %p47
        %p510 = pneg %p71
        %p511 = pneg %p68
        %p512 = pneg %p92
        %p513 = pneg %p89
        %p514 = pneg %p113
        %p515 = pneg %p110
        %p516 = pneg %p134
        %p517 = pneg %p131
        %p518 = pneg %p155
        %p519 = pneg %p152
        %p520 = pneg %p176
        %p521 = pneg %p173
        %p522 = pneg %p197
        %p523 = pneg %p194
        %p524 = pneg %p218
        %p525 = pneg %p215
        %p526 = pneg %p239
        %p527 = pneg %p236
        %p528 = pneg %p260
        %p529 = pneg %p257
        %p530 = pneg %p281
        %p531 = pneg %p278
        %p532 = pneg %p302
        %p533 = pneg %p299
        %p534 = pneg %p323
        %p535 = pneg %p320
        %p536 = pneg %p344
        %p537 = pneg %p341
        %p538 = pneg %p370
        %p539 = pneg %p367
        %s540 = smul.u32 32, %s29
        %p541 = scmp.lt.s32.totalorder %s540, 63
        %s542 = scalar_select %p541, %s540, 63
        %s543 = smul.addr %s542, 8
        %s544 = scalar_lea.vmem %s15, %s543
        %s545 = smul.u32 32, %s29
        %p546 = scmp.lt.s32.totalorder %s545, 63
        %s547 = scalar_select %p546, %s545, 63
        %s548 = smul.addr %s547, 8
        %s549 = scalar_lea.vmem %s0, %s548
        %s550 = smul.u32 32, %s29
        %s551 = smul.u32 32, %s29
        %p552 = scmp.lt.s32.totalorder %s551, 63
        %s553 = scalar_select %p552, %s551, 63
        %s554 = smul.addr %s553, 8
        %s555 = scalar_lea.vmem %s15, %s554
        %s556 = smul.u32 32, %s29
        %v558 = vld [vmem:[%s549] sm:$0xff]
        %v559 = vld [vmem:[%s549 + $0x8] sm:$0xff]
        %v560 = vld [vmem:[%s549 + $0x10] sm:$0xff]
        %v561 = vld [vmem:[%s549 + $0x18] sm:$0xff]
        %v562 = vld [vmem:[%s549 + $0x20] sm:$0xff]
        %v563 = vld [vmem:[%s549 + $0x28] sm:$0xff]
        %v564 = vld [vmem:[%s549 + $0x30] sm:$0xff]
        %v565 = vld [vmem:[%s549 + $0x38] sm:$0xff]
        %v566 = vld [vmem:[%s549 + $0x40] sm:$0xff]
        %v567 = vld [vmem:[%s549 + $0x48] sm:$0xff]
        %v568 = vld [vmem:[%s549 + $0x50] sm:$0xff]
        %v569 = vld [vmem:[%s549 + $0x58] sm:$0xff]
        %v570 = vld [vmem:[%s549 + $0x60] sm:$0xff]
        %v571 = vld [vmem:[%s549 + $0x68] sm:$0xff]
        %v572 = vld [vmem:[%s549 + $0x70] sm:$0xff]
        %v573 = vld [vmem:[%s549 + $0x78] sm:$0xff]
        %v574 = vld [vmem:[%s549 + $0x80] sm:$0xff]
        %v575 = vld [vmem:[%s549 + $0x88] sm:$0xff]
        %v576 = vld [vmem:[%s549 + $0x90] sm:$0xff]
        %v577 = vld [vmem:[%s549 + $0x98] sm:$0xff]
        %v578 = vld [vmem:[%s549 + $0xa0] sm:$0xff]
        %v579 = vld [vmem:[%s549 + $0xa8] sm:$0xff]
        %v580 = vld [vmem:[%s549 + $0xb0] sm:$0xff]
        %v581 = vld [vmem:[%s549 + $0xb8] sm:$0xff]
        %v582 = vld [vmem:[%s549 + $0xc0] sm:$0xff]
        %v583 = vld [vmem:[%s549 + $0xc8] sm:$0xff]
        %v584 = vld [vmem:[%s549 + $0xd0] sm:$0xff]
        %v585 = vld [vmem:[%s549 + $0xd8] sm:$0xff]
        %v586 = vld [vmem:[%s549 + $0xe0] sm:$0xff]
        %v587 = vld [vmem:[%s549 + $0xe8] sm:$0xff]
        %v588 = vld [vmem:[%s549 + $0xf0] sm:$0xff]
        %v589 = vld [vmem:[%s549 + $0xf8] sm:$0xff]
        %v590 = vpack.c.bf16 %v559, %v558
        %v591 = vpack.c.bf16 %v561, %v560
        %v592 = vpack.c.bf16 %v563, %v562
        %v593 = vpack.c.bf16 %v565, %v564
        %v594 = vpack.c.bf16 %v567, %v566
        %v595 = vpack.c.bf16 %v569, %v568
        %v596 = vpack.c.bf16 %v571, %v570
        %v597 = vpack.c.bf16 %v573, %v572
        %v598 = vpack.c.bf16 %v575, %v574
        %v599 = vpack.c.bf16 %v577, %v576
        %v600 = vpack.c.bf16 %v579, %v578
        %v601 = vpack.c.bf16 %v581, %v580
        %v602 = vpack.c.bf16 %v583, %v582
        %v603 = vpack.c.bf16 %v585, %v584
        %v604 = vpack.c.bf16 %v587, %v586
        %v605 = vpack.c.bf16 %v589, %v588
        %v606 = vld [vmem:[#allocation2] sm:$0xff]
        %v607 = vld [vmem:[#allocation2 + $0x8] sm:$0xff]
        %v608 = vld [vmem:[#allocation2 + $0x10] sm:$0xff]
        %v609 = vld [vmem:[#allocation2 + $0x18] sm:$0xff]
        %v610 = vld [vmem:[%s2] sm:$0x3]
        %v612 = vlaneseq
        %v613 = vshrl.u32 %v612, 7
        %v614 = vsub.s32 0, %v613
        %v615 = vrot.slane %v610, %v614
        %v616 = vlaneseq
        %v617 = vshrl.u32 %v616, 7
        %v618 = vsub.s32 1, %v617
        %v619 = vrot.slane %v610, %v618
        %v626 = vunpack.c.l.b16 %v606
        %v627 = vunpack.c.h.b16 %v606
        %v628 = vunpack.c.l.b16 %v607
        %v629 = vunpack.c.h.b16 %v607
        %v630 = vunpack.c.l.b16 %v608
        %v631 = vunpack.c.h.b16 %v608
        %v632 = vunpack.c.l.b16 %v609
        %v633 = vunpack.c.h.b16 %v609
        %v634 = vpack.c.b16 %v628, %v626
        %v635 = vpack.c.b16 %v629, %v627
        %v636 = vpack.c.b16 %v632, %v630
        %v637 = vpack.c.b16 %v633, %v631
        %vm642 = vcmask 261120
        %v644 = vsel %vm642, %v590, 0
        %v647 = vsel %vm642, %v591, 0
        %v650 = vsel %vm642, %v592, 0
        %v653 = vsel %vm642, %v593, 0
        %v656 = vsel %vm642, %v594, 0
        %v659 = vsel %vm642, %v595, 0
        %v662 = vsel %vm642, %v596, 0
        %v665 = vsel %vm642, %v597, 0
        %v668 = vsel %vm642, %v598, 0
        %v671 = vsel %vm642, %v599, 0
        %v674 = vsel %vm642, %v600, 0
        %v677 = vsel %vm642, %v601, 0
        %v680 = vsel %vm642, %v602, 0
        %v683 = vsel %vm642, %v603, 0
        %v686 = vsel %vm642, %v604, 0
        %v689 = vsel %vm642, %v605, 0
        %691 = vmatprep.subr.bf16.mxu0 %v635
        %692 = vmatpush1.bf16.msra.mxu0 %v634
        %693 = vmatprep.subr.bf16.mxu0 %v637
        %694 = vmatpush1.bf16.msra.mxu0 %v636
        %695 = vmatprep.subr.bf16.mxu0 0
        %696 = vmatpush1.bf16.msra.mxu0 0
        %697 = vmatprep.subr.bf16.mxu0 0
        %698 = vmatpush1.bf16.msra.mxu0 0
        %699 = vmatprep.subr.bf16.mxu0 0
        %700 = vmatpush1.bf16.msra.mxu0 0
        %701 = vmatprep.subr.bf16.mxu0 0
        %702 = vmatpush1.bf16.msra.mxu0 0
        %703 = vmatprep.subr.bf16.mxu0 0
        %704 = vmatpush1.bf16.msra.mxu0 0
        %705 = vmatprep.subr.bf16.mxu0 0
        %706 = vmatpush1.bf16.msra.mxu0 0
        %707 = vmatprep.subr.bf16.mxu0 0
        %708 = vmatpush1.bf16.msra.mxu0 0
        %709 = vmatprep.subr.bf16.mxu0 0
        %710 = vmatpush1.bf16.msra.mxu0 0
        %711 = vmatprep.subr.bf16.mxu0 0
        %712 = vmatpush1.bf16.msra.mxu0 0
        %713 = vmatprep.subr.bf16.mxu0 0
        %714 = vmatpush1.bf16.msra.mxu0 0
        %715 = vmatprep.subr.bf16.mxu0 0
        %716 = vmatpush1.bf16.msra.mxu0 0
        %717 = vmatprep.subr.bf16.mxu0 0
        %718 = vmatpush1.bf16.msra.mxu0 0
        %719 = vmatprep.subr.bf16.mxu0 0
        %720 = vmatpush1.bf16.msra.mxu0 0
        %721 = vmatprep.subr.bf16.mxu0 0
        %722 = vmatpush1.bf16.msra.mxu0 0
        %723 = vmatprep.mubr.bf16.mxu0 0
        %724 = vmatmul.mubr.bf16.gmra.mrb[0].mxu0 %v644
        %v725 = vpop.f32.mrb[0].mxu0
        %v726 = vadd.f32 %v615, %v725
        %v727 = vpop.f32.mrb[0].mxu0
        %v728 = vadd.f32 %v619, %v727
        %v729 = vpop.f32.mrb[0].mxu0
        %v730 = vadd.f32 %v615, %v729
        %v731 = vpop.f32.mrb[0].mxu0
        %v732 = vadd.f32 %v619, %v731
        %733 = vmatprep.mubr.bf16.mxu0 0
        %734 = vmatmul.mubr.bf16.gmra.mrb[0].mxu0 %v647
        %v735 = vpop.f32.mrb[0].mxu0
        %v736 = vadd.f32 %v615, %v735
        %v737 = vpop.f32.mrb[0].mxu0
        %v738 = vadd.f32 %v619, %v737
        %v739 = vpop.f32.mrb[0].mxu0
        %v740 = vadd.f32 %v615, %v739
        %v741 = vpop.f32.mrb[0].mxu0
        %v742 = vadd.f32 %v619, %v741
        %743 = vmatprep.mubr.bf16.mxu0 0
        %744 = vmatmul.mubr.bf16.gmra.mrb[0].mxu0 %v650
        %v745 = vpop.f32.mrb[0].mxu0
        %v746 = vadd.f32 %v615, %v745
        %v747 = vpop.f32.mrb[0].mxu0
        %v748 = vadd.f32 %v619, %v747
        %v749 = vpop.f32.mrb[0].mxu0
        %v750 = vadd.f32 %v615, %v749
        %v751 = vpop.f32.mrb[0].mxu0
        %v752 = vadd.f32 %v619, %v751
        %753 = vmatprep.mubr.bf16.mxu0 0
        %754 = vmatmul.mubr.bf16.gmra.mrb[0].mxu0 %v653
        %v755 = vpop.f32.mrb[0].mxu0
        %v756 = vadd.f32 %v615, %v755
        %v757 = vpop.f32.mrb[0].mxu0
        %v758 = vadd.f32 %v619, %v757
        %v759 = vpop.f32.mrb[0].mxu0
        %v760 = vadd.f32 %v615, %v759
        %v761 = vpop.f32.mrb[0].mxu0
        %v762 = vadd.f32 %v619, %v761
        %763 = vmatprep.mubr.bf16.mxu0 0
        %764 = vmatmul.mubr.bf16.gmra.mrb[0].mxu0 %v656
        %v765 = vpop.f32.mrb[0].mxu0
        %v766 = vadd.f32 %v615, %v765
        %v767 = vpop.f32.mrb[0].mxu0
        %v768 = vadd.f32 %v619, %v767
        %v769 = vpop.f32.mrb[0].mxu0
        %v770 = vadd.f32 %v615, %v769
        %v771 = vpop.f32.mrb[0].mxu0
        %v772 = vadd.f32 %v619, %v771
        %773 = vmatprep.mubr.bf16.mxu0 0
        %774 = vmatmul.mubr.bf16.gmra.mrb[0].mxu0 %v659
        %v775 = vpop.f32.mrb[0].mxu0
        %v776 = vadd.f32 %v615, %v775
        %v777 = vpop.f32.mrb[0].mxu0
        %v778 = vadd.f32 %v619, %v777
        %v779 = vpop.f32.mrb[0].mxu0
        %v780 = vadd.f32 %v615, %v779
        %v781 = vpop.f32.mrb[0].mxu0
        %v782 = vadd.f32 %v619, %v781
        %783 = vmatprep.mubr.bf16.mxu0 0
        %784 = vmatmul.mubr.bf16.gmra.mrb[0].mxu0 %v662
        %v785 = vpop.f32.mrb[0].mxu0
        %v786 = vadd.f32 %v615, %v785
        %v787 = vpop.f32.mrb[0].mxu0
        %v788 = vadd.f32 %v619, %v787
        %v789 = vpop.f32.mrb[0].mxu0
        %v790 = vadd.f32 %v615, %v789
        %v791 = vpop.f32.mrb[0].mxu0
        %v792 = vadd.f32 %v619, %v791
        %793 = vmatprep.mubr.bf16.mxu0 0
        %794 = vmatmul.mubr.bf16.gmra.mrb[0].mxu0 %v665
        %v795 = vpop.f32.mrb[0].mxu0
        %v796 = vadd.f32 %v615, %v795
        %v797 = vpop.f32.mrb[0].mxu0
        %v798 = vadd.f32 %v619, %v797
        %v799 = vpop.f32.mrb[0].mxu0
        %v800 = vadd.f32 %v615, %v799
        %v801 = vpop.f32.mrb[0].mxu0
        %v802 = vadd.f32 %v619, %v801
        %803 = vmatprep.mubr.bf16.mxu0 0
        %804 = vmatmul.mubr.bf16.gmra.mrb[0].mxu0 %v668
        %v805 = vpop.f32.mrb[0].mxu0
        %v806 = vadd.f32 %v615, %v805
        %v807 = vpop.f32.mrb[0].mxu0
        %v808 = vadd.f32 %v619, %v807
        %v809 = vpop.f32.mrb[0].mxu0
        %v810 = vadd.f32 %v615, %v809
        %v811 = vpop.f32.mrb[0].mxu0
        %v812 = vadd.f32 %v619, %v811
        %813 = vmatprep.mubr.bf16.mxu0 0
        %814 = vmatmul.mubr.bf16.gmra.mrb[0].mxu0 %v671
        %v815 = vpop.f32.mrb[0].mxu0
        %v816 = vadd.f32 %v615, %v815
        %v817 = vpop.f32.mrb[0].mxu0
        %v818 = vadd.f32 %v619, %v817
        %v819 = vpop.f32.mrb[0].mxu0
        %v820 = vadd.f32 %v615, %v819
        %v821 = vpop.f32.mrb[0].mxu0
        %v822 = vadd.f32 %v619, %v821
        %823 = vmatprep.mubr.bf16.mxu0 0
        %824 = vmatmul.mubr.bf16.gmra.mrb[0].mxu0 %v674
        %v825 = vpop.f32.mrb[0].mxu0
        %v826 = vadd.f32 %v615, %v825
        %v827 = vpop.f32.mrb[0].mxu0
        %v828 = vadd.f32 %v619, %v827
        %v829 = vpop.f32.mrb[0].mxu0
        %v830 = vadd.f32 %v615, %v829
        %v831 = vpop.f32.mrb[0].mxu0
        %v832 = vadd.f32 %v619, %v831
        %833 = vmatprep.mubr.bf16.mxu0 0
        %834 = vmatmul.mubr.bf16.gmra.mrb[0].mxu0 %v677
        %v835 = vpop.f32.mrb[0].mxu0
        %v836 = vadd.f32 %v615, %v835
        %v837 = vpop.f32.mrb[0].mxu0
        %v838 = vadd.f32 %v619, %v837
        %v839 = vpop.f32.mrb[0].mxu0
        %v840 = vadd.f32 %v615, %v839
        %v841 = vpop.f32.mrb[0].mxu0
        %v842 = vadd.f32 %v619, %v841
        %843 = vmatprep.mubr.bf16.mxu0 0
        %844 = vmatmul.mubr.bf16.gmra.mrb[0].mxu0 %v680
        %v845 = vpop.f32.mrb[0].mxu0
        %v846 = vadd.f32 %v615, %v845
        %v847 = vpop.f32.mrb[0].mxu0
        %v848 = vadd.f32 %v619, %v847
        %v849 = vpop.f32.mrb[0].mxu0
        %v850 = vadd.f32 %v615, %v849
        %v851 = vpop.f32.mrb[0].mxu0
        %v852 = vadd.f32 %v619, %v851
        %853 = vmatprep.mubr.bf16.mxu0 0
        %854 = vmatmul.mubr.bf16.gmra.mrb[0].mxu0 %v683
        %v855 = vpop.f32.mrb[0].mxu0
        %v856 = vadd.f32 %v615, %v855
        %v857 = vpop.f32.mrb[0].mxu0
        %v858 = vadd.f32 %v619, %v857
        %v859 = vpop.f32.mrb[0].mxu0
        %v860 = vadd.f32 %v615, %v859
        %v861 = vpop.f32.mrb[0].mxu0
        %v862 = vadd.f32 %v619, %v861
        %863 = vmatprep.mubr.bf16.mxu0 0
        %864 = vmatmul.mubr.bf16.gmra.mrb[0].mxu0 %v686
        %v865 = vpop.f32.mrb[0].mxu0
        %v866 = vadd.f32 %v615, %v865
        %v867 = vpop.f32.mrb[0].mxu0
        %v868 = vadd.f32 %v619, %v867
        %v869 = vpop.f32.mrb[0].mxu0
        %v870 = vadd.f32 %v615, %v869
        %v871 = vpop.f32.mrb[0].mxu0
        %v872 = vadd.f32 %v619, %v871
        %873 = vmatprep.mubr.bf16.mxu0 0
        %874 = vmatmul.mubr.bf16.gmra.mrb[0].mxu0 %v689
        %v875 = vpop.f32.mrb[0].mxu0
        %v876 = vadd.f32 %v615, %v875
        %v877 = vpop.f32.mrb[0].mxu0
        %v878 = vadd.f32 %v619, %v877
        %v879 = vpop.f32.mrb[0].mxu0
        %v880 = vadd.f32 %v615, %v879
        %v881 = vpop.f32.mrb[0].mxu0
        %v882 = vadd.f32 %v619, %v881
        %883 = vdwg.mxu0
        %v884 = vmax.f32 %v726, 0.0
        %v885 = vmax.f32 %v728, 0.0
        %v886 = vmax.f32 %v730, 0.0
        %v887 = vmax.f32 %v732, 0.0
        %v888 = vmax.f32 %v736, 0.0
        %v889 = vmax.f32 %v738, 0.0
        %v890 = vmax.f32 %v740, 0.0
        %v891 = vmax.f32 %v742, 0.0
        %v892 = vmax.f32 %v746, 0.0
        %v893 = vmax.f32 %v748, 0.0
        %v894 = vmax.f32 %v750, 0.0
        %v895 = vmax.f32 %v752, 0.0
        %v896 = vmax.f32 %v756, 0.0
        %v897 = vmax.f32 %v758, 0.0
        %v898 = vmax.f32 %v760, 0.0
        %v899 = vmax.f32 %v762, 0.0
        %v900 = vmax.f32 %v766, 0.0
        %v901 = vmax.f32 %v768, 0.0
        %v902 = vmax.f32 %v770, 0.0
        %v903 = vmax.f32 %v772, 0.0
        %v904 = vmax.f32 %v776, 0.0
        %v905 = vmax.f32 %v778, 0.0
        %v906 = vmax.f32 %v780, 0.0
        %v907 = vmax.f32 %v782, 0.0
        %v908 = vmax.f32 %v786, 0.0
        %v909 = vmax.f32 %v788, 0.0
        %v910 = vmax.f32 %v790, 0.0
        %v911 = vmax.f32 %v792, 0.0
        %v912 = vmax.f32 %v796, 0.0
        %v913 = vmax.f32 %v798, 0.0
        %v914 = vmax.f32 %v800, 0.0
        %v915 = vmax.f32 %v802, 0.0
        %v916 = vmax.f32 %v806, 0.0
        %v917 = vmax.f32 %v808, 0.0
        %v918 = vmax.f32 %v810, 0.0
        %v919 = vmax.f32 %v812, 0.0
        %v920 = vmax.f32 %v816, 0.0
        %v921 = vmax.f32 %v818, 0.0
        %v922 = vmax.f32 %v820, 0.0
        %v923 = vmax.f32 %v822, 0.0
        %v924 = vmax.f32 %v826, 0.0
        %v925 = vmax.f32 %v828, 0.0
        %v926 = vmax.f32 %v830, 0.0
        %v927 = vmax.f32 %v832, 0.0
        %v928 = vmax.f32 %v836, 0.0
        %v929 = vmax.f32 %v838, 0.0
        %v930 = vmax.f32 %v840, 0.0
        %v931 = vmax.f32 %v842, 0.0
        %v932 = vmax.f32 %v846, 0.0
        %v933 = vmax.f32 %v848, 0.0
        %v934 = vmax.f32 %v850, 0.0
        %v935 = vmax.f32 %v852, 0.0
        %v936 = vmax.f32 %v856, 0.0
        %v937 = vmax.f32 %v858, 0.0
        %v938 = vmax.f32 %v860, 0.0
        %v939 = vmax.f32 %v862, 0.0
        %v940 = vmax.f32 %v866, 0.0
        %v941 = vmax.f32 %v868, 0.0
        %v942 = vmax.f32 %v870, 0.0
        %v943 = vmax.f32 %v872, 0.0
        %v944 = vmax.f32 %v876, 0.0
        %v945 = vmax.f32 %v878, 0.0
        %v946 = vmax.f32 %v880, 0.0
        %v947 = vmax.f32 %v882, 0.0
        %v948 = vpack.c.bf16 %v886, %v884
        %v949 = vpack.c.bf16 %v887, %v885
        %v950 = vpack.c.bf16 %v890, %v888
        %v951 = vpack.c.bf16 %v891, %v889
        %v952 = vpack.c.bf16 %v894, %v892
        %v953 = vpack.c.bf16 %v895, %v893
        %v954 = vpack.c.bf16 %v898, %v896
        %v955 = vpack.c.bf16 %v899, %v897
        %v956 = vpack.c.bf16 %v902, %v900
        %v957 = vpack.c.bf16 %v903, %v901
        %v958 = vpack.c.bf16 %v906, %v904
        %v959 = vpack.c.bf16 %v907, %v905
        %v960 = vpack.c.bf16 %v910, %v908
        %v961 = vpack.c.bf16 %v911, %v909
        %v962 = vpack.c.bf16 %v914, %v912
        %v963 = vpack.c.bf16 %v915, %v913
        %v964 = vpack.c.bf16 %v918, %v916
        %v965 = vpack.c.bf16 %v919, %v917
        %v966 = vpack.c.bf16 %v922, %v920
        %v967 = vpack.c.bf16 %v923, %v921
        %v968 = vpack.c.bf16 %v926, %v924
        %v969 = vpack.c.bf16 %v927, %v925
        %v970 = vpack.c.bf16 %v930, %v928
        %v971 = vpack.c.bf16 %v931, %v929
        %v972 = vpack.c.bf16 %v934, %v932
        %v973 = vpack.c.bf16 %v935, %v933
        %v974 = vpack.c.bf16 %v938, %v936
        %v975 = vpack.c.bf16 %v939, %v937
        %v976 = vpack.c.bf16 %v942, %v940
        %v977 = vpack.c.bf16 %v943, %v941
        %v978 = vpack.c.bf16 %v946, %v944
        %v979 = vpack.c.bf16 %v947, %v945
        %v980 = vld [vmem:[%s3] sm:$0xff]
        %v981 = vld [vmem:[%s3 + $0x8] sm:$0xff]
        %v982 = vld [vmem:[%s3 + $0x10] sm:$0xff]
        %v983 = vld [vmem:[%s3 + $0x18] sm:$0xff]
        %v984 = vld [vmem:[%s3 + $0x20] sm:$0xff]
        %v985 = vld [vmem:[%s3 + $0x28] sm:$0xff]
        %v986 = vld [vmem:[%s3 + $0x30] sm:$0xff]
        %v987 = vld [vmem:[%s3 + $0x38] sm:$0xff]
        %v988 = vld [vmem:[%s3 + $0x40] sm:$0xff]
        %v989 = vld [vmem:[%s3 + $0x48] sm:$0xff]
        %v990 = vld [vmem:[%s3 + $0x50] sm:$0xff]
        %v991 = vld [vmem:[%s3 + $0x58] sm:$0xff]
        %v992 = vld [vmem:[%s3 + $0x60] sm:$0xff]
        %v993 = vld [vmem:[%s3 + $0x68] sm:$0xff]
        %v994 = vld [vmem:[%s3 + $0x70] sm:$0xff]
        %v995 = vld [vmem:[%s3 + $0x78] sm:$0xff]
        %v996 = vld [vmem:[%s3 + $0x80] sm:$0xff]
        %v997 = vld [vmem:[%s3 + $0x88] sm:$0xff]
        %v998 = vld [vmem:[%s3 + $0x90] sm:$0xff]
        %v999 = vld [vmem:[%s3 + $0x98] sm:$0xff]
        %v1000 = vld [vmem:[%s3 + $0xa0] sm:$0xff]
        %v1001 = vld [vmem:[%s3 + $0xa8] sm:$0xff]
        %v1002 = vld [vmem:[%s3 + $0xb0] sm:$0xff]
        %v1003 = vld [vmem:[%s3 + $0xb8] sm:$0xff]
        %v1004 = vld [vmem:[%s3 + $0xc0] sm:$0xff]
        %v1005 = vld [vmem:[%s3 + $0xc8] sm:$0xff]
        %v1006 = vld [vmem:[%s3 + $0xd0] sm:$0xff]
        %v1007 = vld [vmem:[%s3 + $0xd8] sm:$0xff]
        %v1008 = vld [vmem:[%s3 + $0xe0] sm:$0xff]
        %v1009 = vld [vmem:[%s3 + $0xe8] sm:$0xff]
        %v1010 = vld [vmem:[%s3 + $0xf0] sm:$0xff]
        %v1011 = vld [vmem:[%s3 + $0xf8] sm:$0xff]
        %v1012 = vld [vmem:[%s4] sm:$0x3]
        %v1014 = vlaneseq
        %v1015 = vshrl.u32 %v1014, 7
        %v1016 = vsub.s32 0, %v1015
        %v1017 = vrot.slane %v1012, %v1016
        %v1018 = vlaneseq
        %v1019 = vshrl.u32 %v1018, 7
        %v1020 = vsub.s32 1, %v1019
        %v1021 = vrot.slane %v1012, %v1020
        %v1056 = vunpack.c.l.b16 %v980
        %v1057 = vunpack.c.h.b16 %v980
        %v1058 = vunpack.c.l.b16 %v981
        %v1059 = vunpack.c.h.b16 %v981
        %v1060 = vunpack.c.l.b16 %v982
        %v1061 = vunpack.c.h.b16 %v982
        %v1062 = vunpack.c.l.b16 %v983
        %v1063 = vunpack.c.h.b16 %v983
        %v1064 = vunpack.c.l.b16 %v984
        %v1065 = vunpack.c.h.b16 %v984
        %v1066 = vunpack.c.l.b16 %v985
        %v1067 = vunpack.c.h.b16 %v985
        %v1068 = vunpack.c.l.b16 %v986
        %v1069 = vunpack.c.h.b16 %v986
        %v1070 = vunpack.c.l.b16 %v987
        %v1071 = vunpack.c.h.b16 %v987
        %v1072 = vunpack.c.l.b16 %v988
        %v1073 = vunpack.c.h.b16 %v988
        %v1074 = vunpack.c.l.b16 %v989
        %v1075 = vunpack.c.h.b16 %v989
        %v1076 = vunpack.c.l.b16 %v990
        %v1077 = vunpack.c.h.b16 %v990
        %v1078 = vunpack.c.l.b16 %v991
        %v1079 = vunpack.c.h.b16 %v991
        %v1080 = vunpack.c.l.b16 %v992
        %v1081 = vunpack.c.h.b16 %v992
        %v1082 = vunpack.c.l.b16 %v993
        %v1083 = vunpack.c.h.b16 %v993
        %v1084 = vunpack.c.l.b16 %v994
        %v1085 = vunpack.c.h.b16 %v994
        %v1086 = vunpack.c.l.b16 %v995
        %v1087 = vunpack.c.h.b16 %v995
        %v1088 = vunpack.c.l.b16 %v996
        %v1089 = vunpack.c.h.b16 %v996
        %v1090 = vunpack.c.l.b16 %v997
        %v1091 = vunpack.c.h.b16 %v997
        %v1092 = vunpack.c.l.b16 %v998
        %v1093 = vunpack.c.h.b16 %v998
        %v1094 = vunpack.c.l.b16 %v999
        %v1095 = vunpack.c.h.b16 %v999
        %v1096 = vunpack.c.l.b16 %v1000
        %v1097 = vunpack.c.h.b16 %v1000
        %v1098 = vunpack.c.l.b16 %v1001
        %v1099 = vunpack.c.h.b16 %v1001
        %v1100 = vunpack.c.l.b16 %v1002
        %v1101 = vunpack.c.h.b16 %v1002
        %v1102 = vunpack.c.l.b16 %v1003
        %v1103 = vunpack.c.h.b16 %v1003
        %v1104 = vunpack.c.l.b16 %v1004
        %v1105 = vunpack.c.h.b16 %v1004
        %v1106 = vunpack.c.l.b16 %v1005
        %v1107 = vunpack.c.h.b16 %v1005
        %v1108 = vunpack.c.l.b16 %v1006
        %v1109 = vunpack.c.h.b16 %v1006
        %v1110 = vunpack.c.l.b16 %v1007
        %v1111 = vunpack.c.h.b16 %v1007
        %v1112 = vunpack.c.l.b16 %v1008
        %v1113 = vunpack.c.h.b16 %v1008
        %v1114 = vunpack.c.l.b16 %v1009
        %v1115 = vunpack.c.h.b16 %v1009
        %v1116 = vunpack.c.l.b16 %v1010
        %v1117 = vunpack.c.h.b16 %v1010
        %v1118 = vunpack.c.l.b16 %v1011
        %v1119 = vunpack.c.h.b16 %v1011
        %v1120 = vpack.c.b16 %v1058, %v1056
        %v1121 = vpack.c.b16 %v1059, %v1057
        %v1122 = vpack.c.b16 %v1062, %v1060
        %v1123 = vpack.c.b16 %v1063, %v1061
        %v1124 = vpack.c.b16 %v1066, %v1064
        %v1125 = vpack.c.b16 %v1067, %v1065
        %v1126 = vpack.c.b16 %v1070, %v1068
        %v1127 = vpack.c.b16 %v1071, %v1069
        %v1128 = vpack.c.b16 %v1074, %v1072
        %v1129 = vpack.c.b16 %v1075, %v1073
        %v1130 = vpack.c.b16 %v1078, %v1076
        %v1131 = vpack.c.b16 %v1079, %v1077
        %v1132 = vpack.c.b16 %v1082, %v1080
        %v1133 = vpack.c.b16 %v1083, %v1081
        %v1134 = vpack.c.b16 %v1086, %v1084
        %v1135 = vpack.c.b16 %v1087, %v1085
        %v1136 = vpack.c.b16 %v1090, %v1088
        %v1137 = vpack.c.b16 %v1091, %v1089
        %v1138 = vpack.c.b16 %v1094, %v1092
        %v1139 = vpack.c.b16 %v1095, %v1093
        %v1140 = vpack.c.b16 %v1098, %v1096
        %v1141 = vpack.c.b16 %v1099, %v1097
        %v1142 = vpack.c.b16 %v1102, %v1100
        %v1143 = vpack.c.b16 %v1103, %v1101
        %v1144 = vpack.c.b16 %v1106, %v1104
        %v1145 = vpack.c.b16 %v1107, %v1105
        %v1146 = vpack.c.b16 %v1110, %v1108
        %v1147 = vpack.c.b16 %v1111, %v1109
        %v1148 = vpack.c.b16 %v1114, %v1112
        %v1149 = vpack.c.b16 %v1115, %v1113
        %v1150 = vpack.c.b16 %v1118, %v1116
        %v1151 = vpack.c.b16 %v1119, %v1117
        %1184 = vmatprep.subr.bf16.mxu0 %v1121
        %1185 = vmatpush1.bf16.msra.mxu0 %v1120
        %1186 = vmatprep.subr.bf16.mxu0 %v1123
        %1187 = vmatpush1.bf16.msra.mxu0 %v1122
        %1188 = vmatprep.subr.bf16.mxu0 %v1125
        %1189 = vmatpush1.bf16.msra.mxu0 %v1124
        %1190 = vmatprep.subr.bf16.mxu0 %v1127
        %1191 = vmatpush1.bf16.msra.mxu0 %v1126
        %1192 = vmatprep.subr.bf16.mxu0 %v1129
        %1193 = vmatpush1.bf16.msra.mxu0 %v1128
        %1194 = vmatprep.subr.bf16.mxu0 %v1131
        %1195 = vmatpush1.bf16.msra.mxu0 %v1130
        %1196 = vmatprep.subr.bf16.mxu0 %v1133
        %1197 = vmatpush1.bf16.msra.mxu0 %v1132
        %1198 = vmatprep.subr.bf16.mxu0 %v1135
        %1199 = vmatpush1.bf16.msra.mxu0 %v1134
        %1200 = vmatprep.subr.bf16.mxu0 %v1137
        %1201 = vmatpush1.bf16.msra.mxu0 %v1136
        %1202 = vmatprep.subr.bf16.mxu0 %v1139
        %1203 = vmatpush1.bf16.msra.mxu0 %v1138
        %1204 = vmatprep.subr.bf16.mxu0 %v1141
        %1205 = vmatpush1.bf16.msra.mxu0 %v1140
        %1206 = vmatprep.subr.bf16.mxu0 %v1143
        %1207 = vmatpush1.bf16.msra.mxu0 %v1142
        %1208 = vmatprep.subr.bf16.mxu0 %v1145
        %1209 = vmatpush1.bf16.msra.mxu0 %v1144
        %1210 = vmatprep.subr.bf16.mxu0 %v1147
        %1211 = vmatpush1.bf16.msra.mxu0 %v1146
        %1212 = vmatprep.subr.bf16.mxu0 %v1149
        %1213 = vmatpush1.bf16.msra.mxu0 %v1148
        %1214 = vmatprep.subr.bf16.mxu0 %v1151
        %1215 = vmatpush1.bf16.msra.mxu0 %v1150
        %1216 = vmatprep.mubr.bf16.mxu0 %v949
        %1217 = vmatmul.mubr.bf16.gmra.mrb[0].mxu0 %v948
        %v1218 = vpop.f32.mrb[0].mxu0
        %v1219 = vadd.f32 %v1017, %v1218
        %v1220 = vpop.f32.mrb[0].mxu0
        %v1221 = vadd.f32 %v1021, %v1220
        %v1222 = vpop.f32.mrb[0].mxu0
        %v1223 = vadd.f32 %v1017, %v1222
        %v1224 = vpop.f32.mrb[0].mxu0
        %v1225 = vadd.f32 %v1021, %v1224
        %1226 = vmatprep.mubr.bf16.mxu0 %v951
        %1227 = vmatmul.mubr.bf16.gmra.mrb[0].mxu0 %v950
        %v1228 = vpop.f32.mrb[0].mxu0
        %v1229 = vadd.f32 %v1017, %v1228
        %v1230 = vpop.f32.mrb[0].mxu0
        %v1231 = vadd.f32 %v1021, %v1230
        %v1232 = vpop.f32.mrb[0].mxu0
        %v1233 = vadd.f32 %v1017, %v1232
        %v1234 = vpop.f32.mrb[0].mxu0
        %v1235 = vadd.f32 %v1021, %v1234
        %1236 = vmatprep.mubr.bf16.mxu0 %v953
        %1237 = vmatmul.mubr.bf16.gmra.mrb[0].mxu0 %v952
        %v1238 = vpop.f32.mrb[0].mxu0
        %v1239 = vadd.f32 %v1017, %v1238
        %v1240 = vpop.f32.mrb[0].mxu0
        %v1241 = vadd.f32 %v1021, %v1240
        %v1242 = vpop.f32.mrb[0].mxu0
        %v1243 = vadd.f32 %v1017, %v1242
        %v1244 = vpop.f32.mrb[0].mxu0
        %v1245 = vadd.f32 %v1021, %v1244
        %1246 = vmatprep.mubr.bf16.mxu0 %v955
        %1247 = vmatmul.mubr.bf16.gmra.mrb[0].mxu0 %v954
        %v1248 = vpop.f32.mrb[0].mxu0
        %v1249 = vadd.f32 %v1017, %v1248
        %v1250 = vpop.f32.mrb[0].mxu0
        %v1251 = vadd.f32 %v1021, %v1250
        %v1252 = vpop.f32.mrb[0].mxu0
        %v1253 = vadd.f32 %v1017, %v1252
        %v1254 = vpop.f32.mrb[0].mxu0
        %v1255 = vadd.f32 %v1021, %v1254
        %1256 = vmatprep.mubr.bf16.mxu0 %v957
        %1257 = vmatmul.mubr.bf16.gmra.mrb[0].mxu0 %v956
        %v1258 = vpop.f32.mrb[0].mxu0
        %v1259 = vadd.f32 %v1017, %v1258
        %v1260 = vpop.f32.mrb[0].mxu0
        %v1261 = vadd.f32 %v1021, %v1260
        %v1262 = vpop.f32.mrb[0].mxu0
        %v1263 = vadd.f32 %v1017, %v1262
        %v1264 = vpop.f32.mrb[0].mxu0
        %v1265 = vadd.f32 %v1021, %v1264
        %1266 = vmatprep.mubr.bf16.mxu0 %v959
        %1267 = vmatmul.mubr.bf16.gmra.mrb[0].mxu0 %v958
        %v1268 = vpop.f32.mrb[0].mxu0
        %v1269 = vadd.f32 %v1017, %v1268
        %v1270 = vpop.f32.mrb[0].mxu0
        %v1271 = vadd.f32 %v1021, %v1270
        %v1272 = vpop.f32.mrb[0].mxu0
        %v1273 = vadd.f32 %v1017, %v1272
        %v1274 = vpop.f32.mrb[0].mxu0
        %v1275 = vadd.f32 %v1021, %v1274
        %1276 = vmatprep.mubr.bf16.mxu0 %v961
        %1277 = vmatmul.mubr.bf16.gmra.mrb[0].mxu0 %v960
        %v1278 = vpop.f32.mrb[0].mxu0
        %v1279 = vadd.f32 %v1017, %v1278
        %v1280 = vpop.f32.mrb[0].mxu0
        %v1281 = vadd.f32 %v1021, %v1280
        %v1282 = vpop.f32.mrb[0].mxu0
        %v1283 = vadd.f32 %v1017, %v1282
        %v1284 = vpop.f32.mrb[0].mxu0
        %v1285 = vadd.f32 %v1021, %v1284
        %1286 = vmatprep.mubr.bf16.mxu0 %v963
        %1287 = vmatmul.mubr.bf16.gmra.mrb[0].mxu0 %v962
        %v1288 = vpop.f32.mrb[0].mxu0
        %v1289 = vadd.f32 %v1017, %v1288
        %v1290 = vpop.f32.mrb[0].mxu0
        %v1291 = vadd.f32 %v1021, %v1290
        %v1292 = vpop.f32.mrb[0].mxu0
        %v1293 = vadd.f32 %v1017, %v1292
        %v1294 = vpop.f32.mrb[0].mxu0
        %v1295 = vadd.f32 %v1021, %v1294
        %1296 = vmatprep.mubr.bf16.mxu0 %v965
        %1297 = vmatmul.mubr.bf16.gmra.mrb[0].mxu0 %v964
        %v1298 = vpop.f32.mrb[0].mxu0
        %v1299 = vadd.f32 %v1017, %v1298
        %v1300 = vpop.f32.mrb[0].mxu0
        %v1301 = vadd.f32 %v1021, %v1300
        %v1302 = vpop.f32.mrb[0].mxu0
        %v1303 = vadd.f32 %v1017, %v1302
        %v1304 = vpop.f32.mrb[0].mxu0
        %v1305 = vadd.f32 %v1021, %v1304
        %1306 = vmatprep.mubr.bf16.mxu0 %v967
        %1307 = vmatmul.mubr.bf16.gmra.mrb[0].mxu0 %v966
        %v1308 = vpop.f32.mrb[0].mxu0
        %v1309 = vadd.f32 %v1017, %v1308
        %v1310 = vpop.f32.mrb[0].mxu0
        %v1311 = vadd.f32 %v1021, %v1310
        %v1312 = vpop.f32.mrb[0].mxu0
        %v1313 = vadd.f32 %v1017, %v1312
        %v1314 = vpop.f32.mrb[0].mxu0
        %v1315 = vadd.f32 %v1021, %v1314
        %1316 = vmatprep.mubr.bf16.mxu0 %v969
        %1317 = vmatmul.mubr.bf16.gmra.mrb[0].mxu0 %v968
        %v1318 = vpop.f32.mrb[0].mxu0
        %v1319 = vadd.f32 %v1017, %v1318
        %v1320 = vpop.f32.mrb[0].mxu0
        %v1321 = vadd.f32 %v1021, %v1320
        %v1322 = vpop.f32.mrb[0].mxu0
        %v1323 = vadd.f32 %v1017, %v1322
        %v1324 = vpop.f32.mrb[0].mxu0
        %v1325 = vadd.f32 %v1021, %v1324
        %1326 = vmatprep.mubr.bf16.mxu0 %v971
        %1327 = vmatmul.mubr.bf16.gmra.mrb[0].mxu0 %v970
        %v1328 = vpop.f32.mrb[0].mxu0
        %v1329 = vadd.f32 %v1017, %v1328
        %v1330 = vpop.f32.mrb[0].mxu0
        %v1331 = vadd.f32 %v1021, %v1330
        %v1332 = vpop.f32.mrb[0].mxu0
        %v1333 = vadd.f32 %v1017, %v1332
        %v1334 = vpop.f32.mrb[0].mxu0
        %v1335 = vadd.f32 %v1021, %v1334
        %1336 = vmatprep.mubr.bf16.mxu0 %v973
        %1337 = vmatmul.mubr.bf16.gmra.mrb[0].mxu0 %v972
        %v1338 = vpop.f32.mrb[0].mxu0
        %v1339 = vadd.f32 %v1017, %v1338
        %v1340 = vpop.f32.mrb[0].mxu0
        %v1341 = vadd.f32 %v1021, %v1340
        %v1342 = vpop.f32.mrb[0].mxu0
        %v1343 = vadd.f32 %v1017, %v1342
        %v1344 = vpop.f32.mrb[0].mxu0
        %v1345 = vadd.f32 %v1021, %v1344
        %1346 = vmatprep.mubr.bf16.mxu0 %v975
        %1347 = vmatmul.mubr.bf16.gmra.mrb[0].mxu0 %v974
        %v1348 = vpop.f32.mrb[0].mxu0
        %v1349 = vadd.f32 %v1017, %v1348
        %v1350 = vpop.f32.mrb[0].mxu0
        %v1351 = vadd.f32 %v1021, %v1350
        %v1352 = vpop.f32.mrb[0].mxu0
        %v1353 = vadd.f32 %v1017, %v1352
        %v1354 = vpop.f32.mrb[0].mxu0
        %v1355 = vadd.f32 %v1021, %v1354
        %1356 = vmatprep.mubr.bf16.mxu0 %v977
        %1357 = vmatmul.mubr.bf16.gmra.mrb[0].mxu0 %v976
        %v1358 = vpop.f32.mrb[0].mxu0
        %v1359 = vadd.f32 %v1017, %v1358
        %v1360 = vpop.f32.mrb[0].mxu0
        %v1361 = vadd.f32 %v1021, %v1360
        %v1362 = vpop.f32.mrb[0].mxu0
        %v1363 = vadd.f32 %v1017, %v1362
        %v1364 = vpop.f32.mrb[0].mxu0
        %v1365 = vadd.f32 %v1021, %v1364
        %1366 = vmatprep.mubr.bf16.mxu0 %v979
        %1367 = vmatmul.mubr.bf16.gmra.mrb[0].mxu0 %v978
        %v1368 = vpop.f32.mrb[0].mxu0
        %v1369 = vadd.f32 %v1017, %v1368
        %v1370 = vpop.f32.mrb[0].mxu0
        %v1371 = vadd.f32 %v1021, %v1370
        %v1372 = vpop.f32.mrb[0].mxu0
        %v1373 = vadd.f32 %v1017, %v1372
        %v1374 = vpop.f32.mrb[0].mxu0
        %v1375 = vadd.f32 %v1021, %v1374
        %1376 = vdwg.mxu0
        %v1377 = vmax.f32 %v1219, 0.0
        %v1378 = vmax.f32 %v1221, 0.0
        %v1379 = vmax.f32 %v1223, 0.0
        %v1380 = vmax.f32 %v1225, 0.0
        %v1381 = vmax.f32 %v1229, 0.0
        %v1382 = vmax.f32 %v1231, 0.0
        %v1383 = vmax.f32 %v1233, 0.0
        %v1384 = vmax.f32 %v1235, 0.0
        %v1385 = vmax.f32 %v1239, 0.0
        %v1386 = vmax.f32 %v1241, 0.0
        %v1387 = vmax.f32 %v1243, 0.0
        %v1388 = vmax.f32 %v1245, 0.0
        %v1389 = vmax.f32 %v1249, 0.0
        %v1390 = vmax.f32 %v1251, 0.0
        %v1391 = vmax.f32 %v1253, 0.0
        %v1392 = vmax.f32 %v1255, 0.0
        %v1393 = vmax.f32 %v1259, 0.0
        %v1394 = vmax.f32 %v1261, 0.0
        %v1395 = vmax.f32 %v1263, 0.0
        %v1396 = vmax.f32 %v1265, 0.0
        %v1397 = vmax.f32 %v1269, 0.0
        %v1398 = vmax.f32 %v1271, 0.0
        %v1399 = vmax.f32 %v1273, 0.0
        %v1400 = vmax.f32 %v1275, 0.0
        %v1401 = vmax.f32 %v1279, 0.0
        %v1402 = vmax.f32 %v1281, 0.0
        %v1403 = vmax.f32 %v1283, 0.0
        %v1404 = vmax.f32 %v1285, 0.0
        %v1405 = vmax.f32 %v1289, 0.0
        %v1406 = vmax.f32 %v1291, 0.0
        %v1407 = vmax.f32 %v1293, 0.0
        %v1408 = vmax.f32 %v1295, 0.0
        %v1409 = vmax.f32 %v1299, 0.0
        %v1410 = vmax.f32 %v1301, 0.0
        %v1411 = vmax.f32 %v1303, 0.0
        %v1412 = vmax.f32 %v1305, 0.0
        %v1413 = vmax.f32 %v1309, 0.0
        %v1414 = vmax.f32 %v1311, 0.0
        %v1415 = vmax.f32 %v1313, 0.0
        %v1416 = vmax.f32 %v1315, 0.0
        %v1417 = vmax.f32 %v1319, 0.0
        %v1418 = vmax.f32 %v1321, 0.0
        %v1419 = vmax.f32 %v1323, 0.0
        %v1420 = vmax.f32 %v1325, 0.0
        %v1421 = vmax.f32 %v1329, 0.0
        %v1422 = vmax.f32 %v1331, 0.0
        %v1423 = vmax.f32 %v1333, 0.0
        %v1424 = vmax.f32 %v1335, 0.0
        %v1425 = vmax.f32 %v1339, 0.0
        %v1426 = vmax.f32 %v1341, 0.0
        %v1427 = vmax.f32 %v1343, 0.0
        %v1428 = vmax.f32 %v1345, 0.0
        %v1429 = vmax.f32 %v1349, 0.0
        %v1430 = vmax.f32 %v1351, 0.0
        %v1431 = vmax.f32 %v1353, 0.0
        %v1432 = vmax.f32 %v1355, 0.0
        %v1433 = vmax.f32 %v1359, 0.0
        %v1434 = vmax.f32 %v1361, 0.0
        %v1435 = vmax.f32 %v1363, 0.0
        %v1436 = vmax.f32 %v1365, 0.0
        %v1437 = vmax.f32 %v1369, 0.0
        %v1438 = vmax.f32 %v1371, 0.0
        %v1439 = vmax.f32 %v1373, 0.0
        %v1440 = vmax.f32 %v1375, 0.0
        %v1441 = vpack.c.bf16 %v1379, %v1377
        %v1442 = vpack.c.bf16 %v1380, %v1378
        %v1443 = vpack.c.bf16 %v1383, %v1381
        %v1444 = vpack.c.bf16 %v1384, %v1382
        %v1445 = vpack.c.bf16 %v1387, %v1385
        %v1446 = vpack.c.bf16 %v1388, %v1386
        %v1447 = vpack.c.bf16 %v1391, %v1389
        %v1448 = vpack.c.bf16 %v1392, %v1390
        %v1449 = vpack.c.bf16 %v1395, %v1393
        %v1450 = vpack.c.bf16 %v1396, %v1394
        %v1451 = vpack.c.bf16 %v1399, %v1397
        %v1452 = vpack.c.bf16 %v1400, %v1398
        %v1453 = vpack.c.bf16 %v1403, %v1401
        %v1454 = vpack.c.bf16 %v1404, %v1402
        %v1455 = vpack.c.bf16 %v1407, %v1405
        %v1456 = vpack.c.bf16 %v1408, %v1406
        %v1457 = vpack.c.bf16 %v1411, %v1409
        %v1458 = vpack.c.bf16 %v1412, %v1410
        %v1459 = vpack.c.bf16 %v1415, %v1413
        %v1460 = vpack.c.bf16 %v1416, %v1414
        %v1461 = vpack.c.bf16 %v1419, %v1417
        %v1462 = vpack.c.bf16 %v1420, %v1418
        %v1463 = vpack.c.bf16 %v1423, %v1421
        %v1464 = vpack.c.bf16 %v1424, %v1422
        %v1465 = vpack.c.bf16 %v1427, %v1425
        %v1466 = vpack.c.bf16 %v1428, %v1426
        %v1467 = vpack.c.bf16 %v1431, %v1429
        %v1468 = vpack.c.bf16 %v1432, %v1430
        %v1469 = vpack.c.bf16 %v1435, %v1433
        %v1470 = vpack.c.bf16 %v1436, %v1434
        %v1471 = vpack.c.bf16 %v1439, %v1437
        %v1472 = vpack.c.bf16 %v1440, %v1438
        %v1473 = vld [vmem:[%s5] sm:$0xff]
        %v1474 = vld [vmem:[%s5 + $0x8] sm:$0xff]
        %v1475 = vld [vmem:[%s5 + $0x10] sm:$0xff]
        %v1476 = vld [vmem:[%s5 + $0x18] sm:$0xff]
        %v1477 = vld [vmem:[%s5 + $0x20] sm:$0xff]
        %v1478 = vld [vmem:[%s5 + $0x28] sm:$0xff]
        %v1479 = vld [vmem:[%s5 + $0x30] sm:$0xff]
        %v1480 = vld [vmem:[%s5 + $0x38] sm:$0xff]
        %v1481 = vld [vmem:[%s5 + $0x40] sm:$0xff]
        %v1482 = vld [vmem:[%s5 + $0x48] sm:$0xff]
        %v1483 = vld [vmem:[%s5 + $0x50] sm:$0xff]
        %v1484 = vld [vmem:[%s5 + $0x58] sm:$0xff]
        %v1485 = vld [vmem:[%s5 + $0x60] sm:$0xff]
        %v1486 = vld [vmem:[%s5 + $0x68] sm:$0xff]
        %v1487 = vld [vmem:[%s5 + $0x70] sm:$0xff]
        %v1488 = vld [vmem:[%s5 + $0x78] sm:$0xff]
        %v1489 = vld [vmem:[%s5 + $0x80] sm:$0xff]
        %v1490 = vld [vmem:[%s5 + $0x88] sm:$0xff]
        %v1491 = vld [vmem:[%s5 + $0x90] sm:$0xff]
        %v1492 = vld [vmem:[%s5 + $0x98] sm:$0xff]
        %v1493 = vld [vmem:[%s5 + $0xa0] sm:$0xff]
        %v1494 = vld [vmem:[%s5 + $0xa8] sm:$0xff]
        %v1495 = vld [vmem:[%s5 + $0xb0] sm:$0xff]
        %v1496 = vld [vmem:[%s5 + $0xb8] sm:$0xff]
        %v1497 = vld [vmem:[%s5 + $0xc0] sm:$0xff]
        %v1498 = vld [vmem:[%s5 + $0xc8] sm:$0xff]
        %v1499 = vld [vmem:[%s5 + $0xd0] sm:$0xff]
        %v1500 = vld [vmem:[%s5 + $0xd8] sm:$0xff]
        %v1501 = vld [vmem:[%s5 + $0xe0] sm:$0xff]
        %v1502 = vld [vmem:[%s5 + $0xe8] sm:$0xff]
        %v1503 = vld [vmem:[%s5 + $0xf0] sm:$0xff]
        %v1504 = vld [vmem:[%s5 + $0xf8] sm:$0xff]
        %v1505 = vld [vmem:[%s6] sm:$0x3]
        %v1507 = vlaneseq
        %v1508 = vshrl.u32 %v1507, 7
        %v1509 = vsub.s32 0, %v1508
        %v1510 = vrot.slane %v1505, %v1509
        %v1511 = vlaneseq
        %v1512 = vshrl.u32 %v1511, 7
        %v1513 = vsub.s32 1, %v1512
        %v1514 = vrot.slane %v1505, %v1513
        %v1549 = vunpack.c.l.b16 %v1473
        %v1550 = vunpack.c.h.b16 %v1473
        %v1551 = vunpack.c.l.b16 %v1474
        %v1552 = vunpack.c.h.b16 %v1474
        %v1553 = vunpack.c.l.b16 %v1475
        %v1554 = vunpack.c.h.b16 %v1475
        %v1555 = vunpack.c.l.b16 %v1476
        %v1556 = vunpack.c.h.b16 %v1476
        %v1557 = vunpack.c.l.b16 %v1477
        %v1558 = vunpack.c.h.b16 %v1477
        %v1559 = vunpack.c.l.b16 %v1478
        %v1560 = vunpack.c.h.b16 %v1478
        %v1561 = vunpack.c.l.b16 %v1479
        %v1562 = vunpack.c.h.b16 %v1479
        %v1563 = vunpack.c.l.b16 %v1480
        %v1564 = vunpack.c.h.b16 %v1480
        %v1565 = vunpack.c.l.b16 %v1481
        %v1566 = vunpack.c.h.b16 %v1481
        %v1567 = vunpack.c.l.b16 %v1482
        %v1568 = vunpack.c.h.b16 %v1482
        %v1569 = vunpack.c.l.b16 %v1483
        %v1570 = vunpack.c.h.b16 %v1483
        %v1571 = vunpack.c.l.b16 %v1484
        %v1572 = vunpack.c.h.b16 %v1484
        %v1573 = vunpack.c.l.b16 %v1485
        %v1574 = vunpack.c.h.b16 %v1485
        %v1575 = vunpack.c.l.b16 %v1486
        %v1576 = vunpack.c.h.b16 %v1486
        %v1577 = vunpack.c.l.b16 %v1487
        %v1578 = vunpack.c.h.b16 %v1487
        %v1579 = vunpack.c.l.b16 %v1488
        %v1580 = vunpack.c.h.b16 %v1488
        %v1581 = vunpack.c.l.b16 %v1489
        %v1582 = vunpack.c.h.b16 %v1489
        %v1583 = vunpack.c.l.b16 %v1490
        %v1584 = vunpack.c.h.b16 %v1490
        %v1585 = vunpack.c.l.b16 %v1491
        %v1586 = vunpack.c.h.b16 %v1491
        %v1587 = vunpack.c.l.b16 %v1492
        %v1588 = vunpack.c.h.b16 %v1492
        %v1589 = vunpack.c.l.b16 %v1493
        %v1590 = vunpack.c.h.b16 %v1493
        %v1591 = vunpack.c.l.b16 %v1494
        %v1592 = vunpack.c.h.b16 %v1494
        %v1593 = vunpack.c.l.b16 %v1495
        %v1594 = vunpack.c.h.b16 %v1495
        %v1595 = vunpack.c.l.b16 %v1496
        %v1596 = vunpack.c.h.b16 %v1496
        %v1597 = vunpack.c.l.b16 %v1497
        %v1598 = vunpack.c.h.b16 %v1497
        %v1599 = vunpack.c.l.b16 %v1498
        %v1600 = vunpack.c.h.b16 %v1498
        %v1601 = vunpack.c.l.b16 %v1499
        %v1602 = vunpack.c.h.b16 %v1499
        %v1603 = vunpack.c.l.b16 %v1500
        %v1604 = vunpack.c.h.b16 %v1500
        %v1605 = vunpack.c.l.b16 %v1501
        %v1606 = vunpack.c.h.b16 %v1501
        %v1607 = vunpack.c.l.b16 %v1502
        %v1608 = vunpack.c.h.b16 %v1502
        %v1609 = vunpack.c.l.b16 %v1503
        %v1610 = vunpack.c.h.b16 %v1503
        %v1611 = vunpack.c.l.b16 %v1504
        %v1612 = vunpack.c.h.b16 %v1504
        %v1613 = vpack.c.b16 %v1551, %v1549
        %v1614 = vpack.c.b16 %v1552, %v1550
        %v1615 = vpack.c.b16 %v1555, %v1553
        %v1616 = vpack.c.b16 %v1556, %v1554
        %v1617 = vpack.c.b16 %v1559, %v1557
        %v1618 = vpack.c.b16 %v1560, %v1558
        %v1619 = vpack.c.b16 %v1563, %v1561
        %v1620 = vpack.c.b16 %v1564, %v1562
        %v1621 = vpack.c.b16 %v1567, %v1565
        %v1622 = vpack.c.b16 %v1568, %v1566
        %v1623 = vpack.c.b16 %v1571, %v1569
        %v1624 = vpack.c.b16 %v1572, %v1570
        %v1625 = vpack.c.b16 %v1575, %v1573
        %v1626 = vpack.c.b16 %v1576, %v1574
        %v1627 = vpack.c.b16 %v1579, %v1577
        %v1628 = vpack.c.b16 %v1580, %v1578
        %v1629 = vpack.c.b16 %v1583, %v1581
        %v1630 = vpack.c.b16 %v1584, %v1582
        %v1631 = vpack.c.b16 %v1587, %v1585
        %v1632 = vpack.c.b16 %v1588, %v1586
        %v1633 = vpack.c.b16 %v1591, %v1589
        %v1634 = vpack.c.b16 %v1592, %v1590
        %v1635 = vpack.c.b16 %v1595, %v1593
        %v1636 = vpack.c.b16 %v1596, %v1594
        %v1637 = vpack.c.b16 %v1599, %v1597
        %v1638 = vpack.c.b16 %v1600, %v1598
        %v1639 = vpack.c.b16 %v1603, %v1601
        %v1640 = vpack.c.b16 %v1604, %v1602
        %v1641 = vpack.c.b16 %v1607, %v1605
        %v1642 = vpack.c.b16 %v1608, %v1606
        %v1643 = vpack.c.b16 %v1611, %v1609
        %v1644 = vpack.c.b16 %v1612, %v1610
        %1677 = vmatprep.subr.bf16.mxu0 %v1614
        %1678 = vmatpush1.bf16.msra.mxu0 %v1613
        %1679 = vmatprep.subr.bf16.mxu0 %v1616
        %1680 = vmatpush1.bf16.msra.mxu0 %v1615
        %1681 = vmatprep.subr.bf16.mxu0 %v1618
        %1682 = vmatpush1.bf16.msra.mxu0 %v1617
        %1683 = vmatprep.subr.bf16.mxu0 %v1620
        %1684 = vmatpush1.bf16.msra.mxu0 %v1619
        %1685 = vmatprep.subr.bf16.mxu0 %v1622
        %1686 = vmatpush1.bf16.msra.mxu0 %v1621
        %1687 = vmatprep.subr.bf16.mxu0 %v1624
        %1688 = vmatpush1.bf16.msra.mxu0 %v1623
        %1689 = vmatprep.subr.bf16.mxu0 %v1626
        %1690 = vmatpush1.bf16.msra.mxu0 %v1625
        %1691 = vmatprep.subr.bf16.mxu0 %v1628
        %1692 = vmatpush1.bf16.msra.mxu0 %v1627
        %1693 = vmatprep.subr.bf16.mxu0 %v1630
        %1694 = vmatpush1.bf16.msra.mxu0 %v1629
        %1695 = vmatprep.subr.bf16.mxu0 %v1632
        %1696 = vmatpush1.bf16.msra.mxu0 %v1631
        %1697 = vmatprep.subr.bf16.mxu0 %v1634
        %1698 = vmatpush1.bf16.msra.mxu0 %v1633
        %1699 = vmatprep.subr.bf16.mxu0 %v1636
        %1700 = vmatpush1.bf16.msra.mxu0 %v1635
        %1701 = vmatprep.subr.bf16.mxu0 %v1638
        %1702 = vmatpush1.bf16.msra.mxu0 %v1637
        %1703 = vmatprep.subr.bf16.mxu0 %v1640
        %1704 = vmatpush1.bf16.msra.mxu0 %v1639
        %1705 = vmatprep.subr.bf16.mxu0 %v1642
        %1706 = vmatpush1.bf16.msra.mxu0 %v1641
        %1707 = vmatprep.subr.bf16.mxu0 %v1644
        %1708 = vmatpush1.bf16.msra.mxu0 %v1643
        %1709 = vmatprep.mubr.bf16.mxu0 %v1442
        %1710 = vmatmul.mubr.bf16.gmra.mrb[0].mxu0 %v1441
        %v1711 = vpop.f32.mrb[0].mxu0
        %v1712 = vadd.f32 %v1510, %v1711
        %v1713 = vpop.f32.mrb[0].mxu0
        %v1714 = vadd.f32 %v1514, %v1713
        %v1715 = vpop.f32.mrb[0].mxu0
        %v1716 = vadd.f32 %v1510, %v1715
        %v1717 = vpop.f32.mrb[0].mxu0
        %v1718 = vadd.f32 %v1514, %v1717
        %1719 = vmatprep.mubr.bf16.mxu0 %v1444
        %1720 = vmatmul.mubr.bf16.gmra.mrb[0].mxu0 %v1443
        %v1721 = vpop.f32.mrb[0].mxu0
        %v1722 = vadd.f32 %v1510, %v1721
        %v1723 = vpop.f32.mrb[0].mxu0
        %v1724 = vadd.f32 %v1514, %v1723
        %v1725 = vpop.f32.mrb[0].mxu0
        %v1726 = vadd.f32 %v1510, %v1725
        %v1727 = vpop.f32.mrb[0].mxu0
        %v1728 = vadd.f32 %v1514, %v1727
        %1729 = vmatprep.mubr.bf16.mxu0 %v1446
        %1730 = vmatmul.mubr.bf16.gmra.mrb[0].mxu0 %v1445
        %v1731 = vpop.f32.mrb[0].mxu0
        %v1732 = vadd.f32 %v1510, %v1731
        %v1733 = vpop.f32.mrb[0].mxu0
        %v1734 = vadd.f32 %v1514, %v1733
        %v1735 = vpop.f32.mrb[0].mxu0
        %v1736 = vadd.f32 %v1510, %v1735
        %v1737 = vpop.f32.mrb[0].mxu0
        %v1738 = vadd.f32 %v1514, %v1737
        %1739 = vmatprep.mubr.bf16.mxu0 %v1448
        %1740 = vmatmul.mubr.bf16.gmra.mrb[0].mxu0 %v1447
        %v1741 = vpop.f32.mrb[0].mxu0
        %v1742 = vadd.f32 %v1510, %v1741
        %v1743 = vpop.f32.mrb[0].mxu0
        %v1744 = vadd.f32 %v1514, %v1743
        %v1745 = vpop.f32.mrb[0].mxu0
        %v1746 = vadd.f32 %v1510, %v1745
        %v1747 = vpop.f32.mrb[0].mxu0
        %v1748 = vadd.f32 %v1514, %v1747
        %1749 = vmatprep.mubr.bf16.mxu0 %v1450
        %1750 = vmatmul.mubr.bf16.gmra.mrb[0].mxu0 %v1449
        %v1751 = vpop.f32.mrb[0].mxu0
        %v1752 = vadd.f32 %v1510, %v1751
        %v1753 = vpop.f32.mrb[0].mxu0
        %v1754 = vadd.f32 %v1514, %v1753
        %v1755 = vpop.f32.mrb[0].mxu0
        %v1756 = vadd.f32 %v1510, %v1755
        %v1757 = vpop.f32.mrb[0].mxu0
        %v1758 = vadd.f32 %v1514, %v1757
        %1759 = vmatprep.mubr.bf16.mxu0 %v1452
        %1760 = vmatmul.mubr.bf16.gmra.mrb[0].mxu0 %v1451
        %v1761 = vpop.f32.mrb[0].mxu0
        %v1762 = vadd.f32 %v1510, %v1761
        %v1763 = vpop.f32.mrb[0].mxu0
        %v1764 = vadd.f32 %v1514, %v1763
        %v1765 = vpop.f32.mrb[0].mxu0
        %v1766 = vadd.f32 %v1510, %v1765
        %v1767 = vpop.f32.mrb[0].mxu0
        %v1768 = vadd.f32 %v1514, %v1767
        %1769 = vmatprep.mubr.bf16.mxu0 %v1454
        %1770 = vmatmul.mubr.bf16.gmra.mrb[0].mxu0 %v1453
        %v1771 = vpop.f32.mrb[0].mxu0
        %v1772 = vadd.f32 %v1510, %v1771
        %v1773 = vpop.f32.mrb[0].mxu0
        %v1774 = vadd.f32 %v1514, %v1773
        %v1775 = vpop.f32.mrb[0].mxu0
        %v1776 = vadd.f32 %v1510, %v1775
        %v1777 = vpop.f32.mrb[0].mxu0
        %v1778 = vadd.f32 %v1514, %v1777
        %1779 = vmatprep.mubr.bf16.mxu0 %v1456
        %1780 = vmatmul.mubr.bf16.gmra.mrb[0].mxu0 %v1455
        %v1781 = vpop.f32.mrb[0].mxu0
        %v1782 = vadd.f32 %v1510, %v1781
        %v1783 = vpop.f32.mrb[0].mxu0
        %v1784 = vadd.f32 %v1514, %v1783
        %v1785 = vpop.f32.mrb[0].mxu0
        %v1786 = vadd.f32 %v1510, %v1785
        %v1787 = vpop.f32.mrb[0].mxu0
        %v1788 = vadd.f32 %v1514, %v1787
        %1789 = vmatprep.mubr.bf16.mxu0 %v1458
        %1790 = vmatmul.mubr.bf16.gmra.mrb[0].mxu0 %v1457
        %v1791 = vpop.f32.mrb[0].mxu0
        %v1792 = vadd.f32 %v1510, %v1791
        %v1793 = vpop.f32.mrb[0].mxu0
        %v1794 = vadd.f32 %v1514, %v1793
        %v1795 = vpop.f32.mrb[0].mxu0
        %v1796 = vadd.f32 %v1510, %v1795
        %v1797 = vpop.f32.mrb[0].mxu0
        %v1798 = vadd.f32 %v1514, %v1797
        %1799 = vmatprep.mubr.bf16.mxu0 %v1460
        %1800 = vmatmul.mubr.bf16.gmra.mrb[0].mxu0 %v1459
        %v1801 = vpop.f32.mrb[0].mxu0
        %v1802 = vadd.f32 %v1510, %v1801
        %v1803 = vpop.f32.mrb[0].mxu0
        %v1804 = vadd.f32 %v1514, %v1803
        %v1805 = vpop.f32.mrb[0].mxu0
        %v1806 = vadd.f32 %v1510, %v1805
        %v1807 = vpop.f32.mrb[0].mxu0
        %v1808 = vadd.f32 %v1514, %v1807
        %1809 = vmatprep.mubr.bf16.mxu0 %v1462
        %1810 = vmatmul.mubr.bf16.gmra.mrb[0].mxu0 %v1461
        %v1811 = vpop.f32.mrb[0].mxu0
        %v1812 = vadd.f32 %v1510, %v1811
        %v1813 = vpop.f32.mrb[0].mxu0
        %v1814 = vadd.f32 %v1514, %v1813
        %v1815 = vpop.f32.mrb[0].mxu0
        %v1816 = vadd.f32 %v1510, %v1815
        %v1817 = vpop.f32.mrb[0].mxu0
        %v1818 = vadd.f32 %v1514, %v1817
        %1819 = vmatprep.mubr.bf16.mxu0 %v1464
        %1820 = vmatmul.mubr.bf16.gmra.mrb[0].mxu0 %v1463
        %v1821 = vpop.f32.mrb[0].mxu0
        %v1822 = vadd.f32 %v1510, %v1821
        %v1823 = vpop.f32.mrb[0].mxu0
        %v1824 = vadd.f32 %v1514, %v1823
        %v1825 = vpop.f32.mrb[0].mxu0
        %v1826 = vadd.f32 %v1510, %v1825
        %v1827 = vpop.f32.mrb[0].mxu0
        %v1828 = vadd.f32 %v1514, %v1827
        %1829 = vmatprep.mubr.bf16.mxu0 %v1466
        %1830 = vmatmul.mubr.bf16.gmra.mrb[0].mxu0 %v1465
        %v1831 = vpop.f32.mrb[0].mxu0
        %v1832 = vadd.f32 %v1510, %v1831
        %v1833 = vpop.f32.mrb[0].mxu0
        %v1834 = vadd.f32 %v1514, %v1833
        %v1835 = vpop.f32.mrb[0].mxu0
        %v1836 = vadd.f32 %v1510, %v1835
        %v1837 = vpop.f32.mrb[0].mxu0
        %v1838 = vadd.f32 %v1514, %v1837
        %1839 = vmatprep.mubr.bf16.mxu0 %v1468
        %1840 = vmatmul.mubr.bf16.gmra.mrb[0].mxu0 %v1467
        %v1841 = vpop.f32.mrb[0].mxu0
        %v1842 = vadd.f32 %v1510, %v1841
        %v1843 = vpop.f32.mrb[0].mxu0
        %v1844 = vadd.f32 %v1514, %v1843
        %v1845 = vpop.f32.mrb[0].mxu0
        %v1846 = vadd.f32 %v1510, %v1845
        %v1847 = vpop.f32.mrb[0].mxu0
        %v1848 = vadd.f32 %v1514, %v1847
        %1849 = vmatprep.mubr.bf16.mxu0 %v1470
        %1850 = vmatmul.mubr.bf16.gmra.mrb[0].mxu0 %v1469
        %v1851 = vpop.f32.mrb[0].mxu0
        %v1852 = vadd.f32 %v1510, %v1851
        %v1853 = vpop.f32.mrb[0].mxu0
        %v1854 = vadd.f32 %v1514, %v1853
        %v1855 = vpop.f32.mrb[0].mxu0
        %v1856 = vadd.f32 %v1510, %v1855
        %v1857 = vpop.f32.mrb[0].mxu0
        %v1858 = vadd.f32 %v1514, %v1857
        %1859 = vmatprep.mubr.bf16.mxu0 %v1472
        %1860 = vmatmul.mubr.bf16.gmra.mrb[0].mxu0 %v1471
        %v1861 = vpop.f32.mrb[0].mxu0
        %v1862 = vadd.f32 %v1510, %v1861
        %v1863 = vpop.f32.mrb[0].mxu0
        %v1864 = vadd.f32 %v1514, %v1863
        %v1865 = vpop.f32.mrb[0].mxu0
        %v1866 = vadd.f32 %v1510, %v1865
        %v1867 = vpop.f32.mrb[0].mxu0
        %v1868 = vadd.f32 %v1514, %v1867
        %1869 = vdwg.mxu0
        %v1870 = vmax.f32 %v1712, 0.0
        %v1871 = vmax.f32 %v1714, 0.0
        %v1872 = vmax.f32 %v1716, 0.0
        %v1873 = vmax.f32 %v1718, 0.0
        %v1874 = vmax.f32 %v1722, 0.0
        %v1875 = vmax.f32 %v1724, 0.0
        %v1876 = vmax.f32 %v1726, 0.0
        %v1877 = vmax.f32 %v1728, 0.0
        %v1878 = vmax.f32 %v1732, 0.0
        %v1879 = vmax.f32 %v1734, 0.0
        %v1880 = vmax.f32 %v1736, 0.0
        %v1881 = vmax.f32 %v1738, 0.0
        %v1882 = vmax.f32 %v1742, 0.0
        %v1883 = vmax.f32 %v1744, 0.0
        %v1884 = vmax.f32 %v1746, 0.0
        %v1885 = vmax.f32 %v1748, 0.0
        %v1886 = vmax.f32 %v1752, 0.0
        %v1887 = vmax.f32 %v1754, 0.0
        %v1888 = vmax.f32 %v1756, 0.0
        %v1889 = vmax.f32 %v1758, 0.0
        %v1890 = vmax.f32 %v1762, 0.0
        %v1891 = vmax.f32 %v1764, 0.0
        %v1892 = vmax.f32 %v1766, 0.0
        %v1893 = vmax.f32 %v1768, 0.0
        %v1894 = vmax.f32 %v1772, 0.0
        %v1895 = vmax.f32 %v1774, 0.0
        %v1896 = vmax.f32 %v1776, 0.0
        %v1897 = vmax.f32 %v1778, 0.0
        %v1898 = vmax.f32 %v1782, 0.0
        %v1899 = vmax.f32 %v1784, 0.0
        %v1900 = vmax.f32 %v1786, 0.0
        %v1901 = vmax.f32 %v1788, 0.0
        %v1902 = vmax.f32 %v1792, 0.0
        %v1903 = vmax.f32 %v1794, 0.0
        %v1904 = vmax.f32 %v1796, 0.0
        %v1905 = vmax.f32 %v1798, 0.0
        %v1906 = vmax.f32 %v1802, 0.0
        %v1907 = vmax.f32 %v1804, 0.0
        %v1908 = vmax.f32 %v1806, 0.0
        %v1909 = vmax.f32 %v1808, 0.0
        %v1910 = vmax.f32 %v1812, 0.0
        %v1911 = vmax.f32 %v1814, 0.0
        %v1912 = vmax.f32 %v1816, 0.0
        %v1913 = vmax.f32 %v1818, 0.0
        %v1914 = vmax.f32 %v1822, 0.0
        %v1915 = vmax.f32 %v1824, 0.0
        %v1916 = vmax.f32 %v1826, 0.0
        %v1917 = vmax.f32 %v1828, 0.0
        %v1918 = vmax.f32 %v1832, 0.0
        %v1919 = vmax.f32 %v1834, 0.0
        %v1920 = vmax.f32 %v1836, 0.0
        %v1921 = vmax.f32 %v1838, 0.0
        %v1922 = vmax.f32 %v1842, 0.0
        %v1923 = vmax.f32 %v1844, 0.0
        %v1924 = vmax.f32 %v1846, 0.0
        %v1925 = vmax.f32 %v1848, 0.0
        %v1926 = vmax.f32 %v1852, 0.0
        %v1927 = vmax.f32 %v1854, 0.0
        %v1928 = vmax.f32 %v1856, 0.0
        %v1929 = vmax.f32 %v1858, 0.0
        %v1930 = vmax.f32 %v1862, 0.0
        %v1931 = vmax.f32 %v1864, 0.0
        %v1932 = vmax.f32 %v1866, 0.0
        %v1933 = vmax.f32 %v1868, 0.0
        %v1934 = vpack.c.bf16 %v1872, %v1870
        %v1935 = vpack.c.bf16 %v1873, %v1871
        %v1936 = vpack.c.bf16 %v1876, %v1874
        %v1937 = vpack.c.bf16 %v1877, %v1875
        %v1938 = vpack.c.bf16 %v1880, %v1878
        %v1939 = vpack.c.bf16 %v1881, %v1879
        %v1940 = vpack.c.bf16 %v1884, %v1882
        %v1941 = vpack.c.bf16 %v1885, %v1883
        %v1942 = vpack.c.bf16 %v1888, %v1886
        %v1943 = vpack.c.bf16 %v1889, %v1887
        %v1944 = vpack.c.bf16 %v1892, %v1890
        %v1945 = vpack.c.bf16 %v1893, %v1891
        %v1946 = vpack.c.bf16 %v1896, %v1894
        %v1947 = vpack.c.bf16 %v1897, %v1895
        %v1948 = vpack.c.bf16 %v1900, %v1898
        %v1949 = vpack.c.bf16 %v1901, %v1899
        %v1950 = vpack.c.bf16 %v1904, %v1902
        %v1951 = vpack.c.bf16 %v1905, %v1903
        %v1952 = vpack.c.bf16 %v1908, %v1906
        %v1953 = vpack.c.bf16 %v1909, %v1907
        %v1954 = vpack.c.bf16 %v1912, %v1910
        %v1955 = vpack.c.bf16 %v1913, %v1911
        %v1956 = vpack.c.bf16 %v1916, %v1914
        %v1957 = vpack.c.bf16 %v1917, %v1915
        %v1958 = vpack.c.bf16 %v1920, %v1918
        %v1959 = vpack.c.bf16 %v1921, %v1919
        %v1960 = vpack.c.bf16 %v1924, %v1922
        %v1961 = vpack.c.bf16 %v1925, %v1923
        %v1962 = vpack.c.bf16 %v1928, %v1926
        %v1963 = vpack.c.bf16 %v1929, %v1927
        %v1964 = vpack.c.bf16 %v1932, %v1930
        %v1965 = vpack.c.bf16 %v1933, %v1931
        %v1966 = vld [vmem:[#allocation4] sm:$0xff]
        %v1967 = vld [vmem:[#allocation4 + $0x8] sm:$0xff]
        %v1968 = vld [vmem:[#allocation4 + $0x10] sm:$0xff]
        %v1969 = vld [vmem:[#allocation4 + $0x18] sm:$0xff]
        %v1970 = vld [vmem:[#allocation4 + $0x20] sm:$0xff]
        %v1971 = vld [vmem:[#allocation4 + $0x28] sm:$0xff]
        %v1972 = vld [vmem:[#allocation4 + $0x30] sm:$0xff]
        %v1973 = vld [vmem:[#allocation4 + $0x38] sm:$0xff]
        %v1974 = vld [vmem:[#allocation4 + $0x40] sm:$0xff]
        %v1975 = vld [vmem:[#allocation4 + $0x48] sm:$0xff]
        %v1976 = vld [vmem:[#allocation4 + $0x50] sm:$0xff]
        %v1977 = vld [vmem:[#allocation4 + $0x58] sm:$0xff]
        %v1978 = vld [vmem:[#allocation4 + $0x60] sm:$0xff]
        %v1979 = vld [vmem:[#allocation4 + $0x68] sm:$0xff]
        %v1980 = vld [vmem:[#allocation4 + $0x70] sm:$0xff]
        %v1981 = vld [vmem:[#allocation4 + $0x78] sm:$0xff]
        %v1982 = vld [vmem:[#allocation4 + $0x80] sm:$0xff]
        %v1983 = vld [vmem:[#allocation4 + $0x88] sm:$0xff]
        %v1984 = vld [vmem:[#allocation4 + $0x90] sm:$0xff]
        %v1985 = vld [vmem:[#allocation4 + $0x98] sm:$0xff]
        %v1986 = vld [vmem:[#allocation4 + $0xa0] sm:$0xff]
        %v1987 = vld [vmem:[#allocation4 + $0xa8] sm:$0xff]
        %v1988 = vld [vmem:[#allocation4 + $0xb0] sm:$0xff]
        %v1989 = vld [vmem:[#allocation4 + $0xb8] sm:$0xff]
        %v1990 = vld [vmem:[#allocation4 + $0xc0] sm:$0xff]
        %v1991 = vld [vmem:[#allocation4 + $0xc8] sm:$0xff]
        %v1992 = vld [vmem:[#allocation4 + $0xd0] sm:$0xff]
        %v1993 = vld [vmem:[#allocation4 + $0xd8] sm:$0xff]
        %v1994 = vld [vmem:[#allocation4 + $0xe0] sm:$0xff]
        %v1995 = vld [vmem:[#allocation4 + $0xe8] sm:$0xff]
        %v1996 = vld [vmem:[#allocation4 + $0xf0] sm:$0xff]
        %v1997 = vld [vmem:[#allocation4 + $0xf8] sm:$0xff]
        %v1998 = vld [vmem:[%s8] sm:$0x3]
        %v2000 = vlaneseq
        %v2001 = vshrl.u32 %v2000, 7
        %v2002 = vsub.s32 0, %v2001
        %v2003 = vrot.slane %v1998, %v2002
        %v2004 = vlaneseq
        %v2005 = vshrl.u32 %v2004, 7
        %v2006 = vsub.s32 1, %v2005
        %v2007 = vrot.slane %v1998, %v2006
        %v2042 = vunpack.c.l.b16 %v1966
        %v2043 = vunpack.c.h.b16 %v1966
        %v2044 = vunpack.c.l.b16 %v1967
        %v2045 = vunpack.c.h.b16 %v1967
        %v2046 = vunpack.c.l.b16 %v1968
        %v2047 = vunpack.c.h.b16 %v1968
        %v2048 = vunpack.c.l.b16 %v1969
        %v2049 = vunpack.c.h.b16 %v1969
        %v2050 = vunpack.c.l.b16 %v1970
        %v2051 = vunpack.c.h.b16 %v1970
        %v2052 = vunpack.c.l.b16 %v1971
        %v2053 = vunpack.c.h.b16 %v1971
        %v2054 = vunpack.c.l.b16 %v1972
        %v2055 = vunpack.c.h.b16 %v1972
        %v2056 = vunpack.c.l.b16 %v1973
        %v2057 = vunpack.c.h.b16 %v1973
        %v2058 = vunpack.c.l.b16 %v1974
        %v2059 = vunpack.c.h.b16 %v1974
        %v2060 = vunpack.c.l.b16 %v1975
        %v2061 = vunpack.c.h.b16 %v1975
        %v2062 = vunpack.c.l.b16 %v1976
        %v2063 = vunpack.c.h.b16 %v1976
        %v2064 = vunpack.c.l.b16 %v1977
        %v2065 = vunpack.c.h.b16 %v1977
        %v2066 = vunpack.c.l.b16 %v1978
        %v2067 = vunpack.c.h.b16 %v1978
        %v2068 = vunpack.c.l.b16 %v1979
        %v2069 = vunpack.c.h.b16 %v1979
        %v2070 = vunpack.c.l.b16 %v1980
        %v2071 = vunpack.c.h.b16 %v1980
        %v2072 = vunpack.c.l.b16 %v1981
        %v2073 = vunpack.c.h.b16 %v1981
        %v2074 = vunpack.c.l.b16 %v1982
        %v2075 = vunpack.c.h.b16 %v1982
        %v2076 = vunpack.c.l.b16 %v1983
        %v2077 = vunpack.c.h.b16 %v1983
        %v2078 = vunpack.c.l.b16 %v1984
        %v2079 = vunpack.c.h.b16 %v1984
        %v2080 = vunpack.c.l.b16 %v1985
        %v2081 = vunpack.c.h.b16 %v1985
        %v2082 = vunpack.c.l.b16 %v1986
        %v2083 = vunpack.c.h.b16 %v1986
        %v2084 = vunpack.c.l.b16 %v1987
        %v2085 = vunpack.c.h.b16 %v1987
        %v2086 = vunpack.c.l.b16 %v1988
        %v2087 = vunpack.c.h.b16 %v1988
        %v2088 = vunpack.c.l.b16 %v1989
        %v2089 = vunpack.c.h.b16 %v1989
        %v2090 = vunpack.c.l.b16 %v1990
        %v2091 = vunpack.c.h.b16 %v1990
        %v2092 = vunpack.c.l.b16 %v1991
        %v2093 = vunpack.c.h.b16 %v1991
        %v2094 = vunpack.c.l.b16 %v1992
        %v2095 = vunpack.c.h.b16 %v1992
        %v2096 = vunpack.c.l.b16 %v1993
        %v2097 = vunpack.c.h.b16 %v1993
        %v2098 = vunpack.c.l.b16 %v1994
        %v2099 = vunpack.c.h.b16 %v1994
        %v2100 = vunpack.c.l.b16 %v1995
        %v2101 = vunpack.c.h.b16 %v1995
        %v2102 = vunpack.c.l.b16 %v1996
        %v2103 = vunpack.c.h.b16 %v1996
        %v2104 = vunpack.c.l.b16 %v1997
        %v2105 = vunpack.c.h.b16 %v1997
        %v2106 = vpack.c.b16 %v2044, %v2042
        %v2107 = vpack.c.b16 %v2045, %v2043
        %v2108 = vpack.c.b16 %v2048, %v2046
        %v2109 = vpack.c.b16 %v2049, %v2047
        %v2110 = vpack.c.b16 %v2052, %v2050
        %v2111 = vpack.c.b16 %v2053, %v2051
        %v2112 = vpack.c.b16 %v2056, %v2054
        %v2113 = vpack.c.b16 %v2057, %v2055
        %v2114 = vpack.c.b16 %v2060, %v2058
        %v2115 = vpack.c.b16 %v2061, %v2059
        %v2116 = vpack.c.b16 %v2064, %v2062
        %v2117 = vpack.c.b16 %v2065, %v2063
        %v2118 = vpack.c.b16 %v2068, %v2066
        %v2119 = vpack.c.b16 %v2069, %v2067
        %v2120 = vpack.c.b16 %v2072, %v2070
        %v2121 = vpack.c.b16 %v2073, %v2071
        %v2122 = vpack.c.b16 %v2076, %v2074
        %v2123 = vpack.c.b16 %v2077, %v2075
        %v2124 = vpack.c.b16 %v2080, %v2078
        %v2125 = vpack.c.b16 %v2081, %v2079
        %v2126 = vpack.c.b16 %v2084, %v2082
        %v2127 = vpack.c.b16 %v2085, %v2083
        %v2128 = vpack.c.b16 %v2088, %v2086
        %v2129 = vpack.c.b16 %v2089, %v2087
        %v2130 = vpack.c.b16 %v2092, %v2090
        %v2131 = vpack.c.b16 %v2093, %v2091
        %v2132 = vpack.c.b16 %v2096, %v2094
        %v2133 = vpack.c.b16 %v2097, %v2095
        %v2134 = vpack.c.b16 %v2100, %v2098
        %v2135 = vpack.c.b16 %v2101, %v2099
        %v2136 = vpack.c.b16 %v2104, %v2102
        %v2137 = vpack.c.b16 %v2105, %v2103
        %2170 = vmatprep.subr.bf16.mxu0 %v2107
        %2171 = vmatpush1.bf16.msra.mxu0 %v2106
        %2172 = vmatprep.subr.bf16.mxu0 %v2109
        %2173 = vmatpush1.bf16.msra.mxu0 %v2108
        %2174 = vmatprep.subr.bf16.mxu0 %v2111
        %2175 = vmatpush1.bf16.msra.mxu0 %v2110
        %2176 = vmatprep.subr.bf16.mxu0 %v2113
        %2177 = vmatpush1.bf16.msra.mxu0 %v2112
        %2178 = vmatprep.subr.bf16.mxu0 %v2115
        %2179 = vmatpush1.bf16.msra.mxu0 %v2114
        %2180 = vmatprep.subr.bf16.mxu0 %v2117
        %2181 = vmatpush1.bf16.msra.mxu0 %v2116
        %2182 = vmatprep.subr.bf16.mxu0 %v2119
        %2183 = vmatpush1.bf16.msra.mxu0 %v2118
        %2184 = vmatprep.subr.bf16.mxu0 %v2121
        %2185 = vmatpush1.bf16.msra.mxu0 %v2120
        %2186 = vmatprep.subr.bf16.mxu0 %v2123
        %2187 = vmatpush1.bf16.msra.mxu0 %v2122
        %2188 = vmatprep.subr.bf16.mxu0 %v2125
        %2189 = vmatpush1.bf16.msra.mxu0 %v2124
        %2190 = vmatprep.subr.bf16.mxu0 %v2127
        %2191 = vmatpush1.bf16.msra.mxu0 %v2126
        %2192 = vmatprep.subr.bf16.mxu0 %v2129
        %2193 = vmatpush1.bf16.msra.mxu0 %v2128
        %2194 = vmatprep.subr.bf16.mxu0 %v2131
        %2195 = vmatpush1.bf16.msra.mxu0 %v2130
        %2196 = vmatprep.subr.bf16.mxu0 %v2133
        %2197 = vmatpush1.bf16.msra.mxu0 %v2132
        %2198 = vmatprep.subr.bf16.mxu0 %v2135
        %2199 = vmatpush1.bf16.msra.mxu0 %v2134
        %2200 = vmatprep.subr.bf16.mxu0 %v2137
        %2201 = vmatpush1.bf16.msra.mxu0 %v2136
        %2202 = vmatprep.mubr.bf16.mxu0 %v1935
        %2203 = vmatmul.mubr.bf16.gmra.mrb[0].mxu0 %v1934
        %v2204 = vpop.f32.mrb[0].mxu0
        %v2205 = vadd.f32 %v2003, %v2204
        %v2206 = vpop.f32.mrb[0].mxu0
        %v2207 = vadd.f32 %v2007, %v2206
        %v2208 = vpop.f32.mrb[0].mxu0
        %v2209 = vadd.f32 %v2003, %v2208
        %v2210 = vpop.f32.mrb[0].mxu0
        %v2211 = vadd.f32 %v2007, %v2210
        %2212 = vmatprep.mubr.bf16.mxu0 %v1937
        %2213 = vmatmul.mubr.bf16.gmra.mrb[0].mxu0 %v1936
        %v2214 = vpop.f32.mrb[0].mxu0
        %v2215 = vadd.f32 %v2003, %v2214
        %v2216 = vpop.f32.mrb[0].mxu0
        %v2217 = vadd.f32 %v2007, %v2216
        %v2218 = vpop.f32.mrb[0].mxu0
        %v2219 = vadd.f32 %v2003, %v2218
        %v2220 = vpop.f32.mrb[0].mxu0
        %v2221 = vadd.f32 %v2007, %v2220
        %2222 = vmatprep.mubr.bf16.mxu0 %v1939
        %2223 = vmatmul.mubr.bf16.gmra.mrb[0].mxu0 %v1938
        %v2224 = vpop.f32.mrb[0].mxu0
        %v2225 = vadd.f32 %v2003, %v2224
        %v2226 = vpop.f32.mrb[0].mxu0
        %v2227 = vadd.f32 %v2007, %v2226
        %v2228 = vpop.f32.mrb[0].mxu0
        %v2229 = vadd.f32 %v2003, %v2228
        %v2230 = vpop.f32.mrb[0].mxu0
        %v2231 = vadd.f32 %v2007, %v2230
        %2232 = vmatprep.mubr.bf16.mxu0 %v1941
        %2233 = vmatmul.mubr.bf16.gmra.mrb[0].mxu0 %v1940
        %v2234 = vpop.f32.mrb[0].mxu0
        %v2235 = vadd.f32 %v2003, %v2234
        %v2236 = vpop.f32.mrb[0].mxu0
        %v2237 = vadd.f32 %v2007, %v2236
        %v2238 = vpop.f32.mrb[0].mxu0
        %v2239 = vadd.f32 %v2003, %v2238
        %v2240 = vpop.f32.mrb[0].mxu0
        %v2241 = vadd.f32 %v2007, %v2240
        %2242 = vmatprep.mubr.bf16.mxu0 %v1943
        %2243 = vmatmul.mubr.bf16.gmra.mrb[0].mxu0 %v1942
        %v2244 = vpop.f32.mrb[0].mxu0
        %v2245 = vadd.f32 %v2003, %v2244
        %v2246 = vpop.f32.mrb[0].mxu0
        %v2247 = vadd.f32 %v2007, %v2246
        %v2248 = vpop.f32.mrb[0].mxu0
        %v2249 = vadd.f32 %v2003, %v2248
        %v2250 = vpop.f32.mrb[0].mxu0
        %v2251 = vadd.f32 %v2007, %v2250
        %2252 = vmatprep.mubr.bf16.mxu0 %v1945
        %2253 = vmatmul.mubr.bf16.gmra.mrb[0].mxu0 %v1944
        %v2254 = vpop.f32.mrb[0].mxu0
        %v2255 = vadd.f32 %v2003, %v2254
        %v2256 = vpop.f32.mrb[0].mxu0
        %v2257 = vadd.f32 %v2007, %v2256
        %v2258 = vpop.f32.mrb[0].mxu0
        %v2259 = vadd.f32 %v2003, %v2258
        %v2260 = vpop.f32.mrb[0].mxu0
        %v2261 = vadd.f32 %v2007, %v2260
        %2262 = vmatprep.mubr.bf16.mxu0 %v1947
        %2263 = vmatmul.mubr.bf16.gmra.mrb[0].mxu0 %v1946
        %v2264 = vpop.f32.mrb[0].mxu0
        %v2265 = vadd.f32 %v2003, %v2264
        %v2266 = vpop.f32.mrb[0].mxu0
        %v2267 = vadd.f32 %v2007, %v2266
        %v2268 = vpop.f32.mrb[0].mxu0
        %v2269 = vadd.f32 %v2003, %v2268
        %v2270 = vpop.f32.mrb[0].mxu0
        %v2271 = vadd.f32 %v2007, %v2270
        %2272 = vmatprep.mubr.bf16.mxu0 %v1949
        %2273 = vmatmul.mubr.bf16.gmra.mrb[0].mxu0 %v1948
        %v2274 = vpop.f32.mrb[0].mxu0
        %v2275 = vadd.f32 %v2003, %v2274
        %v2276 = vpop.f32.mrb[0].mxu0
        %v2277 = vadd.f32 %v2007, %v2276
        %v2278 = vpop.f32.mrb[0].mxu0
        %v2279 = vadd.f32 %v2003, %v2278
        %v2280 = vpop.f32.mrb[0].mxu0
        %v2281 = vadd.f32 %v2007, %v2280
        %2282 = vmatprep.mubr.bf16.mxu0 %v1951
        %2283 = vmatmul.mubr.bf16.gmra.mrb[0].mxu0 %v1950
        %v2284 = vpop.f32.mrb[0].mxu0
        %v2285 = vadd.f32 %v2003, %v2284
        %v2286 = vpop.f32.mrb[0].mxu0
        %v2287 = vadd.f32 %v2007, %v2286
        %v2288 = vpop.f32.mrb[0].mxu0
        %v2289 = vadd.f32 %v2003, %v2288
        %v2290 = vpop.f32.mrb[0].mxu0
        %v2291 = vadd.f32 %v2007, %v2290
        %2292 = vmatprep.mubr.bf16.mxu0 %v1953
        %2293 = vmatmul.mubr.bf16.gmra.mrb[0].mxu0 %v1952
        %v2294 = vpop.f32.mrb[0].mxu0
        %v2295 = vadd.f32 %v2003, %v2294
        %v2296 = vpop.f32.mrb[0].mxu0
        %v2297 = vadd.f32 %v2007, %v2296
        %v2298 = vpop.f32.mrb[0].mxu0
        %v2299 = vadd.f32 %v2003, %v2298
        %v2300 = vpop.f32.mrb[0].mxu0
        %v2301 = vadd.f32 %v2007, %v2300
        %2302 = vmatprep.mubr.bf16.mxu0 %v1955
        %2303 = vmatmul.mubr.bf16.gmra.mrb[0].mxu0 %v1954
        %v2304 = vpop.f32.mrb[0].mxu0
        %v2305 = vadd.f32 %v2003, %v2304
        %v2306 = vpop.f32.mrb[0].mxu0
        %v2307 = vadd.f32 %v2007, %v2306
        %v2308 = vpop.f32.mrb[0].mxu0
        %v2309 = vadd.f32 %v2003, %v2308
        %v2310 = vpop.f32.mrb[0].mxu0
        %v2311 = vadd.f32 %v2007, %v2310
        %2312 = vmatprep.mubr.bf16.mxu0 %v1957
        %2313 = vmatmul.mubr.bf16.gmra.mrb[0].mxu0 %v1956
        %v2314 = vpop.f32.mrb[0].mxu0
        %v2315 = vadd.f32 %v2003, %v2314
        %v2316 = vpop.f32.mrb[0].mxu0
        %v2317 = vadd.f32 %v2007, %v2316
        %v2318 = vpop.f32.mrb[0].mxu0
        %v2319 = vadd.f32 %v2003, %v2318
        %v2320 = vpop.f32.mrb[0].mxu0
        %v2321 = vadd.f32 %v2007, %v2320
        %2322 = vmatprep.mubr.bf16.mxu0 %v1959
        %2323 = vmatmul.mubr.bf16.gmra.mrb[0].mxu0 %v1958
        %v2324 = vpop.f32.mrb[0].mxu0
        %v2325 = vadd.f32 %v2003, %v2324
        %v2326 = vpop.f32.mrb[0].mxu0
        %v2327 = vadd.f32 %v2007, %v2326
        %v2328 = vpop.f32.mrb[0].mxu0
        %v2329 = vadd.f32 %v2003, %v2328
        %v2330 = vpop.f32.mrb[0].mxu0
        %v2331 = vadd.f32 %v2007, %v2330
        %2332 = vmatprep.mubr.bf16.mxu0 %v1961
        %2333 = vmatmul.mubr.bf16.gmra.mrb[0].mxu0 %v1960
        %v2334 = vpop.f32.mrb[0].mxu0
        %v2335 = vadd.f32 %v2003, %v2334
        %v2336 = vpop.f32.mrb[0].mxu0
        %v2337 = vadd.f32 %v2007, %v2336
        %v2338 = vpop.f32.mrb[0].mxu0
        %v2339 = vadd.f32 %v2003, %v2338
        %v2340 = vpop.f32.mrb[0].mxu0
        %v2341 = vadd.f32 %v2007, %v2340
        %2342 = vmatprep.mubr.bf16.mxu0 %v1963
        %2343 = vmatmul.mubr.bf16.gmra.mrb[0].mxu0 %v1962
        %v2344 = vpop.f32.mrb[0].mxu0
        %v2345 = vadd.f32 %v2003, %v2344
        %v2346 = vpop.f32.mrb[0].mxu0
        %v2347 = vadd.f32 %v2007, %v2346
        %v2348 = vpop.f32.mrb[0].mxu0
        %v2349 = vadd.f32 %v2003, %v2348
        %v2350 = vpop.f32.mrb[0].mxu0
        %v2351 = vadd.f32 %v2007, %v2350
        %2352 = vmatprep.mubr.bf16.mxu0 %v1965
        %2353 = vmatmul.mubr.bf16.gmra.mrb[0].mxu0 %v1964
        %v2354 = vpop.f32.mrb[0].mxu0
        %v2355 = vadd.f32 %v2003, %v2354
        %v2356 = vpop.f32.mrb[0].mxu0
        %v2357 = vadd.f32 %v2007, %v2356
        %v2358 = vpop.f32.mrb[0].mxu0
        %v2359 = vadd.f32 %v2003, %v2358
        %v2360 = vpop.f32.mrb[0].mxu0
        %v2361 = vadd.f32 %v2007, %v2360
        %2362 = vdwg.mxu0
        %v2363 = vmax.f32 %v2205, 0.0
        %v2364 = vmax.f32 %v2207, 0.0
        %v2365 = vmax.f32 %v2209, 0.0
        %v2366 = vmax.f32 %v2211, 0.0
        %v2367 = vmax.f32 %v2215, 0.0
        %v2368 = vmax.f32 %v2217, 0.0
        %v2369 = vmax.f32 %v2219, 0.0
        %v2370 = vmax.f32 %v2221, 0.0
        %v2371 = vmax.f32 %v2225, 0.0
        %v2372 = vmax.f32 %v2227, 0.0
        %v2373 = vmax.f32 %v2229, 0.0
        %v2374 = vmax.f32 %v2231, 0.0
        %v2375 = vmax.f32 %v2235, 0.0
        %v2376 = vmax.f32 %v2237, 0.0
        %v2377 = vmax.f32 %v2239, 0.0
        %v2378 = vmax.f32 %v2241, 0.0
        %v2379 = vmax.f32 %v2245, 0.0
        %v2380 = vmax.f32 %v2247, 0.0
        %v2381 = vmax.f32 %v2249, 0.0
        %v2382 = vmax.f32 %v2251, 0.0
        %v2383 = vmax.f32 %v2255, 0.0
        %v2384 = vmax.f32 %v2257, 0.0
        %v2385 = vmax.f32 %v2259, 0.0
        %v2386 = vmax.f32 %v2261, 0.0
        %v2387 = vmax.f32 %v2265, 0.0
        %v2388 = vmax.f32 %v2267, 0.0
        %v2389 = vmax.f32 %v2269, 0.0
        %v2390 = vmax.f32 %v2271, 0.0
        %v2391 = vmax.f32 %v2275, 0.0
        %v2392 = vmax.f32 %v2277, 0.0
        %v2393 = vmax.f32 %v2279, 0.0
        %v2394 = vmax.f32 %v2281, 0.0
        %v2395 = vmax.f32 %v2285, 0.0
        %v2396 = vmax.f32 %v2287, 0.0
        %v2397 = vmax.f32 %v2289, 0.0
        %v2398 = vmax.f32 %v2291, 0.0
        %v2399 = vmax.f32 %v2295, 0.0
        %v2400 = vmax.f32 %v2297, 0.0
        %v2401 = vmax.f32 %v2299, 0.0
        %v2402 = vmax.f32 %v2301, 0.0
        %v2403 = vmax.f32 %v2305, 0.0
        %v2404 = vmax.f32 %v2307, 0.0
        %v2405 = vmax.f32 %v2309, 0.0
        %v2406 = vmax.f32 %v2311, 0.0
        %v2407 = vmax.f32 %v2315, 0.0
        %v2408 = vmax.f32 %v2317, 0.0
        %v2409 = vmax.f32 %v2319, 0.0
        %v2410 = vmax.f32 %v2321, 0.0
        %v2411 = vmax.f32 %v2325, 0.0
        %v2412 = vmax.f32 %v2327, 0.0
        %v2413 = vmax.f32 %v2329, 0.0
        %v2414 = vmax.f32 %v2331, 0.0
        %v2415 = vmax.f32 %v2335, 0.0
        %v2416 = vmax.f32 %v2337, 0.0
        %v2417 = vmax.f32 %v2339, 0.0
        %v2418 = vmax.f32 %v2341, 0.0
        %v2419 = vmax.f32 %v2345, 0.0
        %v2420 = vmax.f32 %v2347, 0.0
        %v2421 = vmax.f32 %v2349, 0.0
        %v2422 = vmax.f32 %v2351, 0.0
        %v2423 = vmax.f32 %v2355, 0.0
        %v2424 = vmax.f32 %v2357, 0.0
        %v2425 = vmax.f32 %v2359, 0.0
        %v2426 = vmax.f32 %v2361, 0.0
        %v2427 = vpack.c.bf16 %v2365, %v2363
        %v2428 = vpack.c.bf16 %v2366, %v2364
        %v2429 = vpack.c.bf16 %v2369, %v2367
        %v2430 = vpack.c.bf16 %v2370, %v2368
        %v2431 = vpack.c.bf16 %v2373, %v2371
        %v2432 = vpack.c.bf16 %v2374, %v2372
        %v2433 = vpack.c.bf16 %v2377, %v2375
        %v2434 = vpack.c.bf16 %v2378, %v2376
        %v2435 = vpack.c.bf16 %v2381, %v2379
        %v2436 = vpack.c.bf16 %v2382, %v2380
        %v2437 = vpack.c.bf16 %v2385, %v2383
        %v2438 = vpack.c.bf16 %v2386, %v2384
        %v2439 = vpack.c.bf16 %v2389, %v2387
        %v2440 = vpack.c.bf16 %v2390, %v2388
        %v2441 = vpack.c.bf16 %v2393, %v2391
        %v2442 = vpack.c.bf16 %v2394, %v2392
        %v2443 = vpack.c.bf16 %v2397, %v2395
        %v2444 = vpack.c.bf16 %v2398, %v2396
        %v2445 = vpack.c.bf16 %v2401, %v2399
        %v2446 = vpack.c.bf16 %v2402, %v2400
        %v2447 = vpack.c.bf16 %v2405, %v2403
        %v2448 = vpack.c.bf16 %v2406, %v2404
        %v2449 = vpack.c.bf16 %v2409, %v2407
        %v2450 = vpack.c.bf16 %v2410, %v2408
        %v2451 = vpack.c.bf16 %v2413, %v2411
        %v2452 = vpack.c.bf16 %v2414, %v2412
        %v2453 = vpack.c.bf16 %v2417, %v2415
        %v2454 = vpack.c.bf16 %v2418, %v2416
        %v2455 = vpack.c.bf16 %v2421, %v2419
        %v2456 = vpack.c.bf16 %v2422, %v2420
        %v2457 = vpack.c.bf16 %v2425, %v2423
        %v2458 = vpack.c.bf16 %v2426, %v2424
        %v2459 = vld [vmem:[#allocation6] sm:$0xff]
        %v2460 = vld [vmem:[#allocation6 + $0x8] sm:$0xff]
        %v2461 = vld [vmem:[#allocation6 + $0x10] sm:$0xff]
        %v2462 = vld [vmem:[#allocation6 + $0x18] sm:$0xff]
        %v2463 = vld [vmem:[#allocation6 + $0x20] sm:$0xff]
        %v2464 = vld [vmem:[#allocation6 + $0x28] sm:$0xff]
        %v2465 = vld [vmem:[#allocation6 + $0x30] sm:$0xff]
        %v2466 = vld [vmem:[#allocation6 + $0x38] sm:$0xff]
        %v2467 = vld [vmem:[#allocation6 + $0x40] sm:$0xff]
        %v2468 = vld [vmem:[#allocation6 + $0x48] sm:$0xff]
        %v2469 = vld [vmem:[#allocation6 + $0x50] sm:$0xff]
        %v2470 = vld [vmem:[#allocation6 + $0x58] sm:$0xff]
        %v2471 = vld [vmem:[#allocation6 + $0x60] sm:$0xff]
        %v2472 = vld [vmem:[#allocation6 + $0x68] sm:$0xff]
        %v2473 = vld [vmem:[#allocation6 + $0x70] sm:$0xff]
        %v2474 = vld [vmem:[#allocation6 + $0x78] sm:$0xff]
        %v2475 = vld [vmem:[#allocation6 + $0x80] sm:$0xff]
        %v2476 = vld [vmem:[#allocation6 + $0x88] sm:$0xff]
        %v2477 = vld [vmem:[#allocation6 + $0x90] sm:$0xff]
        %v2478 = vld [vmem:[#allocation6 + $0x98] sm:$0xff]
        %v2479 = vld [vmem:[#allocation6 + $0xa0] sm:$0xff]
        %v2480 = vld [vmem:[#allocation6 + $0xa8] sm:$0xff]
        %v2481 = vld [vmem:[#allocation6 + $0xb0] sm:$0xff]
        %v2482 = vld [vmem:[#allocation6 + $0xb8] sm:$0xff]
        %v2483 = vld [vmem:[#allocation6 + $0xc0] sm:$0xff]
        %v2484 = vld [vmem:[#allocation6 + $0xc8] sm:$0xff]
        %v2485 = vld [vmem:[#allocation6 + $0xd0] sm:$0xff]
        %v2486 = vld [vmem:[#allocation6 + $0xd8] sm:$0xff]
        %v2487 = vld [vmem:[#allocation6 + $0xe0] sm:$0xff]
        %v2488 = vld [vmem:[#allocation6 + $0xe8] sm:$0xff]
        %v2489 = vld [vmem:[#allocation6 + $0xf0] sm:$0xff]
        %v2490 = vld [vmem:[#allocation6 + $0xf8] sm:$0xff]
        %v2491 = vld [vmem:[%s10] sm:$0x3]
        %v2493 = vlaneseq
        %v2494 = vshrl.u32 %v2493, 7
        %v2495 = vsub.s32 0, %v2494
        %v2496 = vrot.slane %v2491, %v2495
        %v2497 = vlaneseq
        %v2498 = vshrl.u32 %v2497, 7
        %v2499 = vsub.s32 1, %v2498
        %v2500 = vrot.slane %v2491, %v2499
        %v2535 = vunpack.c.l.b16 %v2459
        %v2536 = vunpack.c.h.b16 %v2459
        %v2537 = vunpack.c.l.b16 %v2460
        %v2538 = vunpack.c.h.b16 %v2460
        %v2539 = vunpack.c.l.b16 %v2461
        %v2540 = vunpack.c.h.b16 %v2461
        %v2541 = vunpack.c.l.b16 %v2462
        %v2542 = vunpack.c.h.b16 %v2462
        %v2543 = vunpack.c.l.b16 %v2463
        %v2544 = vunpack.c.h.b16 %v2463
        %v2545 = vunpack.c.l.b16 %v2464
        %v2546 = vunpack.c.h.b16 %v2464
        %v2547 = vunpack.c.l.b16 %v2465
        %v2548 = vunpack.c.h.b16 %v2465
        %v2549 = vunpack.c.l.b16 %v2466
        %v2550 = vunpack.c.h.b16 %v2466
        %v2551 = vunpack.c.l.b16 %v2467
        %v2552 = vunpack.c.h.b16 %v2467
        %v2553 = vunpack.c.l.b16 %v2468
        %v2554 = vunpack.c.h.b16 %v2468
        %v2555 = vunpack.c.l.b16 %v2469
        %v2556 = vunpack.c.h.b16 %v2469
        %v2557 = vunpack.c.l.b16 %v2470
        %v2558 = vunpack.c.h.b16 %v2470
        %v2559 = vunpack.c.l.b16 %v2471
        %v2560 = vunpack.c.h.b16 %v2471
        %v2561 = vunpack.c.l.b16 %v2472
        %v2562 = vunpack.c.h.b16 %v2472
        %v2563 = vunpack.c.l.b16 %v2473
        %v2564 = vunpack.c.h.b16 %v2473
        %v2565 = vunpack.c.l.b16 %v2474
        %v2566 = vunpack.c.h.b16 %v2474
        %v2567 = vunpack.c.l.b16 %v2475
        %v2568 = vunpack.c.h.b16 %v2475
        %v2569 = vunpack.c.l.b16 %v2476
        %v2570 = vunpack.c.h.b16 %v2476
        %v2571 = vunpack.c.l.b16 %v2477
        %v2572 = vunpack.c.h.b16 %v2477
        %v2573 = vunpack.c.l.b16 %v2478
        %v2574 = vunpack.c.h.b16 %v2478
        %v2575 = vunpack.c.l.b16 %v2479
        %v2576 = vunpack.c.h.b16 %v2479
        %v2577 = vunpack.c.l.b16 %v2480
        %v2578 = vunpack.c.h.b16 %v2480
        %v2579 = vunpack.c.l.b16 %v2481
        %v2580 = vunpack.c.h.b16 %v2481
        %v2581 = vunpack.c.l.b16 %v2482
        %v2582 = vunpack.c.h.b16 %v2482
        %v2583 = vunpack.c.l.b16 %v2483
        %v2584 = vunpack.c.h.b16 %v2483
        %v2585 = vunpack.c.l.b16 %v2484
        %v2586 = vunpack.c.h.b16 %v2484
        %v2587 = vunpack.c.l.b16 %v2485
        %v2588 = vunpack.c.h.b16 %v2485
        %v2589 = vunpack.c.l.b16 %v2486
        %v2590 = vunpack.c.h.b16 %v2486
        %v2591 = vunpack.c.l.b16 %v2487
        %v2592 = vunpack.c.h.b16 %v2487
        %v2593 = vunpack.c.l.b16 %v2488
        %v2594 = vunpack.c.h.b16 %v2488
        %v2595 = vunpack.c.l.b16 %v2489
        %v2596 = vunpack.c.h.b16 %v2489
        %v2597 = vunpack.c.l.b16 %v2490
        %v2598 = vunpack.c.h.b16 %v2490
        %v2599 = vpack.c.b16 %v2537, %v2535
        %v2600 = vpack.c.b16 %v2538, %v2536
        %v2601 = vpack.c.b16 %v2541, %v2539
        %v2602 = vpack.c.b16 %v2542, %v2540
        %v2603 = vpack.c.b16 %v2545, %v2543
        %v2604 = vpack.c.b16 %v2546, %v2544
        %v2605 = vpack.c.b16 %v2549, %v2547
        %v2606 = vpack.c.b16 %v2550, %v2548
        %v2607 = vpack.c.b16 %v2553, %v2551
        %v2608 = vpack.c.b16 %v2554, %v2552
        %v2609 = vpack.c.b16 %v2557, %v2555
        %v2610 = vpack.c.b16 %v2558, %v2556
        %v2611 = vpack.c.b16 %v2561, %v2559
        %v2612 = vpack.c.b16 %v2562, %v2560
        %v2613 = vpack.c.b16 %v2565, %v2563
        %v2614 = vpack.c.b16 %v2566, %v2564
        %v2615 = vpack.c.b16 %v2569, %v2567
        %v2616 = vpack.c.b16 %v2570, %v2568
        %v2617 = vpack.c.b16 %v2573, %v2571
        %v2618 = vpack.c.b16 %v2574, %v2572
        %v2619 = vpack.c.b16 %v2577, %v2575
        %v2620 = vpack.c.b16 %v2578, %v2576
        %v2621 = vpack.c.b16 %v2581, %v2579
        %v2622 = vpack.c.b16 %v2582, %v2580
        %v2623 = vpack.c.b16 %v2585, %v2583
        %v2624 = vpack.c.b16 %v2586, %v2584
        %v2625 = vpack.c.b16 %v2589, %v2587
        %v2626 = vpack.c.b16 %v2590, %v2588
        %v2627 = vpack.c.b16 %v2593, %v2591
        %v2628 = vpack.c.b16 %v2594, %v2592
        %v2629 = vpack.c.b16 %v2597, %v2595
        %v2630 = vpack.c.b16 %v2598, %v2596
        %2663 = vmatprep.subr.bf16.mxu0 %v2600
        %2664 = vmatpush1.bf16.msra.mxu0 %v2599
        %2665 = vmatprep.subr.bf16.mxu0 %v2602
        %2666 = vmatpush1.bf16.msra.mxu0 %v2601
        %2667 = vmatprep.subr.bf16.mxu0 %v2604
        %2668 = vmatpush1.bf16.msra.mxu0 %v2603
        %2669 = vmatprep.subr.bf16.mxu0 %v2606
        %2670 = vmatpush1.bf16.msra.mxu0 %v2605
        %2671 = vmatprep.subr.bf16.mxu0 %v2608
        %2672 = vmatpush1.bf16.msra.mxu0 %v2607
        %2673 = vmatprep.subr.bf16.mxu0 %v2610
        %2674 = vmatpush1.bf16.msra.mxu0 %v2609
        %2675 = vmatprep.subr.bf16.mxu0 %v2612
        %2676 = vmatpush1.bf16.msra.mxu0 %v2611
        %2677 = vmatprep.subr.bf16.mxu0 %v2614
        %2678 = vmatpush1.bf16.msra.mxu0 %v2613
        %2679 = vmatprep.subr.bf16.mxu0 %v2616
        %2680 = vmatpush1.bf16.msra.mxu0 %v2615
        %2681 = vmatprep.subr.bf16.mxu0 %v2618
        %2682 = vmatpush1.bf16.msra.mxu0 %v2617
        %2683 = vmatprep.subr.bf16.mxu0 %v2620
        %2684 = vmatpush1.bf16.msra.mxu0 %v2619
        %2685 = vmatprep.subr.bf16.mxu0 %v2622
        %2686 = vmatpush1.bf16.msra.mxu0 %v2621
        %2687 = vmatprep.subr.bf16.mxu0 %v2624
        %2688 = vmatpush1.bf16.msra.mxu0 %v2623
        %2689 = vmatprep.subr.bf16.mxu0 %v2626
        %2690 = vmatpush1.bf16.msra.mxu0 %v2625
        %2691 = vmatprep.subr.bf16.mxu0 %v2628
        %2692 = vmatpush1.bf16.msra.mxu0 %v2627
        %2693 = vmatprep.subr.bf16.mxu0 %v2630
        %2694 = vmatpush1.bf16.msra.mxu0 %v2629
        %2695 = vmatprep.mubr.bf16.mxu0 %v2428
        %2696 = vmatmul.mubr.bf16.gmra.mrb[0].mxu0 %v2427
        %v2697 = vpop.f32.mrb[0].mxu0
        %v2698 = vadd.f32 %v2496, %v2697
        %v2699 = vpop.f32.mrb[0].mxu0
        %v2700 = vadd.f32 %v2500, %v2699
        %v2701 = vpop.f32.mrb[0].mxu0
        %v2702 = vadd.f32 %v2496, %v2701
        %v2703 = vpop.f32.mrb[0].mxu0
        %v2704 = vadd.f32 %v2500, %v2703
        %2705 = vmatprep.mubr.bf16.mxu0 %v2430
        %2706 = vmatmul.mubr.bf16.gmra.mrb[0].mxu0 %v2429
        %v2707 = vpop.f32.mrb[0].mxu0
        %v2708 = vadd.f32 %v2496, %v2707
        %v2709 = vpop.f32.mrb[0].mxu0
        %v2710 = vadd.f32 %v2500, %v2709
        %v2711 = vpop.f32.mrb[0].mxu0
        %v2712 = vadd.f32 %v2496, %v2711
        %v2713 = vpop.f32.mrb[0].mxu0
        %v2714 = vadd.f32 %v2500, %v2713
        %2715 = vmatprep.mubr.bf16.mxu0 %v2432
        %2716 = vmatmul.mubr.bf16.gmra.mrb[0].mxu0 %v2431
        %v2717 = vpop.f32.mrb[0].mxu0
        %v2718 = vadd.f32 %v2496, %v2717
        %v2719 = vpop.f32.mrb[0].mxu0
        %v2720 = vadd.f32 %v2500, %v2719
        %v2721 = vpop.f32.mrb[0].mxu0
        %v2722 = vadd.f32 %v2496, %v2721
        %v2723 = vpop.f32.mrb[0].mxu0
        %v2724 = vadd.f32 %v2500, %v2723
        %2725 = vmatprep.mubr.bf16.mxu0 %v2434
        %2726 = vmatmul.mubr.bf16.gmra.mrb[0].mxu0 %v2433
        %v2727 = vpop.f32.mrb[0].mxu0
        %v2728 = vadd.f32 %v2496, %v2727
        %v2729 = vpop.f32.mrb[0].mxu0
        %v2730 = vadd.f32 %v2500, %v2729
        %v2731 = vpop.f32.mrb[0].mxu0
        %v2732 = vadd.f32 %v2496, %v2731
        %v2733 = vpop.f32.mrb[0].mxu0
        %v2734 = vadd.f32 %v2500, %v2733
        %2735 = vmatprep.mubr.bf16.mxu0 %v2436
        %2736 = vmatmul.mubr.bf16.gmra.mrb[0].mxu0 %v2435
        %v2737 = vpop.f32.mrb[0].mxu0
        %v2738 = vadd.f32 %v2496, %v2737
        %v2739 = vpop.f32.mrb[0].mxu0
        %v2740 = vadd.f32 %v2500, %v2739
        %v2741 = vpop.f32.mrb[0].mxu0
        %v2742 = vadd.f32 %v2496, %v2741
        %v2743 = vpop.f32.mrb[0].mxu0
        %v2744 = vadd.f32 %v2500, %v2743
        %2745 = vmatprep.mubr.bf16.mxu0 %v2438
        %2746 = vmatmul.mubr.bf16.gmra.mrb[0].mxu0 %v2437
        %v2747 = vpop.f32.mrb[0].mxu0
        %v2748 = vadd.f32 %v2496, %v2747
        %v2749 = vpop.f32.mrb[0].mxu0
        %v2750 = vadd.f32 %v2500, %v2749
        %v2751 = vpop.f32.mrb[0].mxu0
        %v2752 = vadd.f32 %v2496, %v2751
        %v2753 = vpop.f32.mrb[0].mxu0
        %v2754 = vadd.f32 %v2500, %v2753
        %2755 = vmatprep.mubr.bf16.mxu0 %v2440
        %2756 = vmatmul.mubr.bf16.gmra.mrb[0].mxu0 %v2439
        %v2757 = vpop.f32.mrb[0].mxu0
        %v2758 = vadd.f32 %v2496, %v2757
        %v2759 = vpop.f32.mrb[0].mxu0
        %v2760 = vadd.f32 %v2500, %v2759
        %v2761 = vpop.f32.mrb[0].mxu0
        %v2762 = vadd.f32 %v2496, %v2761
        %v2763 = vpop.f32.mrb[0].mxu0
        %v2764 = vadd.f32 %v2500, %v2763
        %2765 = vmatprep.mubr.bf16.mxu0 %v2442
        %2766 = vmatmul.mubr.bf16.gmra.mrb[0].mxu0 %v2441
        %v2767 = vpop.f32.mrb[0].mxu0
        %v2768 = vadd.f32 %v2496, %v2767
        %v2769 = vpop.f32.mrb[0].mxu0
        %v2770 = vadd.f32 %v2500, %v2769
        %v2771 = vpop.f32.mrb[0].mxu0
        %v2772 = vadd.f32 %v2496, %v2771
        %v2773 = vpop.f32.mrb[0].mxu0
        %v2774 = vadd.f32 %v2500, %v2773
        %2775 = vmatprep.mubr.bf16.mxu0 %v2444
        %2776 = vmatmul.mubr.bf16.gmra.mrb[0].mxu0 %v2443
        %v2777 = vpop.f32.mrb[0].mxu0
        %v2778 = vadd.f32 %v2496, %v2777
        %v2779 = vpop.f32.mrb[0].mxu0
        %v2780 = vadd.f32 %v2500, %v2779
        %v2781 = vpop.f32.mrb[0].mxu0
        %v2782 = vadd.f32 %v2496, %v2781
        %v2783 = vpop.f32.mrb[0].mxu0
        %v2784 = vadd.f32 %v2500, %v2783
        %2785 = vmatprep.mubr.bf16.mxu0 %v2446
        %2786 = vmatmul.mubr.bf16.gmra.mrb[0].mxu0 %v2445
        %v2787 = vpop.f32.mrb[0].mxu0
        %v2788 = vadd.f32 %v2496, %v2787
        %v2789 = vpop.f32.mrb[0].mxu0
        %v2790 = vadd.f32 %v2500, %v2789
        %v2791 = vpop.f32.mrb[0].mxu0
        %v2792 = vadd.f32 %v2496, %v2791
        %v2793 = vpop.f32.mrb[0].mxu0
        %v2794 = vadd.f32 %v2500, %v2793
        %2795 = vmatprep.mubr.bf16.mxu0 %v2448
        %2796 = vmatmul.mubr.bf16.gmra.mrb[0].mxu0 %v2447
        %v2797 = vpop.f32.mrb[0].mxu0
        %v2798 = vadd.f32 %v2496, %v2797
        %v2799 = vpop.f32.mrb[0].mxu0
        %v2800 = vadd.f32 %v2500, %v2799
        %v2801 = vpop.f32.mrb[0].mxu0
        %v2802 = vadd.f32 %v2496, %v2801
        %v2803 = vpop.f32.mrb[0].mxu0
        %v2804 = vadd.f32 %v2500, %v2803
        %2805 = vmatprep.mubr.bf16.mxu0 %v2450
        %2806 = vmatmul.mubr.bf16.gmra.mrb[0].mxu0 %v2449
        %v2807 = vpop.f32.mrb[0].mxu0
        %v2808 = vadd.f32 %v2496, %v2807
        %v2809 = vpop.f32.mrb[0].mxu0
        %v2810 = vadd.f32 %v2500, %v2809
        %v2811 = vpop.f32.mrb[0].mxu0
        %v2812 = vadd.f32 %v2496, %v2811
        %v2813 = vpop.f32.mrb[0].mxu0
        %v2814 = vadd.f32 %v2500, %v2813
        %2815 = vmatprep.mubr.bf16.mxu0 %v2452
        %2816 = vmatmul.mubr.bf16.gmra.mrb[0].mxu0 %v2451
        %v2817 = vpop.f32.mrb[0].mxu0
        %v2818 = vadd.f32 %v2496, %v2817
        %v2819 = vpop.f32.mrb[0].mxu0
        %v2820 = vadd.f32 %v2500, %v2819
        %v2821 = vpop.f32.mrb[0].mxu0
        %v2822 = vadd.f32 %v2496, %v2821
        %v2823 = vpop.f32.mrb[0].mxu0
        %v2824 = vadd.f32 %v2500, %v2823
        %2825 = vmatprep.mubr.bf16.mxu0 %v2454
        %2826 = vmatmul.mubr.bf16.gmra.mrb[0].mxu0 %v2453
        %v2827 = vpop.f32.mrb[0].mxu0
        %v2828 = vadd.f32 %v2496, %v2827
        %v2829 = vpop.f32.mrb[0].mxu0
        %v2830 = vadd.f32 %v2500, %v2829
        %v2831 = vpop.f32.mrb[0].mxu0
        %v2832 = vadd.f32 %v2496, %v2831
        %v2833 = vpop.f32.mrb[0].mxu0
        %v2834 = vadd.f32 %v2500, %v2833
        %2835 = vmatprep.mubr.bf16.mxu0 %v2456
        %2836 = vmatmul.mubr.bf16.gmra.mrb[0].mxu0 %v2455
        %v2837 = vpop.f32.mrb[0].mxu0
        %v2838 = vadd.f32 %v2496, %v2837
        %v2839 = vpop.f32.mrb[0].mxu0
        %v2840 = vadd.f32 %v2500, %v2839
        %v2841 = vpop.f32.mrb[0].mxu0
        %v2842 = vadd.f32 %v2496, %v2841
        %v2843 = vpop.f32.mrb[0].mxu0
        %v2844 = vadd.f32 %v2500, %v2843
        %2845 = vmatprep.mubr.bf16.mxu0 %v2458
        %2846 = vmatmul.mubr.bf16.gmra.mrb[0].mxu0 %v2457
        %v2847 = vpop.f32.mrb[0].mxu0
        %v2848 = vadd.f32 %v2496, %v2847
        %v2849 = vpop.f32.mrb[0].mxu0
        %v2850 = vadd.f32 %v2500, %v2849
        %v2851 = vpop.f32.mrb[0].mxu0
        %v2852 = vadd.f32 %v2496, %v2851
        %v2853 = vpop.f32.mrb[0].mxu0
        %v2854 = vadd.f32 %v2500, %v2853
        %2855 = vdwg.mxu0
        %v2856 = vmax.f32 %v2698, 0.0
        %v2857 = vmax.f32 %v2700, 0.0
        %v2858 = vmax.f32 %v2702, 0.0
        %v2859 = vmax.f32 %v2704, 0.0
        %v2860 = vmax.f32 %v2708, 0.0
        %v2861 = vmax.f32 %v2710, 0.0
        %v2862 = vmax.f32 %v2712, 0.0
        %v2863 = vmax.f32 %v2714, 0.0
        %v2864 = vmax.f32 %v2718, 0.0
        %v2865 = vmax.f32 %v2720, 0.0
        %v2866 = vmax.f32 %v2722, 0.0
        %v2867 = vmax.f32 %v2724, 0.0
        %v2868 = vmax.f32 %v2728, 0.0
        %v2869 = vmax.f32 %v2730, 0.0
        %v2870 = vmax.f32 %v2732, 0.0
        %v2871 = vmax.f32 %v2734, 0.0
        %v2872 = vmax.f32 %v2738, 0.0
        %v2873 = vmax.f32 %v2740, 0.0
        %v2874 = vmax.f32 %v2742, 0.0
        %v2875 = vmax.f32 %v2744, 0.0
        %v2876 = vmax.f32 %v2748, 0.0
        %v2877 = vmax.f32 %v2750, 0.0
        %v2878 = vmax.f32 %v2752, 0.0
        %v2879 = vmax.f32 %v2754, 0.0
        %v2880 = vmax.f32 %v2758, 0.0
        %v2881 = vmax.f32 %v2760, 0.0
        %v2882 = vmax.f32 %v2762, 0.0
        %v2883 = vmax.f32 %v2764, 0.0
        %v2884 = vmax.f32 %v2768, 0.0
        %v2885 = vmax.f32 %v2770, 0.0
        %v2886 = vmax.f32 %v2772, 0.0
        %v2887 = vmax.f32 %v2774, 0.0
        %v2888 = vmax.f32 %v2778, 0.0
        %v2889 = vmax.f32 %v2780, 0.0
        %v2890 = vmax.f32 %v2782, 0.0
        %v2891 = vmax.f32 %v2784, 0.0
        %v2892 = vmax.f32 %v2788, 0.0
        %v2893 = vmax.f32 %v2790, 0.0
        %v2894 = vmax.f32 %v2792, 0.0
        %v2895 = vmax.f32 %v2794, 0.0
        %v2896 = vmax.f32 %v2798, 0.0
        %v2897 = vmax.f32 %v2800, 0.0
        %v2898 = vmax.f32 %v2802, 0.0
        %v2899 = vmax.f32 %v2804, 0.0
        %v2900 = vmax.f32 %v2808, 0.0
        %v2901 = vmax.f32 %v2810, 0.0
        %v2902 = vmax.f32 %v2812, 0.0
        %v2903 = vmax.f32 %v2814, 0.0
        %v2904 = vmax.f32 %v2818, 0.0
        %v2905 = vmax.f32 %v2820, 0.0
        %v2906 = vmax.f32 %v2822, 0.0
        %v2907 = vmax.f32 %v2824, 0.0
        %v2908 = vmax.f32 %v2828, 0.0
        %v2909 = vmax.f32 %v2830, 0.0
        %v2910 = vmax.f32 %v2832, 0.0
        %v2911 = vmax.f32 %v2834, 0.0
        %v2912 = vmax.f32 %v2838, 0.0
        %v2913 = vmax.f32 %v2840, 0.0
        %v2914 = vmax.f32 %v2842, 0.0
        %v2915 = vmax.f32 %v2844, 0.0
        %v2916 = vmax.f32 %v2848, 0.0
        %v2917 = vmax.f32 %v2850, 0.0
        %v2918 = vmax.f32 %v2852, 0.0
        %v2919 = vmax.f32 %v2854, 0.0
        %v2920 = vpack.c.bf16 %v2858, %v2856
        %v2921 = vpack.c.bf16 %v2859, %v2857
        %v2922 = vpack.c.bf16 %v2862, %v2860
        %v2923 = vpack.c.bf16 %v2863, %v2861
        %v2924 = vpack.c.bf16 %v2866, %v2864
        %v2925 = vpack.c.bf16 %v2867, %v2865
        %v2926 = vpack.c.bf16 %v2870, %v2868
        %v2927 = vpack.c.bf16 %v2871, %v2869
        %v2928 = vpack.c.bf16 %v2874, %v2872
        %v2929 = vpack.c.bf16 %v2875, %v2873
        %v2930 = vpack.c.bf16 %v2878, %v2876
        %v2931 = vpack.c.bf16 %v2879, %v2877
        %v2932 = vpack.c.bf16 %v2882, %v2880
        %v2933 = vpack.c.bf16 %v2883, %v2881
        %v2934 = vpack.c.bf16 %v2886, %v2884
        %v2935 = vpack.c.bf16 %v2887, %v2885
        %v2936 = vpack.c.bf16 %v2890, %v2888
        %v2937 = vpack.c.bf16 %v2891, %v2889
        %v2938 = vpack.c.bf16 %v2894, %v2892
        %v2939 = vpack.c.bf16 %v2895, %v2893
        %v2940 = vpack.c.bf16 %v2898, %v2896
        %v2941 = vpack.c.bf16 %v2899, %v2897
        %v2942 = vpack.c.bf16 %v2902, %v2900
        %v2943 = vpack.c.bf16 %v2903, %v2901
        %v2944 = vpack.c.bf16 %v2906, %v2904
        %v2945 = vpack.c.bf16 %v2907, %v2905
        %v2946 = vpack.c.bf16 %v2910, %v2908
        %v2947 = vpack.c.bf16 %v2911, %v2909
        %v2948 = vpack.c.bf16 %v2914, %v2912
        %v2949 = vpack.c.bf16 %v2915, %v2913
        %v2950 = vpack.c.bf16 %v2918, %v2916
        %v2951 = vpack.c.bf16 %v2919, %v2917
        %v2952 = vld [vmem:[#allocation7] sm:$0xff]
        %v2953 = vld [vmem:[#allocation7 + $0x8] sm:$0xff]
        %v2954 = vld [vmem:[#allocation7 + $0x10] sm:$0xff]
        %v2955 = vld [vmem:[#allocation7 + $0x18] sm:$0xff]
        %v2956 = vld [vmem:[#allocation7 + $0x20] sm:$0xff]
        %v2957 = vld [vmem:[#allocation7 + $0x28] sm:$0xff]
        %v2958 = vld [vmem:[#allocation7 + $0x30] sm:$0xff]
        %v2959 = vld [vmem:[#allocation7 + $0x38] sm:$0xff]
        %v2960 = vld [vmem:[#allocation7 + $0x40] sm:$0xff]
        %v2961 = vld [vmem:[#allocation7 + $0x48] sm:$0xff]
        %v2962 = vld [vmem:[#allocation7 + $0x50] sm:$0xff]
        %v2963 = vld [vmem:[#allocation7 + $0x58] sm:$0xff]
        %v2964 = vld [vmem:[#allocation7 + $0x60] sm:$0xff]
        %v2965 = vld [vmem:[#allocation7 + $0x68] sm:$0xff]
        %v2966 = vld [vmem:[#allocation7 + $0x70] sm:$0xff]
        %v2967 = vld [vmem:[#allocation7 + $0x78] sm:$0xff]
        %v2968 = vld [vmem:[#allocation7 + $0x80] sm:$0xff]
        %v2969 = vld [vmem:[#allocation7 + $0x88] sm:$0xff]
        %v2970 = vld [vmem:[#allocation7 + $0x90] sm:$0xff]
        %v2971 = vld [vmem:[#allocation7 + $0x98] sm:$0xff]
        %v2972 = vld [vmem:[#allocation7 + $0xa0] sm:$0xff]
        %v2973 = vld [vmem:[#allocation7 + $0xa8] sm:$0xff]
        %v2974 = vld [vmem:[#allocation7 + $0xb0] sm:$0xff]
        %v2975 = vld [vmem:[#allocation7 + $0xb8] sm:$0xff]
        %v2976 = vld [vmem:[#allocation7 + $0xc0] sm:$0xff]
        %v2977 = vld [vmem:[#allocation7 + $0xc8] sm:$0xff]
        %v2978 = vld [vmem:[#allocation7 + $0xd0] sm:$0xff]
        %v2979 = vld [vmem:[#allocation7 + $0xd8] sm:$0xff]
        %v2980 = vld [vmem:[#allocation7 + $0xe0] sm:$0xff]
        %v2981 = vld [vmem:[#allocation7 + $0xe8] sm:$0xff]
        %v2982 = vld [vmem:[#allocation7 + $0xf0] sm:$0xff]
        %v2983 = vld [vmem:[#allocation7 + $0xf8] sm:$0xff]
        %v2984 = vld [vmem:[%s12] sm:$0x3]
        %v2986 = vlaneseq
        %v2987 = vshrl.u32 %v2986, 7
        %v2988 = vsub.s32 0, %v2987
        %v2989 = vrot.slane %v2984, %v2988
        %v2990 = vlaneseq
        %v2991 = vshrl.u32 %v2990, 7
        %v2992 = vsub.s32 1, %v2991
        %v2993 = vrot.slane %v2984, %v2992
        %v3028 = vunpack.c.l.b16 %v2952
        %v3029 = vunpack.c.h.b16 %v2952
        %v3030 = vunpack.c.l.b16 %v2953
        %v3031 = vunpack.c.h.b16 %v2953
        %v3032 = vunpack.c.l.b16 %v2954
        %v3033 = vunpack.c.h.b16 %v2954
        %v3034 = vunpack.c.l.b16 %v2955
        %v3035 = vunpack.c.h.b16 %v2955
        %v3036 = vunpack.c.l.b16 %v2956
        %v3037 = vunpack.c.h.b16 %v2956
        %v3038 = vunpack.c.l.b16 %v2957
        %v3039 = vunpack.c.h.b16 %v2957
        %v3040 = vunpack.c.l.b16 %v2958
        %v3041 = vunpack.c.h.b16 %v2958
        %v3042 = vunpack.c.l.b16 %v2959
        %v3043 = vunpack.c.h.b16 %v2959
        %v3044 = vunpack.c.l.b16 %v2960
        %v3045 = vunpack.c.h.b16 %v2960
        %v3046 = vunpack.c.l.b16 %v2961
        %v3047 = vunpack.c.h.b16 %v2961
        %v3048 = vunpack.c.l.b16 %v2962
        %v3049 = vunpack.c.h.b16 %v2962
        %v3050 = vunpack.c.l.b16 %v2963
        %v3051 = vunpack.c.h.b16 %v2963
        %v3052 = vunpack.c.l.b16 %v2964
        %v3053 = vunpack.c.h.b16 %v2964
        %v3054 = vunpack.c.l.b16 %v2965
        %v3055 = vunpack.c.h.b16 %v2965
        %v3056 = vunpack.c.l.b16 %v2966
        %v3057 = vunpack.c.h.b16 %v2966
        %v3058 = vunpack.c.l.b16 %v2967
        %v3059 = vunpack.c.h.b16 %v2967
        %v3060 = vunpack.c.l.b16 %v2968
        %v3061 = vunpack.c.h.b16 %v2968
        %v3062 = vunpack.c.l.b16 %v2969
        %v3063 = vunpack.c.h.b16 %v2969
        %v3064 = vunpack.c.l.b16 %v2970
        %v3065 = vunpack.c.h.b16 %v2970
        %v3066 = vunpack.c.l.b16 %v2971
        %v3067 = vunpack.c.h.b16 %v2971
        %v3068 = vunpack.c.l.b16 %v2972
        %v3069 = vunpack.c.h.b16 %v2972
        %v3070 = vunpack.c.l.b16 %v2973
        %v3071 = vunpack.c.h.b16 %v2973
        %v3072 = vunpack.c.l.b16 %v2974
        %v3073 = vunpack.c.h.b16 %v2974
        %v3074 = vunpack.c.l.b16 %v2975
        %v3075 = vunpack.c.h.b16 %v2975
        %v3076 = vunpack.c.l.b16 %v2976
        %v3077 = vunpack.c.h.b16 %v2976
        %v3078 = vunpack.c.l.b16 %v2977
        %v3079 = vunpack.c.h.b16 %v2977
        %v3080 = vunpack.c.l.b16 %v2978
        %v3081 = vunpack.c.h.b16 %v2978
        %v3082 = vunpack.c.l.b16 %v2979
        %v3083 = vunpack.c.h.b16 %v2979
        %v3084 = vunpack.c.l.b16 %v2980
        %v3085 = vunpack.c.h.b16 %v2980
        %v3086 = vunpack.c.l.b16 %v2981
        %v3087 = vunpack.c.h.b16 %v2981
        %v3088 = vunpack.c.l.b16 %v2982
        %v3089 = vunpack.c.h.b16 %v2982
        %v3090 = vunpack.c.l.b16 %v2983
        %v3091 = vunpack.c.h.b16 %v2983
        %v3092 = vpack.c.b16 %v3030, %v3028
        %v3093 = vpack.c.b16 %v3031, %v3029
        %v3094 = vpack.c.b16 %v3034, %v3032
        %v3095 = vpack.c.b16 %v3035, %v3033
        %v3096 = vpack.c.b16 %v3038, %v3036
        %v3097 = vpack.c.b16 %v3039, %v3037
        %v3098 = vpack.c.b16 %v3042, %v3040
        %v3099 = vpack.c.b16 %v3043, %v3041
        %v3100 = vpack.c.b16 %v3046, %v3044
        %v3101 = vpack.c.b16 %v3047, %v3045
        %v3102 = vpack.c.b16 %v3050, %v3048
        %v3103 = vpack.c.b16 %v3051, %v3049
        %v3104 = vpack.c.b16 %v3054, %v3052
        %v3105 = vpack.c.b16 %v3055, %v3053
        %v3106 = vpack.c.b16 %v3058, %v3056
        %v3107 = vpack.c.b16 %v3059, %v3057
        %v3108 = vpack.c.b16 %v3062, %v3060
        %v3109 = vpack.c.b16 %v3063, %v3061
        %v3110 = vpack.c.b16 %v3066, %v3064
        %v3111 = vpack.c.b16 %v3067, %v3065
        %v3112 = vpack.c.b16 %v3070, %v3068
        %v3113 = vpack.c.b16 %v3071, %v3069
        %v3114 = vpack.c.b16 %v3074, %v3072
        %v3115 = vpack.c.b16 %v3075, %v3073
        %v3116 = vpack.c.b16 %v3078, %v3076
        %v3117 = vpack.c.b16 %v3079, %v3077
        %v3118 = vpack.c.b16 %v3082, %v3080
        %v3119 = vpack.c.b16 %v3083, %v3081
        %v3120 = vpack.c.b16 %v3086, %v3084
        %v3121 = vpack.c.b16 %v3087, %v3085
        %v3122 = vpack.c.b16 %v3090, %v3088
        %v3123 = vpack.c.b16 %v3091, %v3089
        %3156 = vmatprep.subr.bf16.mxu0 %v3093
        %3157 = vmatpush1.bf16.msra.mxu0 %v3092
        %3158 = vmatprep.subr.bf16.mxu0 %v3095
        %3159 = vmatpush1.bf16.msra.mxu0 %v3094
        %3160 = vmatprep.subr.bf16.mxu0 %v3097
        %3161 = vmatpush1.bf16.msra.mxu0 %v3096
        %3162 = vmatprep.subr.bf16.mxu0 %v3099
        %3163 = vmatpush1.bf16.msra.mxu0 %v3098
        %3164 = vmatprep.subr.bf16.mxu0 %v3101
        %3165 = vmatpush1.bf16.msra.mxu0 %v3100
        %3166 = vmatprep.subr.bf16.mxu0 %v3103
        %3167 = vmatpush1.bf16.msra.mxu0 %v3102
        %3168 = vmatprep.subr.bf16.mxu0 %v3105
        %3169 = vmatpush1.bf16.msra.mxu0 %v3104
        %3170 = vmatprep.subr.bf16.mxu0 %v3107
        %3171 = vmatpush1.bf16.msra.mxu0 %v3106
        %3172 = vmatprep.subr.bf16.mxu0 %v3109
        %3173 = vmatpush1.bf16.msra.mxu0 %v3108
        %3174 = vmatprep.subr.bf16.mxu0 %v3111
        %3175 = vmatpush1.bf16.msra.mxu0 %v3110
        %3176 = vmatprep.subr.bf16.mxu0 %v3113
        %3177 = vmatpush1.bf16.msra.mxu0 %v3112
        %3178 = vmatprep.subr.bf16.mxu0 %v3115
        %3179 = vmatpush1.bf16.msra.mxu0 %v3114
        %3180 = vmatprep.subr.bf16.mxu0 %v3117
        %3181 = vmatpush1.bf16.msra.mxu0 %v3116
        %3182 = vmatprep.subr.bf16.mxu0 %v3119
        %3183 = vmatpush1.bf16.msra.mxu0 %v3118
        %3184 = vmatprep.subr.bf16.mxu0 %v3121
        %3185 = vmatpush1.bf16.msra.mxu0 %v3120
        %3186 = vmatprep.subr.bf16.mxu0 %v3123
        %3187 = vmatpush1.bf16.msra.mxu0 %v3122
        %3188 = vmatprep.mubr.bf16.mxu0 %v2921
        %3189 = vmatmul.mubr.bf16.gmra.mrb[0].mxu0 %v2920
        %v3190 = vpop.f32.mrb[0].mxu0
        %v3191 = vadd.f32 %v2989, %v3190
        %v3192 = vpop.f32.mrb[0].mxu0
        %v3193 = vadd.f32 %v2993, %v3192
        %v3194 = vpop.f32.mrb[0].mxu0
        %v3195 = vadd.f32 %v2989, %v3194
        %v3196 = vpop.f32.mrb[0].mxu0
        %v3197 = vadd.f32 %v2993, %v3196
        %3198 = vmatprep.mubr.bf16.mxu0 %v2923
        %3199 = vmatmul.mubr.bf16.gmra.mrb[0].mxu0 %v2922
        %v3200 = vpop.f32.mrb[0].mxu0
        %v3201 = vadd.f32 %v2989, %v3200
        %v3202 = vpop.f32.mrb[0].mxu0
        %v3203 = vadd.f32 %v2993, %v3202
        %v3204 = vpop.f32.mrb[0].mxu0
        %v3205 = vadd.f32 %v2989, %v3204
        %v3206 = vpop.f32.mrb[0].mxu0
        %v3207 = vadd.f32 %v2993, %v3206
        %3208 = vmatprep.mubr.bf16.mxu0 %v2925
        %3209 = vmatmul.mubr.bf16.gmra.mrb[0].mxu0 %v2924
        %v3210 = vpop.f32.mrb[0].mxu0
        %v3211 = vadd.f32 %v2989, %v3210
        %v3212 = vpop.f32.mrb[0].mxu0
        %v3213 = vadd.f32 %v2993, %v3212
        %v3214 = vpop.f32.mrb[0].mxu0
        %v3215 = vadd.f32 %v2989, %v3214
        %v3216 = vpop.f32.mrb[0].mxu0
        %v3217 = vadd.f32 %v2993, %v3216
        %3218 = vmatprep.mubr.bf16.mxu0 %v2927
        %3219 = vmatmul.mubr.bf16.gmra.mrb[0].mxu0 %v2926
        %v3220 = vpop.f32.mrb[0].mxu0
        %v3221 = vadd.f32 %v2989, %v3220
        %v3222 = vpop.f32.mrb[0].mxu0
        %v3223 = vadd.f32 %v2993, %v3222
        %v3224 = vpop.f32.mrb[0].mxu0
        %v3225 = vadd.f32 %v2989, %v3224
        %v3226 = vpop.f32.mrb[0].mxu0
        %v3227 = vadd.f32 %v2993, %v3226
        %3228 = vmatprep.mubr.bf16.mxu0 %v2929
        %3229 = vmatmul.mubr.bf16.gmra.mrb[0].mxu0 %v2928
        %v3230 = vpop.f32.mrb[0].mxu0
        %v3231 = vadd.f32 %v2989, %v3230
        %v3232 = vpop.f32.mrb[0].mxu0
        %v3233 = vadd.f32 %v2993, %v3232
        %v3234 = vpop.f32.mrb[0].mxu0
        %v3235 = vadd.f32 %v2989, %v3234
        %v3236 = vpop.f32.mrb[0].mxu0
        %v3237 = vadd.f32 %v2993, %v3236
        %3238 = vmatprep.mubr.bf16.mxu0 %v2931
        %3239 = vmatmul.mubr.bf16.gmra.mrb[0].mxu0 %v2930
        %v3240 = vpop.f32.mrb[0].mxu0
        %v3241 = vadd.f32 %v2989, %v3240
        %v3242 = vpop.f32.mrb[0].mxu0
        %v3243 = vadd.f32 %v2993, %v3242
        %v3244 = vpop.f32.mrb[0].mxu0
        %v3245 = vadd.f32 %v2989, %v3244
        %v3246 = vpop.f32.mrb[0].mxu0
        %v3247 = vadd.f32 %v2993, %v3246
        %3248 = vmatprep.mubr.bf16.mxu0 %v2933
        %3249 = vmatmul.mubr.bf16.gmra.mrb[0].mxu0 %v2932
        %v3250 = vpop.f32.mrb[0].mxu0
        %v3251 = vadd.f32 %v2989, %v3250
        %v3252 = vpop.f32.mrb[0].mxu0
        %v3253 = vadd.f32 %v2993, %v3252
        %v3254 = vpop.f32.mrb[0].mxu0
        %v3255 = vadd.f32 %v2989, %v3254
        %v3256 = vpop.f32.mrb[0].mxu0
        %v3257 = vadd.f32 %v2993, %v3256
        %3258 = vmatprep.mubr.bf16.mxu0 %v2935
        %3259 = vmatmul.mubr.bf16.gmra.mrb[0].mxu0 %v2934
        %v3260 = vpop.f32.mrb[0].mxu0
        %v3261 = vadd.f32 %v2989, %v3260
        %v3262 = vpop.f32.mrb[0].mxu0
        %v3263 = vadd.f32 %v2993, %v3262
        %v3264 = vpop.f32.mrb[0].mxu0
        %v3265 = vadd.f32 %v2989, %v3264
        %v3266 = vpop.f32.mrb[0].mxu0
        %v3267 = vadd.f32 %v2993, %v3266
        %3268 = vmatprep.mubr.bf16.mxu0 %v2937
        %3269 = vmatmul.mubr.bf16.gmra.mrb[0].mxu0 %v2936
        %v3270 = vpop.f32.mrb[0].mxu0
        %v3271 = vadd.f32 %v2989, %v3270
        %v3272 = vpop.f32.mrb[0].mxu0
        %v3273 = vadd.f32 %v2993, %v3272
        %v3274 = vpop.f32.mrb[0].mxu0
        %v3275 = vadd.f32 %v2989, %v3274
        %v3276 = vpop.f32.mrb[0].mxu0
        %v3277 = vadd.f32 %v2993, %v3276
        %3278 = vmatprep.mubr.bf16.mxu0 %v2939
        %3279 = vmatmul.mubr.bf16.gmra.mrb[0].mxu0 %v2938
        %v3280 = vpop.f32.mrb[0].mxu0
        %v3281 = vadd.f32 %v2989, %v3280
        %v3282 = vpop.f32.mrb[0].mxu0
        %v3283 = vadd.f32 %v2993, %v3282
        %v3284 = vpop.f32.mrb[0].mxu0
        %v3285 = vadd.f32 %v2989, %v3284
        %v3286 = vpop.f32.mrb[0].mxu0
        %v3287 = vadd.f32 %v2993, %v3286
        %3288 = vmatprep.mubr.bf16.mxu0 %v2941
        %3289 = vmatmul.mubr.bf16.gmra.mrb[0].mxu0 %v2940
        %v3290 = vpop.f32.mrb[0].mxu0
        %v3291 = vadd.f32 %v2989, %v3290
        %v3292 = vpop.f32.mrb[0].mxu0
        %v3293 = vadd.f32 %v2993, %v3292
        %v3294 = vpop.f32.mrb[0].mxu0
        %v3295 = vadd.f32 %v2989, %v3294
        %v3296 = vpop.f32.mrb[0].mxu0
        %v3297 = vadd.f32 %v2993, %v3296
        %3298 = vmatprep.mubr.bf16.mxu0 %v2943
        %3299 = vmatmul.mubr.bf16.gmra.mrb[0].mxu0 %v2942
        %v3300 = vpop.f32.mrb[0].mxu0
        %v3301 = vadd.f32 %v2989, %v3300
        %v3302 = vpop.f32.mrb[0].mxu0
        %v3303 = vadd.f32 %v2993, %v3302
        %v3304 = vpop.f32.mrb[0].mxu0
        %v3305 = vadd.f32 %v2989, %v3304
        %v3306 = vpop.f32.mrb[0].mxu0
        %v3307 = vadd.f32 %v2993, %v3306
        %3308 = vmatprep.mubr.bf16.mxu0 %v2945
        %3309 = vmatmul.mubr.bf16.gmra.mrb[0].mxu0 %v2944
        %v3310 = vpop.f32.mrb[0].mxu0
        %v3311 = vadd.f32 %v2989, %v3310
        %v3312 = vpop.f32.mrb[0].mxu0
        %v3313 = vadd.f32 %v2993, %v3312
        %v3314 = vpop.f32.mrb[0].mxu0
        %v3315 = vadd.f32 %v2989, %v3314
        %v3316 = vpop.f32.mrb[0].mxu0
        %v3317 = vadd.f32 %v2993, %v3316
        %3318 = vmatprep.mubr.bf16.mxu0 %v2947
        %3319 = vmatmul.mubr.bf16.gmra.mrb[0].mxu0 %v2946
        %v3320 = vpop.f32.mrb[0].mxu0
        %v3321 = vadd.f32 %v2989, %v3320
        %v3322 = vpop.f32.mrb[0].mxu0
        %v3323 = vadd.f32 %v2993, %v3322
        %v3324 = vpop.f32.mrb[0].mxu0
        %v3325 = vadd.f32 %v2989, %v3324
        %v3326 = vpop.f32.mrb[0].mxu0
        %v3327 = vadd.f32 %v2993, %v3326
        %3328 = vmatprep.mubr.bf16.mxu0 %v2949
        %3329 = vmatmul.mubr.bf16.gmra.mrb[0].mxu0 %v2948
        %v3330 = vpop.f32.mrb[0].mxu0
        %v3331 = vadd.f32 %v2989, %v3330
        %v3332 = vpop.f32.mrb[0].mxu0
        %v3333 = vadd.f32 %v2993, %v3332
        %v3334 = vpop.f32.mrb[0].mxu0
        %v3335 = vadd.f32 %v2989, %v3334
        %v3336 = vpop.f32.mrb[0].mxu0
        %v3337 = vadd.f32 %v2993, %v3336
        %3338 = vmatprep.mubr.bf16.mxu0 %v2951
        %3339 = vmatmul.mubr.bf16.gmra.mrb[0].mxu0 %v2950
        %v3340 = vpop.f32.mrb[0].mxu0
        %v3341 = vadd.f32 %v2989, %v3340
        %v3342 = vpop.f32.mrb[0].mxu0
        %v3343 = vadd.f32 %v2993, %v3342
        %v3344 = vpop.f32.mrb[0].mxu0
        %v3345 = vadd.f32 %v2989, %v3344
        %v3346 = vpop.f32.mrb[0].mxu0
        %v3347 = vadd.f32 %v2993, %v3346
        %3348 = vdwg.mxu0
        %v3349 = vmax.f32 %v3191, 0.0
        %v3350 = vmax.f32 %v3193, 0.0
        %v3351 = vmax.f32 %v3195, 0.0
        %v3352 = vmax.f32 %v3197, 0.0
        %v3353 = vmax.f32 %v3201, 0.0
        %v3354 = vmax.f32 %v3203, 0.0
        %v3355 = vmax.f32 %v3205, 0.0
        %v3356 = vmax.f32 %v3207, 0.0
        %v3357 = vmax.f32 %v3211, 0.0
        %v3358 = vmax.f32 %v3213, 0.0
        %v3359 = vmax.f32 %v3215, 0.0
        %v3360 = vmax.f32 %v3217, 0.0
        %v3361 = vmax.f32 %v3221, 0.0
        %v3362 = vmax.f32 %v3223, 0.0
        %v3363 = vmax.f32 %v3225, 0.0
        %v3364 = vmax.f32 %v3227, 0.0
        %v3365 = vmax.f32 %v3231, 0.0
        %v3366 = vmax.f32 %v3233, 0.0
        %v3367 = vmax.f32 %v3235, 0.0
        %v3368 = vmax.f32 %v3237, 0.0
        %v3369 = vmax.f32 %v3241, 0.0
        %v3370 = vmax.f32 %v3243, 0.0
        %v3371 = vmax.f32 %v3245, 0.0
        %v3372 = vmax.f32 %v3247, 0.0
        %v3373 = vmax.f32 %v3251, 0.0
        %v3374 = vmax.f32 %v3253, 0.0
        %v3375 = vmax.f32 %v3255, 0.0
        %v3376 = vmax.f32 %v3257, 0.0
        %v3377 = vmax.f32 %v3261, 0.0
        %v3378 = vmax.f32 %v3263, 0.0
        %v3379 = vmax.f32 %v3265, 0.0
        %v3380 = vmax.f32 %v3267, 0.0
        %v3381 = vmax.f32 %v3271, 0.0
        %v3382 = vmax.f32 %v3273, 0.0
        %v3383 = vmax.f32 %v3275, 0.0
        %v3384 = vmax.f32 %v3277, 0.0
        %v3385 = vmax.f32 %v3281, 0.0
        %v3386 = vmax.f32 %v3283, 0.0
        %v3387 = vmax.f32 %v3285, 0.0
        %v3388 = vmax.f32 %v3287, 0.0
        %v3389 = vmax.f32 %v3291, 0.0
        %v3390 = vmax.f32 %v3293, 0.0
        %v3391 = vmax.f32 %v3295, 0.0
        %v3392 = vmax.f32 %v3297, 0.0
        %v3393 = vmax.f32 %v3301, 0.0
        %v3394 = vmax.f32 %v3303, 0.0
        %v3395 = vmax.f32 %v3305, 0.0
        %v3396 = vmax.f32 %v3307, 0.0
        %v3397 = vmax.f32 %v3311, 0.0
        %v3398 = vmax.f32 %v3313, 0.0
        %v3399 = vmax.f32 %v3315, 0.0
        %v3400 = vmax.f32 %v3317, 0.0
        %v3401 = vmax.f32 %v3321, 0.0
        %v3402 = vmax.f32 %v3323, 0.0
        %v3403 = vmax.f32 %v3325, 0.0
        %v3404 = vmax.f32 %v3327, 0.0
        %v3405 = vmax.f32 %v3331, 0.0
        %v3406 = vmax.f32 %v3333, 0.0
        %v3407 = vmax.f32 %v3335, 0.0
        %v3408 = vmax.f32 %v3337, 0.0
        %v3409 = vmax.f32 %v3341, 0.0
        %v3410 = vmax.f32 %v3343, 0.0
        %v3411 = vmax.f32 %v3345, 0.0
        %v3412 = vmax.f32 %v3347, 0.0
        %v3413 = vpack.c.bf16 %v3351, %v3349
        %v3414 = vpack.c.bf16 %v3352, %v3350
        %v3415 = vpack.c.bf16 %v3355, %v3353
        %v3416 = vpack.c.bf16 %v3356, %v3354
        %v3417 = vpack.c.bf16 %v3359, %v3357
        %v3418 = vpack.c.bf16 %v3360, %v3358
        %v3419 = vpack.c.bf16 %v3363, %v3361
        %v3420 = vpack.c.bf16 %v3364, %v3362
        %v3421 = vpack.c.bf16 %v3367, %v3365
        %v3422 = vpack.c.bf16 %v3368, %v3366
        %v3423 = vpack.c.bf16 %v3371, %v3369
        %v3424 = vpack.c.bf16 %v3372, %v3370
        %v3425 = vpack.c.bf16 %v3375, %v3373
        %v3426 = vpack.c.bf16 %v3376, %v3374
        %v3427 = vpack.c.bf16 %v3379, %v3377
        %v3428 = vpack.c.bf16 %v3380, %v3378
        %v3429 = vpack.c.bf16 %v3383, %v3381
        %v3430 = vpack.c.bf16 %v3384, %v3382
        %v3431 = vpack.c.bf16 %v3387, %v3385
        %v3432 = vpack.c.bf16 %v3388, %v3386
        %v3433 = vpack.c.bf16 %v3391, %v3389
        %v3434 = vpack.c.bf16 %v3392, %v3390
        %v3435 = vpack.c.bf16 %v3395, %v3393
        %v3436 = vpack.c.bf16 %v3396, %v3394
        %v3437 = vpack.c.bf16 %v3399, %v3397
        %v3438 = vpack.c.bf16 %v3400, %v3398
        %v3439 = vpack.c.bf16 %v3403, %v3401
        %v3440 = vpack.c.bf16 %v3404, %v3402
        %v3441 = vpack.c.bf16 %v3407, %v3405
        %v3442 = vpack.c.bf16 %v3408, %v3406
        %v3443 = vpack.c.bf16 %v3411, %v3409
        %v3444 = vpack.c.bf16 %v3412, %v3410
        %v3445 = vld [vmem:[%s13] sm:$0xf]
        %v3446 = vld [vmem:[%s13 + $0x4] sm:$0xf]
        %v3447 = vld [vmem:[%s13 + $0x8] sm:$0xf]
        %v3448 = vld [vmem:[%s13 + $0xc] sm:$0xf]
        %v3449 = vld [vmem:[%s13 + $0x10] sm:$0xf]
        %v3450 = vld [vmem:[%s13 + $0x14] sm:$0xf]
        %v3451 = vld [vmem:[%s13 + $0x18] sm:$0xf]
        %v3452 = vld [vmem:[%s13 + $0x1c] sm:$0xf]
        %v3453 = vld [vmem:[%s13 + $0x20] sm:$0xf]
        %v3454 = vld [vmem:[%s13 + $0x24] sm:$0xf]
        %v3455 = vld [vmem:[%s13 + $0x28] sm:$0xf]
        %v3456 = vld [vmem:[%s13 + $0x2c] sm:$0xf]
        %v3457 = vld [vmem:[%s13 + $0x30] sm:$0xf]
        %v3458 = vld [vmem:[%s13 + $0x34] sm:$0xf]
        %v3459 = vld [vmem:[%s13 + $0x38] sm:$0xf]
        %v3460 = vld [vmem:[%s13 + $0x3c] sm:$0xf]
        %v3461 = vld [vmem:[%s13 + $0x40] sm:$0xf]
        %v3462 = vld [vmem:[%s13 + $0x44] sm:$0xf]
        %v3463 = vld [vmem:[%s13 + $0x48] sm:$0xf]
        %v3464 = vld [vmem:[%s13 + $0x4c] sm:$0xf]
        %v3465 = vld [vmem:[%s13 + $0x50] sm:$0xf]
        %v3466 = vld [vmem:[%s13 + $0x54] sm:$0xf]
        %v3467 = vld [vmem:[%s13 + $0x58] sm:$0xf]
        %v3468 = vld [vmem:[%s13 + $0x5c] sm:$0xf]
        %v3469 = vld [vmem:[%s13 + $0x60] sm:$0xf]
        %v3470 = vld [vmem:[%s13 + $0x64] sm:$0xf]
        %v3471 = vld [vmem:[%s13 + $0x68] sm:$0xf]
        %v3472 = vld [vmem:[%s13 + $0x6c] sm:$0xf]
        %v3473 = vld [vmem:[%s13 + $0x70] sm:$0xf]
        %v3474 = vld [vmem:[%s13 + $0x74] sm:$0xf]
        %v3475 = vld [vmem:[%s13 + $0x78] sm:$0xf]
        %v3476 = vld [vmem:[%s13 + $0x7c] sm:$0xf]
        %v3477 = vld [vmem:[%s14] sm:$0x1]
        %v3479 = vlaneseq
        %v3480 = vshrl.u32 %v3479, 7
        %v3481 = vsub.s32 0, %v3480
        %v3482 = vrot.slane %v3477, %v3481
        %v3516 = vunpack.c.l.b16 %v3445
        %v3517 = vunpack.c.l.b16 %v3446
        %v3518 = vunpack.c.l.b16 %v3447
        %v3519 = vunpack.c.l.b16 %v3448
        %v3520 = vunpack.c.l.b16 %v3449
        %v3521 = vunpack.c.l.b16 %v3450
        %v3522 = vunpack.c.l.b16 %v3451
        %v3523 = vunpack.c.l.b16 %v3452
        %v3524 = vunpack.c.l.b16 %v3453
        %v3525 = vunpack.c.l.b16 %v3454
        %v3526 = vunpack.c.l.b16 %v3455
        %v3527 = vunpack.c.l.b16 %v3456
        %v3528 = vunpack.c.l.b16 %v3457
        %v3529 = vunpack.c.l.b16 %v3458
        %v3530 = vunpack.c.l.b16 %v3459
        %v3531 = vunpack.c.l.b16 %v3460
        %v3532 = vunpack.c.l.b16 %v3461
        %v3533 = vunpack.c.l.b16 %v3462
        %v3534 = vunpack.c.l.b16 %v3463
        %v3535 = vunpack.c.l.b16 %v3464
        %v3536 = vunpack.c.l.b16 %v3465
        %v3537 = vunpack.c.l.b16 %v3466
        %v3538 = vunpack.c.l.b16 %v3467
        %v3539 = vunpack.c.l.b16 %v3468
        %v3540 = vunpack.c.l.b16 %v3469
        %v3541 = vunpack.c.l.b16 %v3470
        %v3542 = vunpack.c.l.b16 %v3471
        %v3543 = vunpack.c.l.b16 %v3472
        %v3544 = vunpack.c.l.b16 %v3473
        %v3545 = vunpack.c.l.b16 %v3474
        %v3546 = vunpack.c.l.b16 %v3475
        %v3547 = vunpack.c.l.b16 %v3476
        %v3548 = vpack.c.b16 %v3517, %v3516
        %v3549 = vpack.c.b16 %v3519, %v3518
        %v3550 = vpack.c.b16 %v3521, %v3520
        %v3551 = vpack.c.b16 %v3523, %v3522
        %v3552 = vpack.c.b16 %v3525, %v3524
        %v3553 = vpack.c.b16 %v3527, %v3526
        %v3554 = vpack.c.b16 %v3529, %v3528
        %v3555 = vpack.c.b16 %v3531, %v3530
        %v3556 = vpack.c.b16 %v3533, %v3532
        %v3557 = vpack.c.b16 %v3535, %v3534
        %v3558 = vpack.c.b16 %v3537, %v3536
        %v3559 = vpack.c.b16 %v3539, %v3538
        %v3560 = vpack.c.b16 %v3541, %v3540
        %v3561 = vpack.c.b16 %v3543, %v3542
        %v3562 = vpack.c.b16 %v3545, %v3544
        %v3563 = vpack.c.b16 %v3547, %v3546
        %3580 = vmatprep.subr.bf16.mxu0 0
        %3581 = vmatpush1.bf16.msra.mxu0 %v3548
        %3582 = vmatprep.subr.bf16.mxu0 0
        %3583 = vmatpush1.bf16.msra.mxu0 %v3549
        %3584 = vmatprep.subr.bf16.mxu0 0
        %3585 = vmatpush1.bf16.msra.mxu0 %v3550
        %3586 = vmatprep.subr.bf16.mxu0 0
        %3587 = vmatpush1.bf16.msra.mxu0 %v3551
        %3588 = vmatprep.subr.bf16.mxu0 0
        %3589 = vmatpush1.bf16.msra.mxu0 %v3552
        %3590 = vmatprep.subr.bf16.mxu0 0
        %3591 = vmatpush1.bf16.msra.mxu0 %v3553
        %3592 = vmatprep.subr.bf16.mxu0 0
        %3593 = vmatpush1.bf16.msra.mxu0 %v3554
        %3594 = vmatprep.subr.bf16.mxu0 0
        %3595 = vmatpush1.bf16.msra.mxu0 %v3555
        %3596 = vmatprep.subr.bf16.mxu0 0
        %3597 = vmatpush1.bf16.msra.mxu0 %v3556
        %3598 = vmatprep.subr.bf16.mxu0 0
        %3599 = vmatpush1.bf16.msra.mxu0 %v3557
        %3600 = vmatprep.subr.bf16.mxu0 0
        %3601 = vmatpush1.bf16.msra.mxu0 %v3558
        %3602 = vmatprep.subr.bf16.mxu0 0
        %3603 = vmatpush1.bf16.msra.mxu0 %v3559
        %3604 = vmatprep.subr.bf16.mxu0 0
        %3605 = vmatpush1.bf16.msra.mxu0 %v3560
        %3606 = vmatprep.subr.bf16.mxu0 0
        %3607 = vmatpush1.bf16.msra.mxu0 %v3561
        %3608 = vmatprep.subr.bf16.mxu0 0
        %3609 = vmatpush1.bf16.msra.mxu0 %v3562
        %3610 = vmatprep.subr.bf16.mxu0 0
        %3611 = vmatpush1.bf16.msra.mxu0 %v3563
        %3612 = vmatprep.mubr.bf16.mxu0 %v3414
        %3613 = vmatmul.mubr.bf16.gmra.mrb[0].mxu0 %v3413
        %v3614 = vpop.f32.mrb[0].mxu0
        %v3615 = vadd.f32 %v3482, %v3614
        %v3616 = vpop.f32.mrb[0].mxu0
        %v3617 = vpop.f32.mrb[0].mxu0
        %v3618 = vadd.f32 %v3482, %v3617
        %v3619 = vpop.f32.mrb[0].mxu0
        %3620 = vmatprep.mubr.bf16.mxu0 %v3416
        %3621 = vmatmul.mubr.bf16.gmra.mrb[0].mxu0 %v3415
        %v3622 = vpop.f32.mrb[0].mxu0
        %v3623 = vadd.f32 %v3482, %v3622
        %v3624 = vpop.f32.mrb[0].mxu0
        %v3625 = vpop.f32.mrb[0].mxu0
        %v3626 = vadd.f32 %v3482, %v3625
        %v3627 = vpop.f32.mrb[0].mxu0
        %3628 = vmatprep.mubr.bf16.mxu0 %v3418
        %3629 = vmatmul.mubr.bf16.gmra.mrb[0].mxu0 %v3417
        %v3630 = vpop.f32.mrb[0].mxu0
        %v3631 = vadd.f32 %v3482, %v3630
        %v3632 = vpop.f32.mrb[0].mxu0
        %v3633 = vpop.f32.mrb[0].mxu0
        %v3634 = vadd.f32 %v3482, %v3633
        %v3635 = vpop.f32.mrb[0].mxu0
        %3636 = vmatprep.mubr.bf16.mxu0 %v3420
        %3637 = vmatmul.mubr.bf16.gmra.mrb[0].mxu0 %v3419
        %v3638 = vpop.f32.mrb[0].mxu0
        %v3639 = vadd.f32 %v3482, %v3638
        %v3640 = vpop.f32.mrb[0].mxu0
        %v3641 = vpop.f32.mrb[0].mxu0
        %v3642 = vadd.f32 %v3482, %v3641
        %v3643 = vpop.f32.mrb[0].mxu0
        %3644 = vmatprep.mubr.bf16.mxu0 %v3422
        %3645 = vmatmul.mubr.bf16.gmra.mrb[0].mxu0 %v3421
        %v3646 = vpop.f32.mrb[0].mxu0
        %v3647 = vadd.f32 %v3482, %v3646
        %v3648 = vpop.f32.mrb[0].mxu0
        %v3649 = vpop.f32.mrb[0].mxu0
        %v3650 = vadd.f32 %v3482, %v3649
        %v3651 = vpop.f32.mrb[0].mxu0
        %3652 = vmatprep.mubr.bf16.mxu0 %v3424
        %3653 = vmatmul.mubr.bf16.gmra.mrb[0].mxu0 %v3423
        %v3654 = vpop.f32.mrb[0].mxu0
        %v3655 = vadd.f32 %v3482, %v3654
        %v3656 = vpop.f32.mrb[0].mxu0
        %v3657 = vpop.f32.mrb[0].mxu0
        %v3658 = vadd.f32 %v3482, %v3657
        %v3659 = vpop.f32.mrb[0].mxu0
        %3660 = vmatprep.mubr.bf16.mxu0 %v3426
        %3661 = vmatmul.mubr.bf16.gmra.mrb[0].mxu0 %v3425
        %v3662 = vpop.f32.mrb[0].mxu0
        %v3663 = vadd.f32 %v3482, %v3662
        %v3664 = vpop.f32.mrb[0].mxu0
        %v3665 = vpop.f32.mrb[0].mxu0
        %v3666 = vadd.f32 %v3482, %v3665
        %v3667 = vpop.f32.mrb[0].mxu0
        %3668 = vmatprep.mubr.bf16.mxu0 %v3428
        %3669 = vmatmul.mubr.bf16.gmra.mrb[0].mxu0 %v3427
        %v3670 = vpop.f32.mrb[0].mxu0
        %v3671 = vadd.f32 %v3482, %v3670
        %v3672 = vpop.f32.mrb[0].mxu0
        %v3673 = vpop.f32.mrb[0].mxu0
        %v3674 = vadd.f32 %v3482, %v3673
        %v3675 = vpop.f32.mrb[0].mxu0
        %3676 = vmatprep.mubr.bf16.mxu0 %v3430
        %3677 = vmatmul.mubr.bf16.gmra.mrb[0].mxu0 %v3429
        %v3678 = vpop.f32.mrb[0].mxu0
        %v3679 = vadd.f32 %v3482, %v3678
        %v3680 = vpop.f32.mrb[0].mxu0
        %v3681 = vpop.f32.mrb[0].mxu0
        %v3682 = vadd.f32 %v3482, %v3681
        %v3683 = vpop.f32.mrb[0].mxu0
        %3684 = vmatprep.mubr.bf16.mxu0 %v3432
        %3685 = vmatmul.mubr.bf16.gmra.mrb[0].mxu0 %v3431
        %v3686 = vpop.f32.mrb[0].mxu0
        %v3687 = vadd.f32 %v3482, %v3686
        %v3688 = vpop.f32.mrb[0].mxu0
        %v3689 = vpop.f32.mrb[0].mxu0
        %v3690 = vadd.f32 %v3482, %v3689
        %v3691 = vpop.f32.mrb[0].mxu0
        %3692 = vmatprep.mubr.bf16.mxu0 %v3434
        %3693 = vmatmul.mubr.bf16.gmra.mrb[0].mxu0 %v3433
        %v3694 = vpop.f32.mrb[0].mxu0
        %v3695 = vadd.f32 %v3482, %v3694
        %v3696 = vpop.f32.mrb[0].mxu0
        %v3697 = vpop.f32.mrb[0].mxu0
        %v3698 = vadd.f32 %v3482, %v3697
        %v3699 = vpop.f32.mrb[0].mxu0
        %3700 = vmatprep.mubr.bf16.mxu0 %v3436
        %3701 = vmatmul.mubr.bf16.gmra.mrb[0].mxu0 %v3435
        %v3702 = vpop.f32.mrb[0].mxu0
        %v3703 = vadd.f32 %v3482, %v3702
        %v3704 = vpop.f32.mrb[0].mxu0
        %v3705 = vpop.f32.mrb[0].mxu0
        %v3706 = vadd.f32 %v3482, %v3705
        %v3707 = vpop.f32.mrb[0].mxu0
        %3708 = vmatprep.mubr.bf16.mxu0 %v3438
        %3709 = vmatmul.mubr.bf16.gmra.mrb[0].mxu0 %v3437
        %v3710 = vpop.f32.mrb[0].mxu0
        %v3711 = vadd.f32 %v3482, %v3710
        %v3712 = vpop.f32.mrb[0].mxu0
        %v3713 = vpop.f32.mrb[0].mxu0
        %v3714 = vadd.f32 %v3482, %v3713
        %v3715 = vpop.f32.mrb[0].mxu0
        %3716 = vmatprep.mubr.bf16.mxu0 %v3440
        %3717 = vmatmul.mubr.bf16.gmra.mrb[0].mxu0 %v3439
        %v3718 = vpop.f32.mrb[0].mxu0
        %v3719 = vadd.f32 %v3482, %v3718
        %v3720 = vpop.f32.mrb[0].mxu0
        %v3721 = vpop.f32.mrb[0].mxu0
        %v3722 = vadd.f32 %v3482, %v3721
        %v3723 = vpop.f32.mrb[0].mxu0
        %3724 = vmatprep.mubr.bf16.mxu0 %v3442
        %3725 = vmatmul.mubr.bf16.gmra.mrb[0].mxu0 %v3441
        %v3726 = vpop.f32.mrb[0].mxu0
        %v3727 = vadd.f32 %v3482, %v3726
        %v3728 = vpop.f32.mrb[0].mxu0
        %v3729 = vpop.f32.mrb[0].mxu0
        %v3730 = vadd.f32 %v3482, %v3729
        %v3731 = vpop.f32.mrb[0].mxu0
        %3732 = vmatprep.mubr.bf16.mxu0 %v3444
        %3733 = vmatmul.mubr.bf16.gmra.mrb[0].mxu0 %v3443
        %v3734 = vpop.f32.mrb[0].mxu0
        %v3735 = vadd.f32 %v3482, %v3734
        %v3736 = vpop.f32.mrb[0].mxu0
        %v3737 = vpop.f32.mrb[0].mxu0
        %v3738 = vadd.f32 %v3482, %v3737
        %v3739 = vpop.f32.mrb[0].mxu0
        %3740 = vdwg.mxu0
        %3741 = vmax.xlane.f32.xlu0 %v3615
        %v3742 = vpop.xlane.xlu0 %3741
        %3743 = vmax.xlane.f32.xlu0 %v3618
        %v3744 = vpop.xlane.xlu0 %3743
        %3745 = vmax.xlane.f32.xlu0 %v3623
        %v3746 = vpop.xlane.xlu0 %3745
        %3747 = vmax.xlane.f32.xlu0 %v3626
        %v3748 = vpop.xlane.xlu0 %3747
        %3749 = vmax.xlane.f32.xlu0 %v3631
        %v3750 = vpop.xlane.xlu0 %3749
        %3751 = vmax.xlane.f32.xlu0 %v3634
        %v3752 = vpop.xlane.xlu0 %3751
        %3753 = vmax.xlane.f32.xlu0 %v3639
        %v3754 = vpop.xlane.xlu0 %3753
        %3755 = vmax.xlane.f32.xlu0 %v3642
        %v3756 = vpop.xlane.xlu0 %3755
        %3757 = vmax.xlane.f32.xlu0 %v3647
        %v3758 = vpop.xlane.xlu0 %3757
        %3759 = vmax.xlane.f32.xlu0 %v3650
        %v3760 = vpop.xlane.xlu0 %3759
        %3761 = vmax.xlane.f32.xlu0 %v3655
        %v3762 = vpop.xlane.xlu0 %3761
        %3763 = vmax.xlane.f32.xlu0 %v3658
        %v3764 = vpop.xlane.xlu0 %3763
        %3765 = vmax.xlane.f32.xlu0 %v3663
        %v3766 = vpop.xlane.xlu0 %3765
        %3767 = vmax.xlane.f32.xlu0 %v3666
        %v3768 = vpop.xlane.xlu0 %3767
        %3769 = vmax.xlane.f32.xlu0 %v3671
        %v3770 = vpop.xlane.xlu0 %3769
        %3771 = vmax.xlane.f32.xlu0 %v3674
        %v3772 = vpop.xlane.xlu0 %3771
        %3773 = vmax.xlane.f32.xlu0 %v3679
        %v3774 = vpop.xlane.xlu0 %3773
        %3775 = vmax.xlane.f32.xlu0 %v3682
        %v3776 = vpop.xlane.xlu0 %3775
        %3777 = vmax.xlane.f32.xlu0 %v3687
        %v3778 = vpop.xlane.xlu0 %3777
        %3779 = vmax.xlane.f32.xlu0 %v3690
        %v3780 = vpop.xlane.xlu0 %3779
        %3781 = vmax.xlane.f32.xlu0 %v3695
        %v3782 = vpop.xlane.xlu0 %3781
        %3783 = vmax.xlane.f32.xlu0 %v3698
        %v3784 = vpop.xlane.xlu0 %3783
        %3785 = vmax.xlane.f32.xlu0 %v3703
        %v3786 = vpop.xlane.xlu0 %3785
        %3787 = vmax.xlane.f32.xlu0 %v3706
        %v3788 = vpop.xlane.xlu0 %3787
        %3789 = vmax.xlane.f32.xlu0 %v3711
        %v3790 = vpop.xlane.xlu0 %3789
        %3791 = vmax.xlane.f32.xlu0 %v3714
        %v3792 = vpop.xlane.xlu0 %3791
        %3793 = vmax.xlane.f32.xlu0 %v3719
        %v3794 = vpop.xlane.xlu0 %3793
        %3795 = vmax.xlane.f32.xlu0 %v3722
        %v3796 = vpop.xlane.xlu0 %3795
        %3797 = vmax.xlane.f32.xlu0 %v3727
        %v3798 = vpop.xlane.xlu0 %3797
        %3799 = vmax.xlane.f32.xlu0 %v3730
        %v3800 = vpop.xlane.xlu0 %3799
        %3801 = vmax.xlane.f32.xlu0 %v3735
        %v3802 = vpop.xlane.xlu0 %3801
        %3803 = vmax.xlane.f32.xlu0 %v3738
        %v3804 = vpop.xlane.xlu0 %3803
        %v3805 = vsub.f32 %v3615, %v3742
        %v3806 = vsub.f32 %v3618, %v3744
        %v3807 = vsub.f32 %v3623, %v3746
        %v3808 = vsub.f32 %v3626, %v3748
        %v3809 = vsub.f32 %v3631, %v3750
        %v3810 = vsub.f32 %v3634, %v3752
        %v3811 = vsub.f32 %v3639, %v3754
        %v3812 = vsub.f32 %v3642, %v3756
        %v3813 = vsub.f32 %v3647, %v3758
        %v3814 = vsub.f32 %v3650, %v3760
        %v3815 = vsub.f32 %v3655, %v3762
        %v3816 = vsub.f32 %v3658, %v3764
        %v3817 = vsub.f32 %v3663, %v3766
        %v3818 = vsub.f32 %v3666, %v3768
        %v3819 = vsub.f32 %v3671, %v3770
        %v3820 = vsub.f32 %v3674, %v3772
        %v3821 = vsub.f32 %v3679, %v3774
        %v3822 = vsub.f32 %v3682, %v3776
        %v3823 = vsub.f32 %v3687, %v3778
        %v3824 = vsub.f32 %v3690, %v3780
        %v3825 = vsub.f32 %v3695, %v3782
        %v3826 = vsub.f32 %v3698, %v3784
        %v3827 = vsub.f32 %v3703, %v3786
        %v3828 = vsub.f32 %v3706, %v3788
        %v3829 = vsub.f32 %v3711, %v3790
        %v3830 = vsub.f32 %v3714, %v3792
        %v3831 = vsub.f32 %v3719, %v3794
        %v3832 = vsub.f32 %v3722, %v3796
        %v3833 = vsub.f32 %v3727, %v3798
        %v3834 = vsub.f32 %v3730, %v3800
        %v3835 = vsub.f32 %v3735, %v3802
        %v3836 = vsub.f32 %v3738, %v3804
        %v3837 = vmul.f32 %v3805, 1.442695
        %v3838 = vpow.pop %v3837
        %v3839 = vmul.f32 %v3806, 1.442695
        %v3840 = vpow.pop %v3839
        %v3841 = vmul.f32 %v3807, 1.442695
        %v3842 = vpow.pop %v3841
        %v3843 = vmul.f32 %v3808, 1.442695
        %v3844 = vpow.pop %v3843
        %v3845 = vmul.f32 %v3809, 1.442695
        %v3846 = vpow.pop %v3845
        %v3847 = vmul.f32 %v3810, 1.442695
        %v3848 = vpow.pop %v3847
        %v3849 = vmul.f32 %v3811, 1.442695
        %v3850 = vpow.pop %v3849
        %v3851 = vmul.f32 %v3812, 1.442695
        %v3852 = vpow.pop %v3851
        %v3853 = vmul.f32 %v3813, 1.442695
        %v3854 = vpow.pop %v3853
        %v3855 = vmul.f32 %v3814, 1.442695
        %v3856 = vpow.pop %v3855
        %v3857 = vmul.f32 %v3815, 1.442695
        %v3858 = vpow.pop %v3857
        %v3859 = vmul.f32 %v3816, 1.442695
        %v3860 = vpow.pop %v3859
        %v3861 = vmul.f32 %v3817, 1.442695
        %v3862 = vpow.pop %v3861
        %v3863 = vmul.f32 %v3818, 1.442695
        %v3864 = vpow.pop %v3863
        %v3865 = vmul.f32 %v3819, 1.442695
        %v3866 = vpow.pop %v3865
        %v3867 = vmul.f32 %v3820, 1.442695
        %v3868 = vpow.pop %v3867
        %v3869 = vmul.f32 %v3821, 1.442695
        %v3870 = vpow.pop %v3869
        %v3871 = vmul.f32 %v3822, 1.442695
        %v3872 = vpow.pop %v3871
        %v3873 = vmul.f32 %v3823, 1.442695
        %v3874 = vpow.pop %v3873
        %v3875 = vmul.f32 %v3824, 1.442695
        %v3876 = vpow.pop %v3875
        %v3877 = vmul.f32 %v3825, 1.442695
        %v3878 = vpow.pop %v3877
        %v3879 = vmul.f32 %v3826, 1.442695
        %v3880 = vpow.pop %v3879
        %v3881 = vmul.f32 %v3827, 1.442695
        %v3882 = vpow.pop %v3881
        %v3883 = vmul.f32 %v3828, 1.442695
        %v3884 = vpow.pop %v3883
        %v3885 = vmul.f32 %v3829, 1.442695
        %v3886 = vpow.pop %v3885
        %v3887 = vmul.f32 %v3830, 1.442695
        %v3888 = vpow.pop %v3887
        %v3889 = vmul.f32 %v3831, 1.442695
        %v3890 = vpow.pop %v3889
        %v3891 = vmul.f32 %v3832, 1.442695
        %v3892 = vpow.pop %v3891
        %v3893 = vmul.f32 %v3833, 1.442695
        %v3894 = vpow.pop %v3893
        %v3895 = vmul.f32 %v3834, 1.442695
        %v3896 = vpow.pop %v3895
        %v3897 = vmul.f32 %v3835, 1.442695
        %v3898 = vpow.pop %v3897
        %v3899 = vmul.f32 %v3836, 1.442695
        %v3900 = vpow.pop %v3899
        %3901 = vadd.xlane.f32.xlu0 %v3838
        %v3902 = vpop.xlane.xlu0 %3901
        %3903 = vadd.xlane.f32.xlu0 %v3840
        %v3904 = vpop.xlane.xlu0 %3903
        %3905 = vadd.xlane.f32.xlu0 %v3842
        %v3906 = vpop.xlane.xlu0 %3905
        %3907 = vadd.xlane.f32.xlu0 %v3844
        %v3908 = vpop.xlane.xlu0 %3907
        %3909 = vadd.xlane.f32.xlu0 %v3846
        %v3910 = vpop.xlane.xlu0 %3909
        %3911 = vadd.xlane.f32.xlu0 %v3848
        %v3912 = vpop.xlane.xlu0 %3911
        %3913 = vadd.xlane.f32.xlu0 %v3850
        %v3914 = vpop.xlane.xlu0 %3913
        %3915 = vadd.xlane.f32.xlu0 %v3852
        %v3916 = vpop.xlane.xlu0 %3915
        %3917 = vadd.xlane.f32.xlu0 %v3854
        %v3918 = vpop.xlane.xlu0 %3917
        %3919 = vadd.xlane.f32.xlu0 %v3856
        %v3920 = vpop.xlane.xlu0 %3919
        %3921 = vadd.xlane.f32.xlu0 %v3858
        %v3922 = vpop.xlane.xlu0 %3921
        %3923 = vadd.xlane.f32.xlu0 %v3860
        %v3924 = vpop.xlane.xlu0 %3923
        %3925 = vadd.xlane.f32.xlu0 %v3862
        %v3926 = vpop.xlane.xlu0 %3925
        %3927 = vadd.xlane.f32.xlu0 %v3864
        %v3928 = vpop.xlane.xlu0 %3927
        %3929 = vadd.xlane.f32.xlu0 %v3866
        %v3930 = vpop.xlane.xlu0 %3929
        %3931 = vadd.xlane.f32.xlu0 %v3868
        %v3932 = vpop.xlane.xlu0 %3931
        %3933 = vadd.xlane.f32.xlu0 %v3870
        %v3934 = vpop.xlane.xlu0 %3933
        %3935 = vadd.xlane.f32.xlu0 %v3872
        %v3936 = vpop.xlane.xlu0 %3935
        %3937 = vadd.xlane.f32.xlu0 %v3874
        %v3938 = vpop.xlane.xlu0 %3937
        %3939 = vadd.xlane.f32.xlu0 %v3876
        %v3940 = vpop.xlane.xlu0 %3939
        %3941 = vadd.xlane.f32.xlu0 %v3878
        %v3942 = vpop.xlane.xlu0 %3941
        %3943 = vadd.xlane.f32.xlu0 %v3880
        %v3944 = vpop.xlane.xlu0 %3943
        %3945 = vadd.xlane.f32.xlu0 %v3882
        %v3946 = vpop.xlane.xlu0 %3945
        %3947 = vadd.xlane.f32.xlu0 %v3884
        %v3948 = vpop.xlane.xlu0 %3947
        %3949 = vadd.xlane.f32.xlu0 %v3886
        %v3950 = vpop.xlane.xlu0 %3949
        %3951 = vadd.xlane.f32.xlu0 %v3888
        %v3952 = vpop.xlane.xlu0 %3951
        %3953 = vadd.xlane.f32.xlu0 %v3890
        %v3954 = vpop.xlane.xlu0 %3953
        %3955 = vadd.xlane.f32.xlu0 %v3892
        %v3956 = vpop.xlane.xlu0 %3955
        %3957 = vadd.xlane.f32.xlu0 %v3894
        %v3958 = vpop.xlane.xlu0 %3957
        %3959 = vadd.xlane.f32.xlu0 %v3896
        %v3960 = vpop.xlane.xlu0 %3959
        %3961 = vadd.xlane.f32.xlu0 %v3898
        %v3962 = vpop.xlane.xlu0 %3961
        %3963 = vadd.xlane.f32.xlu0 %v3900
        %v3964 = vpop.xlane.xlu0 %3963
        %v3965 = vlog2.pop %v3902
        %v3966 = vmul.f32 %v3965, 0.6931472
        %v3967 = vlog2.pop %v3904
        %v3968 = vmul.f32 %v3967, 0.6931472
        %v3969 = vlog2.pop %v3906
        %v3970 = vmul.f32 %v3969, 0.6931472
        %v3971 = vlog2.pop %v3908
        %v3972 = vmul.f32 %v3971, 0.6931472
        %v3973 = vlog2.pop %v3910
        %v3974 = vmul.f32 %v3973, 0.6931472
        %v3975 = vlog2.pop %v3912
        %v3976 = vmul.f32 %v3975, 0.6931472
        %v3977 = vlog2.pop %v3914
        %v3978 = vmul.f32 %v3977, 0.6931472
        %v3979 = vlog2.pop %v3916
        %v3980 = vmul.f32 %v3979, 0.6931472
        %v3981 = vlog2.pop %v3918
        %v3982 = vmul.f32 %v3981, 0.6931472
        %v3983 = vlog2.pop %v3920
        %v3984 = vmul.f32 %v3983, 0.6931472
        %v3985 = vlog2.pop %v3922
        %v3986 = vmul.f32 %v3985, 0.6931472
        %v3987 = vlog2.pop %v3924
        %v3988 = vmul.f32 %v3987, 0.6931472
        %v3989 = vlog2.pop %v3926
        %v3990 = vmul.f32 %v3989, 0.6931472
        %v3991 = vlog2.pop %v3928
        %v3992 = vmul.f32 %v3991, 0.6931472
        %v3993 = vlog2.pop %v3930
        %v3994 = vmul.f32 %v3993, 0.6931472
        %v3995 = vlog2.pop %v3932
        %v3996 = vmul.f32 %v3995, 0.6931472
        %v3997 = vlog2.pop %v3934
        %v3998 = vmul.f32 %v3997, 0.6931472
        %v3999 = vlog2.pop %v3936
        %v4000 = vmul.f32 %v3999, 0.6931472
        %v4001 = vlog2.pop %v3938
        %v4002 = vmul.f32 %v4001, 0.6931472
        %v4003 = vlog2.pop %v3940
        %v4004 = vmul.f32 %v4003, 0.6931472
        %v4005 = vlog2.pop %v3942
        %v4006 = vmul.f32 %v4005, 0.6931472
        %v4007 = vlog2.pop %v3944
        %v4008 = vmul.f32 %v4007, 0.6931472
        %v4009 = vlog2.pop %v3946
        %v4010 = vmul.f32 %v4009, 0.6931472
        %v4011 = vlog2.pop %v3948
        %v4012 = vmul.f32 %v4011, 0.6931472
        %v4013 = vlog2.pop %v3950
        %v4014 = vmul.f32 %v4013, 0.6931472
        %v4015 = vlog2.pop %v3952
        %v4016 = vmul.f32 %v4015, 0.6931472
        %v4017 = vlog2.pop %v3954
        %v4018 = vmul.f32 %v4017, 0.6931472
        %v4019 = vlog2.pop %v3956
        %v4020 = vmul.f32 %v4019, 0.6931472
        %v4021 = vlog2.pop %v3958
        %v4022 = vmul.f32 %v4021, 0.6931472
        %v4023 = vlog2.pop %v3960
        %v4024 = vmul.f32 %v4023, 0.6931472
        %v4025 = vlog2.pop %v3962
        %v4026 = vmul.f32 %v4025, 0.6931472
        %v4027 = vlog2.pop %v3964
        %v4028 = vmul.f32 %v4027, 0.6931472
        %v4029 = vsub.f32 %v3805, %v3966
        %v4030 = vsub.f32 %v3806, %v3968
        %v4031 = vsub.f32 %v3807, %v3970
        %v4032 = vsub.f32 %v3808, %v3972
        %v4033 = vsub.f32 %v3809, %v3974
        %v4034 = vsub.f32 %v3810, %v3976
        %v4035 = vsub.f32 %v3811, %v3978
        %v4036 = vsub.f32 %v3812, %v3980
        %v4037 = vsub.f32 %v3813, %v3982
        %v4038 = vsub.f32 %v3814, %v3984
        %v4039 = vsub.f32 %v3815, %v3986
        %v4040 = vsub.f32 %v3816, %v3988
        %v4041 = vsub.f32 %v3817, %v3990
        %v4042 = vsub.f32 %v3818, %v3992
        %v4043 = vsub.f32 %v3819, %v3994
        %v4044 = vsub.f32 %v3820, %v3996
        %v4045 = vsub.f32 %v3821, %v3998
        %v4046 = vsub.f32 %v3822, %v4000
        %v4047 = vsub.f32 %v3823, %v4002
        %v4048 = vsub.f32 %v3824, %v4004
        %v4049 = vsub.f32 %v3825, %v4006
        %v4050 = vsub.f32 %v3826, %v4008
        %v4051 = vsub.f32 %v3827, %v4010
        %v4052 = vsub.f32 %v3828, %v4012
        %v4053 = vsub.f32 %v3829, %v4014
        %v4054 = vsub.f32 %v3830, %v4016
        %v4055 = vsub.f32 %v3831, %v4018
        %v4056 = vsub.f32 %v3832, %v4020
        %v4057 = vsub.f32 %v3833, %v4022
        %v4058 = vsub.f32 %v3834, %v4024
        %v4059 = vsub.f32 %v3835, %v4026
        %v4060 = vsub.f32 %v3836, %v4028
        %4061 = vst [vmem:[%s555] sm:$0xff] %v4029
        %4062 = vst [vmem:[%s555 + $0x8] sm:$0xff] %v4030
        %4063 = vst [vmem:[%s555 + $0x10] sm:$0xff] %v4031
        %4064 = vst [vmem:[%s555 + $0x18] sm:$0xff] %v4032
        %4065 = vst [vmem:[%s555 + $0x20] sm:$0xff] %v4033
        %4066 = vst [vmem:[%s555 + $0x28] sm:$0xff] %v4034
        %4067 = vst [vmem:[%s555 + $0x30] sm:$0xff] %v4035
        %4068 = vst [vmem:[%s555 + $0x38] sm:$0xff] %v4036
        %4069 = vst [vmem:[%s555 + $0x40] sm:$0xff] %v4037
        %4070 = vst [vmem:[%s555 + $0x48] sm:$0xff] %v4038
        %4071 = vst [vmem:[%s555 + $0x50] sm:$0xff] %v4039
        %4072 = vst [vmem:[%s555 + $0x58] sm:$0xff] %v4040
        %4073 = vst [vmem:[%s555 + $0x60] sm:$0xff] %v4041
        %4074 = vst [vmem:[%s555 + $0x68] sm:$0xff] %v4042
        %4075 = vst [vmem:[%s555 + $0x70] sm:$0xff] %v4043
        %4076 = vst [vmem:[%s555 + $0x78] sm:$0xff] %v4044
        %4077 = vst [vmem:[%s555 + $0x80] sm:$0xff] %v4045
        %4078 = vst [vmem:[%s555 + $0x88] sm:$0xff] %v4046
        %4079 = vst [vmem:[%s555 + $0x90] sm:$0xff] %v4047
        %4080 = vst [vmem:[%s555 + $0x98] sm:$0xff] %v4048
        %4081 = vst [vmem:[%s555 + $0xa0] sm:$0xff] %v4049
        %4082 = vst [vmem:[%s555 + $0xa8] sm:$0xff] %v4050
        %4083 = vst [vmem:[%s555 + $0xb0] sm:$0xff] %v4051
        %4084 = vst [vmem:[%s555 + $0xb8] sm:$0xff] %v4052
        %4085 = vst [vmem:[%s555 + $0xc0] sm:$0xff] %v4053
        %4086 = vst [vmem:[%s555 + $0xc8] sm:$0xff] %v4054
        %4087 = vst [vmem:[%s555 + $0xd0] sm:$0xff] %v4055
        %4088 = vst [vmem:[%s555 + $0xd8] sm:$0xff] %v4056
        %4089 = vst [vmem:[%s555 + $0xe0] sm:$0xff] %v4057
        %4090 = vst [vmem:[%s555 + $0xe8] sm:$0xff] %v4058
        %4091 = vst [vmem:[%s555 + $0xf0] sm:$0xff] %v4059
        %4092 = vst [vmem:[%s555 + $0xf8] sm:$0xff] %v4060
        %s4093 = smul.u32 32, %s29
        %p4094 = scmp.lt.s32.totalorder %s4093, 63
        %s4095 = scalar_select %p4094, %s4093, 63
        %s4096 = smul.addr %s4095, 8
        %s4097 = scalar_lea.vmem %s15, %s4096
        // Predicated region
        $region97: #{policy_network_forward.1} parent=79 // pred_check
          %p4098 = pneg %p367
        $region98: #{policy_network_forward.1} parent=79 // pred_check_branch
          %4100 = sbr.rel (%p4098) target = $region100
        $region99: #{policy_network_forward.1} parent=79 // pred_region
          %s4101 = smul.u32 32, %s29
        $region100: #{policy_network_forward.1} parent=79 // pred_fallthru
          _
      $region80: #{policy_network_forward.1} parent=5 // pred_fallthru
        _
      %p4102 = scmp.le.s32.totalorder 2, %s24
      // Predicated region
      $region101: #{policy_network_forward.1} parent=5 // pred_check
        %p4103 = pneg %p4102
      $region102: #{policy_network_forward.1} parent=5 // pred_check_branch
        %4105 = sbr.rel (%p4103) target = $region104
      $region103: #{policy_network_forward.1} parent=5 // pred_region
        %s4106 = ssub.s32 %s24, 2
        // Predicated region
        $region105: #{policy_network_forward.1} parent=103 // pred_check
          %p4107 = pneg %p373
        $region106: #{policy_network_forward.1} parent=103 // pred_check_branch
          %4109 = sbr.rel (%p4107) target = $region108
        $region107: #{policy_network_forward.1} parent=103 // pred_region
          %s4110 = smul.u32 32, %s30
          %p4111 = scmp.lt.s32.totalorder %s4110, 63
          %s4112 = scalar_select %p4111, %s4110, 63
          %s4113 = smul.addr %s4112, 8
          %s4114 = scalar_lea.vmem %s15, %s4113
        $region108: #{policy_network_forward.1} parent=103 // pred_fallthru
          _
      $region104: #{policy_network_forward.1} parent=5 // pred_fallthru
        _
    $region6: #{policy_network_forward.1} parent=1 // loop_footer
      %s28 = sadd.s32 1, %s24
    $region7: #{policy_network_forward.1} parent=1 // loop_footer_branch
      %23 = sbr.rel target = $region3
    $region8: #{policy_network_forward.1} parent=1 // loop_exit
      _
    %4115 = vsyncpa [#allocation3], 1
    %s4116 = scalar_lea.sflag [#allocation3], 1
    %4117 = vsyncpa %s4116, 1
    %4118 = vsyncpa [#allocation5], 1
    %4119 = vsyncpa [#allocation8], 1

</llo_original>
